<compile_context>
chip_gen: v7x
topology: tpu7x:2x2x1
jax: 0.10.0
libtpu: 0.0.40
codegen_flags: <defaults>
</compile_context>

<pallas_src>
import functools
import numpy as np

import jax
import jax.numpy as jnp
from jax.experimental import pallas as pl
from jax.experimental.pallas import tpu as pltpu

BN_EPS = 1e-5

_TM_MATMUL = 1024   # row tile (flattened B*H*W) for the matmul/conv kernels
_TR_ELEM = 1024     # row tile for the lane-dense elementwise / stats kernels


# ----------------------------------------------------------------------------
# Pallas kernels
# ----------------------------------------------------------------------------
def _matmul_bias_kernel(x_ref, w_ref, b_ref, o_ref):
    """(TM, K) @ (K, N) + bias.  bf16 MXU inputs, f32 accumulation."""
    x = x_ref[...].astype(jnp.bfloat16)
    o_ref[...] = (
        jnp.dot(x, w_ref[...], preferred_element_type=jnp.float32) + b_ref[...]
    )


def _add_matmul_bias_kernel(a_ref, c_ref, w_ref, b_ref, o_ref):
    """((a + c) @ w) + bias with the elementwise add fused into the tile."""
    s = (a_ref[...] + c_ref[...]).astype(jnp.bfloat16)
    o_ref[...] = (
        jnp.dot(s, w_ref[...], preferred_element_type=jnp.float32) + b_ref[...]
    )


def _stats_kernel(x_ref, sum_ref, sq_ref, *, rows_total):
    """Accumulate per-lane sum / sum-of-squares across the row-tiled grid."""
    @pl.when(pl.program_id(0) == 0)
    def _():
        sum_ref[...] = jnp.zeros_like(sum_ref)
        sq_ref[...] = jnp.zeros_like(sq_ref)

    tr, lanes = x_ref.shape
    rid = (jax.lax.broadcasted_iota(jnp.int32, (tr, lanes), 0)
           + pl.program_id(0) * tr)
    x = jnp.where(rid < rows_total, x_ref[...], 0.0)   # mask partial last tile
    sum_ref[...] += jnp.sum(x, axis=0, keepdims=True)
    sq_ref[...] += jnp.sum(x * x, axis=0, keepdims=True)


def _stats_add_kernel(a_ref, b_ref, sum_ref, sq_ref, *, rows_total):
    """Same as _stats_kernel but for s = a + b (add fused into the pass)."""
    @pl.when(pl.program_id(0) == 0)
    def _():
        sum_ref[...] = jnp.zeros_like(sum_ref)
        sq_ref[...] = jnp.zeros_like(sq_ref)

    tr, lanes = a_ref.shape
    rid = (jax.lax.broadcasted_iota(jnp.int32, (tr, lanes), 0)
           + pl.program_id(0) * tr)
    s = jnp.where(rid < rows_total, a_ref[...] + b_ref[...], 0.0)
    sum_ref[...] += jnp.sum(s, axis=0, keepdims=True)
    sq_ref[...] += jnp.sum(s * s, axis=0, keepdims=True)


def _norm_prelu_kernel(x_ref, scale_ref, shift_ref, alpha_ref, o_ref):
    """y = x*scale + shift; PReLU(y).  scale/shift/alpha are per-lane (1, L)."""
    y = x_ref[...] * scale_ref[...] + shift_ref[...]
    o_ref[...] = jnp.where(y >= 0.0, y, alpha_ref[...] * y)


def _add_norm_prelu_res_kernel(a_ref, b_ref, res_ref, scale_ref, shift_ref,
                               alpha_ref, o_ref):
    """PReLU(batchnorm(a + b)) + res, with precomputed per-lane scale/shift."""
    y = (a_ref[...] + b_ref[...]) * scale_ref[...] + shift_ref[...]
    o_ref[...] = jnp.where(y >= 0.0, y, alpha_ref[...] * y) + res_ref[...]


# ----------------------------------------------------------------------------
# Tiling helpers
# ----------------------------------------------------------------------------
def _row_tiles(rows, cap):
    """Tile the row axis: whole array if small, else `cap` (multiple of 8)."""
    if rows <= cap:
        return rows, 1
    return cap, pl.cdiv(rows, cap)


def _dense_cols(M, C):
    """Lane width L for the lane-dense view: C | L, L | M*C, L % 128 == 0."""
    E = M * C
    if C % 128 == 0:
        return C
    for prefer_sublanes in (True, False):
        for L in (512, 256, 128):
            if L % C == 0 and E % L == 0 and (
                    (E // L) % 8 == 0 or not prefer_sublanes):
                return L
    return C   # lane-sparse fallback (C does not divide 128)


# ----------------------------------------------------------------------------
# Pallas wrappers (glue: reshapes / padding / BlockSpecs)
# ----------------------------------------------------------------------------
def _matmul_bias(x2d, w, b, *, add=None):
    """Row-tiled (M, K) @ (K, N) + bias.  `add` fuses an x+add before the dot."""
    M, K = x2d.shape
    N = w.shape[-1]
    wq = w.astype(jnp.bfloat16)
    b2 = b.reshape(1, N).astype(jnp.float32)
    tm, gm = _row_tiles(M, _TM_MATMUL)
    row_spec = pl.BlockSpec((tm, K), lambda i: (i, 0))
    w_spec = pl.BlockSpec((K, N), lambda i: (0, 0))
    b_spec = pl.BlockSpec((1, N), lambda i: (0, 0))
    out_spec = pl.BlockSpec((tm, N), lambda i: (i, 0))
    if add is None:
        kern, ins = _matmul_bias_kernel, (x2d, wq, b2)
        in_specs = [row_spec, w_spec, b_spec]
    else:
        kern, ins = _add_matmul_bias_kernel, (x2d, add, wq, b2)
        in_specs = [row_spec, row_spec, w_spec, b_spec]
    return pl.pallas_call(
        kern,
        out_shape=jax.ShapeDtypeStruct((M, N), jnp.float32),
        grid=(gm,),
        in_specs=in_specs,
        out_specs=out_spec,
        compiler_params=pltpu.CompilerParams(
            dimension_semantics=("parallel",)),
    )(*ins)


def conv1x1(x, w, b, *, add=None):
    """x: (B,H,W,Cin), w: (Cin,Cout), b: (Cout,).  Optional fused input add."""
    B, H, W, Cin = x.shape
    Cout = w.shape[-1]
    M = B * H * W
    add2 = None if add is None else add.reshape(M, Cin)
    out = _matmul_bias(x.reshape(M, Cin), w, b, add=add2)
    return out.reshape(B, H, W, Cout)


def conv3x3_fused(x, ws, bs):
    """3x3 'same' conv as one im2col matmul; several weight sets sharing the
    same input are fused along the output-channel axis (one MXU pass)."""
    B, H, W, Cin = x.shape
    M = B * H * W
    # im2col patches built in bf16 (halves the materialized HBM footprint).
    # TODO(synk): patches still cost ~9x the input's HBM bytes; a halo-DMA
    # kernel (memory_space=pl.ANY + make_async_copy) would remove that.
    xp = jnp.pad(x.astype(jnp.bfloat16), ((0, 0), (1, 1), (1, 1), (0, 0)))
    patches = jnp.concatenate(
        [xp[:, kh:kh + H, kw:kw + W, :] for kh in range(3) for kw in range(3)],
        axis=-1,
    ).reshape(M, 9 * Cin)
    wcat = jnp.concatenate([w.reshape(9 * Cin, -1) for w in ws], axis=-1)
    bcat = jnp.concatenate(bs)
    out = _matmul_bias(patches, wcat, bcat)          # (M, sum_i Cout_i)
    outs, off = [], 0
    for w in ws:
        c = w.shape[-1]
        outs.append(out[:, off:off + c].reshape(B, H, W, c))
        off += c
    return tuple(outs)


def _lane_stats(arrs, rows, L, kernel):
    """Per-lane [sum, sumsq] over the row-tiled grid (reduction axis)."""
    tr, gr = _row_tiles(rows, _TR_ELEM)
    row_spec = pl.BlockSpec((tr, L), lambda i: (i, 0))
    vec_spec = pl.BlockSpec((1, L), lambda i: (0, 0))
    return pl.pallas_call(
        functools.partial(kernel, rows_total=rows),
        out_shape=(jax.ShapeDtypeStruct((1, L), jnp.float32),
                   jax.ShapeDtypeStruct((1, L), jnp.float32)),
        grid=(gr,),
        in_specs=[row_spec] * len(arrs),
        out_specs=(vec_spec, vec_spec),
        compiler_params=pltpu.CompilerParams(
            dimension_semantics=("arbitrary",)),
    )(*arrs)


def _norm_call(kernel, row_arrs, lane_vecs, rows, L):
    """Row-tiled elementwise normalize/PReLU(+add) pass (fully pipelined)."""
    tr, gr = _row_tiles(rows, _TR_ELEM)
    row_spec = pl.BlockSpec((tr, L), lambda i: (i, 0))
    vec_spec = pl.BlockSpec((1, L), lambda i: (0, 0))
    return pl.pallas_call(
        kernel,
        out_shape=jax.ShapeDtypeStruct((rows, L), jnp.float32),
        grid=(gr,),
        in_specs=[row_spec] * len(row_arrs) + [vec_spec] * len(lane_vecs),
        out_specs=row_spec,
        compiler_params=pltpu.CompilerParams(
            dimension_semantics=("parallel",)),
    )(*row_arrs, *lane_vecs)


def _fold_affine(sum_lane, sq_lane, C, L, count, gamma, beta):
    """Fold per-lane sums to per-channel and build BN scale/shift vectors."""
    s = sum_lane.reshape(L // C, C).sum(axis=0)
    sq = sq_lane.reshape(L // C, C).sum(axis=0)
    mean = s / count
    var = sq / count - mean * mean          # biased variance (training mode)
    scale = gamma * jax.lax.rsqrt(var + BN_EPS)
    shift = beta - mean * scale
    return scale, shift


def bn_prelu(x, gamma, beta, alpha):
    """Training-mode BatchNorm over (B,H,W) + PReLU, as two tiled passes."""
    B, H, W, C = x.shape
    M = B * H * W
    L = _dense_cols(M, C)
    rows = (M * C) // L
    x2 = x.reshape(rows, L)
    sum_lane, sq_lane = _lane_stats([x2], rows, L, _stats_kernel)
    scale, shift = _fold_affine(sum_lane, sq_lane, C, L, M, gamma, beta)
    tile = lambda v: jnp.tile(v, L // C).reshape(1, L)
    out = _norm_call(_norm_prelu_kernel, [x2],
                     [tile(scale), tile(shift), tile(alpha)], rows, L)
    return out.reshape(B, H, W, C)


def bnaf_residual(a, b, res, gamma, beta, alpha):
    """prelu(batchnorm(a + b)) + res, the add fused into both tiled passes."""
    B, H, W, C = a.shape
    M = B * H * W
    L = _dense_cols(M, C)
    rows = (M * C) // L
    a2, b2, r2 = (t.reshape(rows, L) for t in (a, b, res))
    sum_lane, sq_lane = _lane_stats([a2, b2], rows, L, _stats_add_kernel)
    scale, shift = _fold_affine(sum_lane, sq_lane, C, L, M, gamma, beta)
    tile = lambda v: jnp.tile(v, L // C).reshape(1, L)
    out = _norm_call(_add_norm_prelu_res_kernel, [a2, b2, r2],
                     [tile(scale), tile(shift), tile(alpha)], rows, L)
    return out.reshape(B, H, W, C)


# ----------------------------------------------------------------------------
# Model forward (NHWC internally)
# ----------------------------------------------------------------------------
def spectra_forward(x, p):
    h = conv1x1(x, p["in_w"], p["in_b"])
    h = bn_prelu(h, p["in_gamma"], p["in_beta"], p["in_alpha"])
    skip = h
    # TODO(synk): rfft2/irfft2 have no Pallas equivalent; computed with jnp.fft.
    rf = jnp.fft.rfft2(h, axes=(1, 2))                           # (B,H,Wr,Ci)
    cat = jnp.concatenate([jnp.real(rf), jnp.imag(rf)], axis=2)  # cat along W
    m = conv1x1(cat, p["mid_w"], p["mid_b"])
    m = bn_prelu(m, p["mid_gamma"], p["mid_beta"], p["mid_alpha"])
    Wr = m.shape[2] // 2
    comp = jax.lax.complex(m[:, :, :Wr, :], m[:, :, Wr:, :])
    spect = jnp.fft.irfft2(comp, axes=(1, 2))                    # (B,H,W,Ci)
    return conv1x1(spect, p["out_w"], p["out_b"], add=skip)      # fused add


def fastfc_forward(x_nchw, params):
    x = jnp.transpose(x_nchw, (0, 2, 3, 1)).astype(jnp.float32)  # NCHW -> NHWC
    mid = x.shape[-1] // 2
    x_loc = x[..., :mid]
    x_glo = x[..., mid:]

    # The two 3x3 convs that read x_loc share one im2col + one MXU pass.
    x_ll, x_lg = conv3x3_fused(
        x_loc, [params["w_ll"], params["w_lg"]], [params["b_ll"], params["b_lg"]])
    (x_gl,) = conv3x3_fused(x_glo, [params["w_gl"]], [params["b_gl"]])
    x_gg = spectra_forward(x_glo, params["spectra"])

    out_loc = bnaf_residual(x_ll, x_gl, x_loc,
                            params["bn1_gamma"], params["bn1_beta"],
                            params["alpha1"])
    out_glo = bnaf_residual(x_gg, x_lg, x_glo,
                            params["bn2_gamma"], params["bn2_beta"],
                            params["alpha2"])
    out = jnp.concatenate([out_loc, out_glo], axis=-1)

    to_nchw = lambda t: jnp.transpose(t, (0, 3, 1, 2))
    return to_nchw(out), to_nchw(out_loc), to_nchw(out_glo)


# ----------------------------------------------------------------------------
# Pure-JAX reference (for correctness checking)
# ----------------------------------------------------------------------------
def _ref_conv3x3(x, w, b):
    y = jax.lax.conv_general_dilated(
        x, w, window_strides=(1, 1), padding="SAME",
        dimension_numbers=("NHWC", "HWIO", "NHWC"),
        precision=jax.lax.Precision.HIGHEST)
    return y + b


def _ref_conv1x1(x, w, b):
    return jnp.einsum("bhwc,cd->bhwd", x, w,
                      precision=jax.lax.Precision.HIGHEST) + b


def _ref_bn_prelu(x, gamma, beta, alpha):
    mean = jnp.mean(x, axis=(0, 1, 2), keepdims=True)
    var = jnp.mean((x - mean) ** 2, axis=(0, 1, 2), keepdims=True)
    y = (x - mean) / jnp.sqrt(var + BN_EPS) * gamma + beta
    return jnp.where(y >= 0.0, y, alpha * y)


def _ref_spectra(x, p):
    h = _ref_bn_prelu(_ref_conv1x1(x, p["in_w"], p["in_b"]),
                      p["in_gamma"], p["in_beta"], p["in_alpha"])
    skip = h
    rf = jnp.fft.rfft2(h, axes=(1, 2))
    cat = jnp.concatenate([jnp.real(rf), jnp.imag(rf)], axis=2)
    m = _ref_bn_prelu(_ref_conv1x1(cat, p["mid_w"], p["mid_b"]),
                      p["mid_gamma"], p["mid_beta"], p["mid_alpha"])
    Wr = m.shape[2] // 2
    comp = jax.lax.complex(m[:, :, :Wr, :], m[:, :, Wr:, :])
    spect = jnp.fft.irfft2(comp, axes=(1, 2))
    return _ref_conv1x1(spect + skip, p["out_w"], p["out_b"])


def _ref_fastfc(x_nchw, params):
    x = jnp.transpose(x_nchw, (0, 2, 3, 1)).astype(jnp.float32)
    mid = x.shape[-1] // 2
    x_loc, x_glo = x[..., :mid], x[..., mid:]
    x_ll = _ref_conv3x3(x_loc, params["w_ll"], params["b_ll"])
    x_lg = _ref_conv3x3(x_loc, params["w_lg"], params["b_lg"])
    x_gl = _ref_conv3x3(x_glo, params["w_gl"], params["b_gl"])
    x_gg = _ref_spectra(x_glo, params["spectra"])
    out_loc = _ref_bn_prelu(x_ll + x_gl, params["bn1_gamma"],
                            params["bn1_beta"], params["alpha1"]) + x_loc
    out_glo = _ref_bn_prelu(x_gg + x_lg, params["bn2_gamma"],
                            params["bn2_beta"], params["alpha2"]) + x_glo
    out = jnp.concatenate([out_loc, out_glo], axis=-1)
    to_nchw = lambda t: jnp.transpose(t, (0, 3, 1, 2))
    return to_nchw(out), to_nchw(out_loc), to_nchw(out_glo)


# ----------------------------------------------------------------------------
# Deterministic parameter init (shapes follow FastFC.__init__ / Spectra.__init__)
# ----------------------------------------------------------------------------
def init_params(key, in_depth):
    mid = in_depth // 2
    inter = mid // 2 if mid >= 2 else mid
    keys = jax.random.split(key, 12)
    w = lambda k, shape: 0.1 * jax.random.normal(k, shape, jnp.float32)
    ones = lambda c: jnp.ones((c,), jnp.float32)
    zeros = lambda c: jnp.zeros((c,), jnp.float32)
    prelu = lambda c: jnp.full((c,), 0.25, jnp.float32)   # PyTorch PReLU default
    return {
        "w_ll": w(keys[0], (3, 3, mid, mid)), "b_ll": w(keys[1], (mid,)),
        "w_lg": w(keys[2], (3, 3, mid, mid)), "b_lg": w(keys[3], (mid,)),
        "w_gl": w(keys[4], (3, 3, mid, mid)), "b_gl": w(keys[5], (mid,)),
        "bn1_gamma": ones(mid), "bn1_beta": zeros(mid), "alpha1": prelu(mid),
        "bn2_gamma": ones(mid), "bn2_beta": zeros(mid), "alpha2": prelu(mid),
        "spectra": {
            "in_w": w(keys[6], (mid, inter)), "in_b": w(keys[7], (inter,)),
            "in_gamma": ones(inter), "in_beta": zeros(inter),
            "in_alpha": prelu(inter),
            "mid_w": w(keys[8], (inter, inter)), "mid_b": w(keys[9], (inter,)),
            "mid_gamma": ones(inter), "mid_beta": zeros(inter),
            "mid_alpha": prelu(inter),
            "out_w": w(keys[10], (inter, mid)), "out_b": w(keys[11], (mid,)),
        },
    }


# ----------------------------------------------------------------------------
if __name__ == "__main__":
    key = jax.random.PRNGKey(0)
    kx, kp = jax.random.split(key)

    B, C, H, W = 2, 8, 16, 16          # FastFC(in_depth=8): mid=4, inter=2
    x_nchw = jax.random.normal(kx, (B, C, H, W), jnp.float32)
    params = init_params(kp, C)

    fwd = jax.jit(fastfc_forward)
    out, out_loc, out_glo = fwd(x_nchw, params)
    jax.block_until_ready((out, out_loc, out_glo))

    ref_out, ref_loc, ref_glo = _ref_fastfc(x_nchw, params)
    # Tolerance accounts for the intentional bf16 MXU matmul inputs (f32 acc).
    for got, ref in ((out, ref_out), (out_loc, ref_loc), (out_glo, ref_glo)):
        assert got.shape == ref.shape, (got.shape, ref.shape)
        np.testing.assert_allclose(np.asarray(got), np.asarray(ref),
                                   rtol=2e-2, atol=2e-2)

    print("KERNEL_OK")
</pallas_src>

<mosaic_0001>
module attributes {stable_mosaic.version = 11 : i64} {
  func.func @_matmul_bias_kernel(%arg0: i32, %arg1: memref<512x4xf32, #tpu.memory_space<vmem>>, %arg2: memref<4x2xbf16, #tpu.memory_space<vmem>>, %arg3: memref<1x2xf32, #tpu.memory_space<vmem>>, %arg4: memref<512x2xf32, #tpu.memory_space<vmem>>) attributes {dimension_semantics = [#tpu.dimension_semantics<parallel>], iteration_bounds = array<i64: 1>, scalar_prefetch = 0 : i64, scratch_operands = 0 : i64, tpu.core_type = #tpu.core_type<tc>, window_params = [{transform_indices = @transform_0, window_bounds = array<i64: 512, 4>}, {pipeline_mode = #tpu.pipeline_mode<synchronous>, transform_indices = @transform_1, window_bounds = array<i64: 4, 2>}, {pipeline_mode = #tpu.pipeline_mode<synchronous>, transform_indices = @transform_2, window_bounds = array<i64: 1, 2>}, {transform_indices = @transform_3, window_bounds = array<i64: 512, 2>}]} {
    %c0 = arith.constant 0 : index
    %c0_0 = arith.constant 0 : index
    %0 = vector.load %arg1[%c0, %c0_0] : memref<512x4xf32, #tpu.memory_space<vmem>>, vector<512x4xf32>
    %1 = arith.truncf %0 : vector<512x4xf32> to vector<512x4xbf16>
    %c0_1 = arith.constant 0 : index
    %c0_2 = arith.constant 0 : index
    %2 = vector.load %arg2[%c0_1, %c0_2] : memref<4x2xbf16, #tpu.memory_space<vmem>>, vector<4x2xbf16>
    %cst = arith.constant dense<0.000000e+00> : vector<512x2xf32>
    %3 = tpu.matmul %1, %2, %cst {dimension_numbers = #tpu.dot_dimension_numbers<[1], [0], [0], [1], [0, 0, 1, 1], [], []>} : vector<512x4xbf16>, vector<4x2xbf16>, vector<512x2xf32> -> vector<512x2xf32>
    %c0_3 = arith.constant 0 : index
    %c0_4 = arith.constant 0 : index
    %4 = vector.load %arg3[%c0_3, %c0_4] : memref<1x2xf32, #tpu.memory_space<vmem>>, vector<1x2xf32>
    %5 = vector.broadcast %4 : vector<1x2xf32> to vector<512x2xf32>
    %6 = arith.addf %3, %5 : vector<512x2xf32>
    %c0_5 = arith.constant 0 : index
    %c0_6 = arith.constant 0 : index
    %7 = vector.load %arg4[%c0_5, %c0_6] : memref<512x2xf32, #tpu.memory_space<vmem>>, vector<512x2xf32>
    tpu.vector_store %arg4[%c0_5, %c0_6], %6 {strides = array<i32>} : memref<512x2xf32, #tpu.memory_space<vmem>>, vector<512x2xf32>,
    return
  }
  func.func @transform_0(%arg0: i32) -> (i32, i32) {
    %c0_i32 = arith.constant 0 : i32
    %c0_i32_0 = arith.constant 0 : i32
    return %arg0, %c0_i32 : i32, i32
  }
  func.func @transform_1(%arg0: i32) -> (i32, i32) {
    %c0_i32 = arith.constant 0 : i32
    %c0_i32_0 = arith.constant 0 : i32
    %c0_i32_1 = arith.constant 0 : i32
    return %c0_i32, %c0_i32_0 : i32, i32
  }
  func.func @transform_2(%arg0: i32) -> (i32, i32) {
    %c0_i32 = arith.constant 0 : i32
    %c0_i32_0 = arith.constant 0 : i32
    %c0_i32_1 = arith.constant 0 : i32
    return %c0_i32, %c0_i32_0 : i32, i32
  }
  func.func @transform_3(%arg0: i32) -> (i32, i32) {
    %c0_i32 = arith.constant 0 : i32
    %c0_i32_0 = arith.constant 0 : i32
    return %arg0, %c0_i32 : i32, i32
  }
}

module attributes {stable_mosaic.version = 11 : i64} {
  func.func @_stats_kernel(%arg0: i32, %arg1: memref<8x128xf32, #tpu.memory_space<vmem>>, %arg2: memref<1x128xf32, #tpu.memory_space<vmem>>, %arg3: memref<1x128xf32, #tpu.memory_space<vmem>>) attributes {dimension_semantics = [#tpu.dimension_semantics<arbitrary>], iteration_bounds = array<i64: 1>, scalar_prefetch = 0 : i64, scratch_operands = 0 : i64, tpu.core_type = #tpu.core_type<tc>, window_params = [{transform_indices = @transform_0, window_bounds = array<i64: 8, 128>}, {pipeline_mode = #tpu.pipeline_mode<synchronous>, transform_indices = @transform_1, window_bounds = array<i64: 1, 128>}, {pipeline_mode = #tpu.pipeline_mode<synchronous>, transform_indices = @transform_2, window_bounds = array<i64: 1, 128>}]} {
    %c0_i32 = arith.constant 0 : i32
    %0 = arith.cmpi eq, %arg0, %c0_i32 : i32
    %1 = arith.extui %0 : i1 to i32
    %c0_i32_0 = arith.constant 0 : i32
    %2 = arith.cmpi ne, %1, %c0_i32_0 : i32
    scf.if %2 {
      %cst_13 = arith.constant 0.000000e+00 : f32
      %23 = vector.broadcast %cst_13 : f32 to vector<1x128xf32>
      %c0_14 = arith.constant 0 : index
      %c0_15 = arith.constant 0 : index
      %24 = vector.load %arg2[%c0_14, %c0_15] : memref<1x128xf32, #tpu.memory_space<vmem>>, vector<1x128xf32>
      tpu.vector_store %arg2[%c0_14, %c0_15], %23 {strides = array<i32>} : memref<1x128xf32, #tpu.memory_space<vmem>>, vector<1x128xf32>,
      %cst_16 = arith.constant 0.000000e+00 : f32
      %25 = vector.broadcast %cst_16 : f32 to vector<1x128xf32>
      %c0_17 = arith.constant 0 : index
      %c0_18 = arith.constant 0 : index
      %26 = vector.load %arg3[%c0_17, %c0_18] : memref<1x128xf32, #tpu.memory_space<vmem>>, vector<1x128xf32>
      tpu.vector_store %arg3[%c0_17, %c0_18], %25 {strides = array<i32>} : memref<1x128xf32, #tpu.memory_space<vmem>>, vector<1x128xf32>,
    } else {
    }
    %3 = tpu.iota {dimensions = array<i32: 0>} : vector<8x128xi32>
    %c8_i32 = arith.constant 8 : i32
    %4 = arith.muli %arg0, %c8_i32 : i32
    %5 = vector.broadcast %4 : i32 to vector<8x128xi32>
    %6 = arith.addi %3, %5 : vector<8x128xi32>
    %c8_i32_1 = arith.constant 8 : i32
    %7 = vector.broadcast %c8_i32_1 : i32 to vector<8x128xi32>
    %8 = arith.cmpi slt, %6, %7 : vector<8x128xi32>
    %c0 = arith.constant 0 : index
    %c0_2 = arith.constant 0 : index
    %9 = vector.load %arg1[%c0, %c0_2] : memref<8x128xf32, #tpu.memory_space<vmem>>, vector<8x128xf32>
    %cst = arith.constant 0.000000e+00 : f32
    %10 = vector.broadcast %cst : f32 to vector<8x128xf32>
    %11 = arith.select %8, %9, %10 : vector<8x128xi1>, vector<8x128xf32>
    %c0_3 = arith.constant 0 : index
    %c0_4 = arith.constant 0 : index
    %12 = vector.load %arg2[%c0_3, %c0_4] : memref<1x128xf32, #tpu.memory_space<vmem>>, vector<1x128xf32>
    %cst_5 = arith.constant dense<0.000000e+00> : vector<128xf32>
    %13 = vector.multi_reduction <add>, %11, %cst_5 [0] : vector<8x128xf32> to vector<128xf32>
    %14 = vector.shape_cast %13 : vector<128xf32> to vector<1x128xf32>
    %15 = arith.addf %12, %14 : vector<1x128xf32>
    %c0_6 = arith.constant 0 : index
    %c0_7 = arith.constant 0 : index
    %16 = vector.load %arg2[%c0_6, %c0_7] : memref<1x128xf32, #tpu.memory_space<vmem>>, vector<1x128xf32>
    tpu.vector_store %arg2[%c0_6, %c0_7], %15 {strides = array<i32>} : memref<1x128xf32, #tpu.memory_space<vmem>>, vector<1x128xf32>,
    %c0_8 = arith.constant 0 : index
    %c0_9 = arith.constant 0 : index
    %17 = vector.load %arg3[%c0_8, %c0_9] : memref<1x128xf32, #tpu.memory_space<vmem>>, vector<1x128xf32>
    %18 = arith.mulf %11, %11 : vector<8x128xf32>
    %cst_10 = arith.constant dense<0.000000e+00> : vector<128xf32>
    %19 = vector.multi_reduction <add>, %18, %cst_10 [0] : vector<8x128xf32> to vector<128xf32>
    %20 = vector.shape_cast %19 : vector<128xf32> to vector<1x128xf32>
    %21 = arith.addf %17, %20 : vector<1x128xf32>
    %c0_11 = arith.constant 0 : index
    %c0_12 = arith.constant 0 : index
    %22 = vector.load %arg3[%c0_11, %c0_12] : memref<1x128xf32, #tpu.memory_space<vmem>>, vector<1x128xf32>
    tpu.vector_store %arg3[%c0_11, %c0_12], %21 {strides = array<i32>} : memref<1x128xf32, #tpu.memory_space<vmem>>, vector<1x128xf32>,
    return
  }
  func.func @transform_0(%arg0: i32) -> (i32, i32) {
    %c0_i32 = arith.constant 0 : i32
    %c0_i32_0 = arith.constant 0 : i32
    return %arg0, %c0_i32 : i32, i32
  }
  func.func @transform_1(%arg0: i32) -> (i32, i32) {
    %c0_i32 = arith.constant 0 : i32
    %c0_i32_0 = arith.constant 0 : i32
    %c0_i32_1 = arith.constant 0 : i32
    return %c0_i32, %c0_i32_0 : i32, i32
  }
  func.func @transform_2(%arg0: i32) -> (i32, i32) {
    %c0_i32 = arith.constant 0 : i32
    %c0_i32_0 = arith.constant 0 : i32
    %c0_i32_1 = arith.constant 0 : i32
    return %c0_i32, %c0_i32_0 : i32, i32
  }
}

module attributes {stable_mosaic.version = 11 : i64} {
  func.func @_norm_prelu_kernel(%arg0: i32, %arg1: memref<8x128xf32, #tpu.memory_space<vmem>>, %arg2: memref<1x128xf32, #tpu.memory_space<vmem>>, %arg3: memref<1x128xf32, #tpu.memory_space<vmem>>, %arg4: memref<1x128xf32, #tpu.memory_space<vmem>>, %arg5: memref<8x128xf32, #tpu.memory_space<vmem>>) attributes {dimension_semantics = [#tpu.dimension_semantics<parallel>], iteration_bounds = array<i64: 1>, scalar_prefetch = 0 : i64, scratch_operands = 0 : i64, tpu.core_type = #tpu.core_type<tc>, window_params = [{transform_indices = @transform_0, window_bounds = array<i64: 8, 128>}, {pipeline_mode = #tpu.pipeline_mode<synchronous>, transform_indices = @transform_1, window_bounds = array<i64: 1, 128>}, {pipeline_mode = #tpu.pipeline_mode<synchronous>, transform_indices = @transform_2, window_bounds = array<i64: 1, 128>}, {pipeline_mode = #tpu.pipeline_mode<synchronous>, transform_indices = @transform_3, window_bounds = array<i64: 1, 128>}, {transform_indices = @transform_4, window_bounds = array<i64: 8, 128>}]} {
    %c0 = arith.constant 0 : index
    %c0_0 = arith.constant 0 : index
    %0 = vector.load %arg1[%c0, %c0_0] : memref<8x128xf32, #tpu.memory_space<vmem>>, vector<8x128xf32>
    %c0_1 = arith.constant 0 : index
    %c0_2 = arith.constant 0 : index
    %1 = vector.load %arg2[%c0_1, %c0_2] : memref<1x128xf32, #tpu.memory_space<vmem>>, vector<1x128xf32>
    %2 = vector.broadcast %1 : vector<1x128xf32> to vector<8x128xf32>
    %3 = arith.mulf %0, %2 : vector<8x128xf32>
    %c0_3 = arith.constant 0 : index
    %c0_4 = arith.constant 0 : index
    %4 = vector.load %arg3[%c0_3, %c0_4] : memref<1x128xf32, #tpu.memory_space<vmem>>, vector<1x128xf32>
    %5 = vector.broadcast %4 : vector<1x128xf32> to vector<8x128xf32>
    %6 = arith.addf %3, %5 : vector<8x128xf32>
    %cst = arith.constant 0.000000e+00 : f32
    %7 = vector.broadcast %cst : f32 to vector<8x128xf32>
    %8 = arith.cmpf oge, %6, %7 : vector<8x128xf32>
    %c0_5 = arith.constant 0 : index
    %c0_6 = arith.constant 0 : index
    %9 = vector.load %arg4[%c0_5, %c0_6] : memref<1x128xf32, #tpu.memory_space<vmem>>, vector<1x128xf32>
    %10 = vector.broadcast %9 : vector<1x128xf32> to vector<8x128xf32>
    %11 = arith.mulf %10, %6 : vector<8x128xf32>
    %12 = arith.select %8, %6, %11 : vector<8x128xi1>, vector<8x128xf32>
    %c0_7 = arith.constant 0 : index
    %c0_8 = arith.constant 0 : index
    %13 = vector.load %arg5[%c0_7, %c0_8] : memref<8x128xf32, #tpu.memory_space<vmem>>, vector<8x128xf32>
    tpu.vector_store %arg5[%c0_7, %c0_8], %12 {strides = array<i32>} : memref<8x128xf32, #tpu.memory_space<vmem>>, vector<8x128xf32>,
    return
  }
  func.func @transform_0(%arg0: i32) -> (i32, i32) {
    %c0_i32 = arith.constant 0 : i32
    %c0_i32_0 = arith.constant 0 : i32
    return %arg0, %c0_i32 : i32, i32
  }
  func.func @transform_1(%arg0: i32) -> (i32, i32) {
    %c0_i32 = arith.constant 0 : i32
    %c0_i32_0 = arith.constant 0 : i32
    %c0_i32_1 = arith.constant 0 : i32
    return %c0_i32, %c0_i32_0 : i32, i32
  }
  func.func @transform_2(%arg0: i32) -> (i32, i32) {
    %c0_i32 = arith.constant 0 : i32
    %c0_i32_0 = arith.constant 0 : i32
    %c0_i32_1 = arith.constant 0 : i32
    return %c0_i32, %c0_i32_0 : i32, i32
  }
  func.func @transform_3(%arg0: i32) -> (i32, i32) {
    %c0_i32 = arith.constant 0 : i32
    %c0_i32_0 = arith.constant 0 : i32
    %c0_i32_1 = arith.constant 0 : i32
    return %c0_i32, %c0_i32_0 : i32, i32
  }
  func.func @transform_4(%arg0: i32) -> (i32, i32) {
    %c0_i32 = arith.constant 0 : i32
    %c0_i32_0 = arith.constant 0 : i32
    return %arg0, %c0_i32 : i32, i32
  }
}

module attributes {stable_mosaic.version = 11 : i64} {
  func.func @_matmul_bias_kernel(%arg0: i32, %arg1: memref<576x2xf32, #tpu.memory_space<vmem>>, %arg2: memref<2x2xbf16, #tpu.memory_space<vmem>>, %arg3: memref<1x2xf32, #tpu.memory_space<vmem>>, %arg4: memref<576x2xf32, #tpu.memory_space<vmem>>) attributes {dimension_semantics = [#tpu.dimension_semantics<parallel>], iteration_bounds = array<i64: 1>, scalar_prefetch = 0 : i64, scratch_operands = 0 : i64, tpu.core_type = #tpu.core_type<tc>, window_params = [{transform_indices = @transform_0, window_bounds = array<i64: 576, 2>}, {pipeline_mode = #tpu.pipeline_mode<synchronous>, transform_indices = @transform_1, window_bounds = array<i64: 2, 2>}, {pipeline_mode = #tpu.pipeline_mode<synchronous>, transform_indices = @transform_2, window_bounds = array<i64: 1, 2>}, {transform_indices = @transform_3, window_bounds = array<i64: 576, 2>}]} {
    %c0 = arith.constant 0 : index
    %c0_0 = arith.constant 0 : index
    %0 = vector.load %arg1[%c0, %c0_0] : memref<576x2xf32, #tpu.memory_space<vmem>>, vector<576x2xf32>
    %1 = arith.truncf %0 : vector<576x2xf32> to vector<576x2xbf16>
    %c0_1 = arith.constant 0 : index
    %c0_2 = arith.constant 0 : index
    %2 = vector.load %arg2[%c0_1, %c0_2] : memref<2x2xbf16, #tpu.memory_space<vmem>>, vector<2x2xbf16>
    %cst = arith.constant dense<0.000000e+00> : vector<576x2xf32>
    %3 = tpu.matmul %1, %2, %cst {dimension_numbers = #tpu.dot_dimension_numbers<[1], [0], [0], [1], [0, 0, 1, 1], [], []>} : vector<576x2xbf16>, vector<2x2xbf16>, vector<576x2xf32> -> vector<576x2xf32>
    %c0_3 = arith.constant 0 : index
    %c0_4 = arith.constant 0 : index
    %4 = vector.load %arg3[%c0_3, %c0_4] : memref<1x2xf32, #tpu.memory_space<vmem>>, vector<1x2xf32>
    %5 = vector.broadcast %4 : vector<1x2xf32> to vector<576x2xf32>
    %6 = arith.addf %3, %5 : vector<576x2xf32>
    %c0_5 = arith.constant 0 : index
    %c0_6 = arith.constant 0 : index
    %7 = vector.load %arg4[%c0_5, %c0_6] : memref<576x2xf32, #tpu.memory_space<vmem>>, vector<576x2xf32>
    tpu.vector_store %arg4[%c0_5, %c0_6], %6 {strides = array<i32>} : memref<576x2xf32, #tpu.memory_space<vmem>>, vector<576x2xf32>,
    return
  }
  func.func @transform_0(%arg0: i32) -> (i32, i32) {
    %c0_i32 = arith.constant 0 : i32
    %c0_i32_0 = arith.constant 0 : i32
    return %arg0, %c0_i32 : i32, i32
  }
  func.func @transform_1(%arg0: i32) -> (i32, i32) {
    %c0_i32 = arith.constant 0 : i32
    %c0_i32_0 = arith.constant 0 : i32
    %c0_i32_1 = arith.constant 0 : i32
    return %c0_i32, %c0_i32_0 : i32, i32
  }
  func.func @transform_2(%arg0: i32) -> (i32, i32) {
    %c0_i32 = arith.constant 0 : i32
    %c0_i32_0 = arith.constant 0 : i32
    %c0_i32_1 = arith.constant 0 : i32
    return %c0_i32, %c0_i32_0 : i32, i32
  }
  func.func @transform_3(%arg0: i32) -> (i32, i32) {
    %c0_i32 = arith.constant 0 : i32
    %c0_i32_0 = arith.constant 0 : i32
    return %arg0, %c0_i32 : i32, i32
  }
}

module attributes {stable_mosaic.version = 11 : i64} {
  func.func @_stats_kernel(%arg0: i32, %arg1: memref<9x128xf32, #tpu.memory_space<vmem>>, %arg2: memref<1x128xf32, #tpu.memory_space<vmem>>, %arg3: memref<1x128xf32, #tpu.memory_space<vmem>>) attributes {dimension_semantics = [#tpu.dimension_semantics<arbitrary>], iteration_bounds = array<i64: 1>, scalar_prefetch = 0 : i64, scratch_operands = 0 : i64, tpu.core_type = #tpu.core_type<tc>, window_params = [{transform_indices = @transform_0, window_bounds = array<i64: 9, 128>}, {pipeline_mode = #tpu.pipeline_mode<synchronous>, transform_indices = @transform_1, window_bounds = array<i64: 1, 128>}, {pipeline_mode = #tpu.pipeline_mode<synchronous>, transform_indices = @transform_2, window_bounds = array<i64: 1, 128>}]} {
    %c0_i32 = arith.constant 0 : i32
    %0 = arith.cmpi eq, %arg0, %c0_i32 : i32
    %1 = arith.extui %0 : i1 to i32
    %c0_i32_0 = arith.constant 0 : i32
    %2 = arith.cmpi ne, %1, %c0_i32_0 : i32
    scf.if %2 {
      %cst_13 = arith.constant 0.000000e+00 : f32
      %23 = vector.broadcast %cst_13 : f32 to vector<1x128xf32>
      %c0_14 = arith.constant 0 : index
      %c0_15 = arith.constant 0 : index
      %24 = vector.load %arg2[%c0_14, %c0_15] : memref<1x128xf32, #tpu.memory_space<vmem>>, vector<1x128xf32>
      tpu.vector_store %arg2[%c0_14, %c0_15], %23 {strides = array<i32>} : memref<1x128xf32, #tpu.memory_space<vmem>>, vector<1x128xf32>,
      %cst_16 = arith.constant 0.000000e+00 : f32
      %25 = vector.broadcast %cst_16 : f32 to vector<1x128xf32>
      %c0_17 = arith.constant 0 : index
      %c0_18 = arith.constant 0 : index
      %26 = vector.load %arg3[%c0_17, %c0_18] : memref<1x128xf32, #tpu.memory_space<vmem>>, vector<1x128xf32>
      tpu.vector_store %arg3[%c0_17, %c0_18], %25 {strides = array<i32>} : memref<1x128xf32, #tpu.memory_space<vmem>>, vector<1x128xf32>,
    } else {
    }
    %3 = tpu.iota {dimensions = array<i32: 0>} : vector<9x128xi32>
    %c9_i32 = arith.constant 9 : i32
    %4 = arith.muli %arg0, %c9_i32 : i32
    %5 = vector.broadcast %4 : i32 to vector<9x128xi32>
    %6 = arith.addi %3, %5 : vector<9x128xi32>
    %c9_i32_1 = arith.constant 9 : i32
    %7 = vector.broadcast %c9_i32_1 : i32 to vector<9x128xi32>
    %8 = arith.cmpi slt, %6, %7 : vector<9x128xi32>
    %c0 = arith.constant 0 : index
    %c0_2 = arith.constant 0 : index
    %9 = vector.load %arg1[%c0, %c0_2] : memref<9x128xf32, #tpu.memory_space<vmem>>, vector<9x128xf32>
    %cst = arith.constant 0.000000e+00 : f32
    %10 = vector.broadcast %cst : f32 to vector<9x128xf32>
    %11 = arith.select %8, %9, %10 : vector<9x128xi1>, vector<9x128xf32>
    %c0_3 = arith.constant 0 : index
    %c0_4 = arith.constant 0 : index
    %12 = vector.load %arg2[%c0_3, %c0_4] : memref<1x128xf32, #tpu.memory_space<vmem>>, vector<1x128xf32>
    %cst_5 = arith.constant dense<0.000000e+00> : vector<128xf32>
    %13 = vector.multi_reduction <add>, %11, %cst_5 [0] : vector<9x128xf32> to vector<128xf32>
    %14 = vector.shape_cast %13 : vector<128xf32> to vector<1x128xf32>
    %15 = arith.addf %12, %14 : vector<1x128xf32>
    %c0_6 = arith.constant 0 : index
    %c0_7 = arith.constant 0 : index
    %16 = vector.load %arg2[%c0_6, %c0_7] : memref<1x128xf32, #tpu.memory_space<vmem>>, vector<1x128xf32>
    tpu.vector_store %arg2[%c0_6, %c0_7], %15 {strides = array<i32>} : memref<1x128xf32, #tpu.memory_space<vmem>>, vector<1x128xf32>,
    %c0_8 = arith.constant 0 : index
    %c0_9 = arith.constant 0 : index
    %17 = vector.load %arg3[%c0_8, %c0_9] : memref<1x128xf32, #tpu.memory_space<vmem>>, vector<1x128xf32>
    %18 = arith.mulf %11, %11 : vector<9x128xf32>
    %cst_10 = arith.constant dense<0.000000e+00> : vector<128xf32>
    %19 = vector.multi_reduction <add>, %18, %cst_10 [0] : vector<9x128xf32> to vector<128xf32>
    %20 = vector.shape_cast %19 : vector<128xf32> to vector<1x128xf32>
    %21 = arith.addf %17, %20 : vector<1x128xf32>
    %c0_11 = arith.constant 0 : index
    %c0_12 = arith.constant 0 : index
    %22 = vector.load %arg3[%c0_11, %c0_12] : memref<1x128xf32, #tpu.memory_space<vmem>>, vector<1x128xf32>
    tpu.vector_store %arg3[%c0_11, %c0_12], %21 {strides = array<i32>} : memref<1x128xf32, #tpu.memory_space<vmem>>, vector<1x128xf32>,
    return
  }
  func.func @transform_0(%arg0: i32) -> (i32, i32) {
    %c0_i32 = arith.constant 0 : i32
    %c0_i32_0 = arith.constant 0 : i32
    return %arg0, %c0_i32 : i32, i32
  }
  func.func @transform_1(%arg0: i32) -> (i32, i32) {
    %c0_i32 = arith.constant 0 : i32
    %c0_i32_0 = arith.constant 0 : i32
    %c0_i32_1 = arith.constant 0 : i32
    return %c0_i32, %c0_i32_0 : i32, i32
  }
  func.func @transform_2(%arg0: i32) -> (i32, i32) {
    %c0_i32 = arith.constant 0 : i32
    %c0_i32_0 = arith.constant 0 : i32
    %c0_i32_1 = arith.constant 0 : i32
    return %c0_i32, %c0_i32_0 : i32, i32
  }
}

module attributes {stable_mosaic.version = 11 : i64} {
  func.func @_norm_prelu_kernel(%arg0: i32, %arg1: memref<9x128xf32, #tpu.memory_space<vmem>>, %arg2: memref<1x128xf32, #tpu.memory_space<vmem>>, %arg3: memref<1x128xf32, #tpu.memory_space<vmem>>, %arg4: memref<1x128xf32, #tpu.memory_space<vmem>>, %arg5: memref<9x128xf32, #tpu.memory_space<vmem>>) attributes {dimension_semantics = [#tpu.dimension_semantics<parallel>], iteration_bounds = array<i64: 1>, scalar_prefetch = 0 : i64, scratch_operands = 0 : i64, tpu.core_type = #tpu.core_type<tc>, window_params = [{transform_indices = @transform_0, window_bounds = array<i64: 9, 128>}, {pipeline_mode = #tpu.pipeline_mode<synchronous>, transform_indices = @transform_1, window_bounds = array<i64: 1, 128>}, {pipeline_mode = #tpu.pipeline_mode<synchronous>, transform_indices = @transform_2, window_bounds = array<i64: 1, 128>}, {pipeline_mode = #tpu.pipeline_mode<synchronous>, transform_indices = @transform_3, window_bounds = array<i64: 1, 128>}, {transform_indices = @transform_4, window_bounds = array<i64: 9, 128>}]} {
    %c0 = arith.constant 0 : index
    %c0_0 = arith.constant 0 : index
    %0 = vector.load %arg1[%c0, %c0_0] : memref<9x128xf32, #tpu.memory_space<vmem>>, vector<9x128xf32>
    %c0_1 = arith.constant 0 : index
    %c0_2 = arith.constant 0 : index
    %1 = vector.load %arg2[%c0_1, %c0_2] : memref<1x128xf32, #tpu.memory_space<vmem>>, vector<1x128xf32>
    %2 = vector.broadcast %1 : vector<1x128xf32> to vector<9x128xf32>
    %3 = arith.mulf %0, %2 : vector<9x128xf32>
    %c0_3 = arith.constant 0 : index
    %c0_4 = arith.constant 0 : index
    %4 = vector.load %arg3[%c0_3, %c0_4] : memref<1x128xf32, #tpu.memory_space<vmem>>, vector<1x128xf32>
    %5 = vector.broadcast %4 : vector<1x128xf32> to vector<9x128xf32>
    %6 = arith.addf %3, %5 : vector<9x128xf32>
    %cst = arith.constant 0.000000e+00 : f32
    %7 = vector.broadcast %cst : f32 to vector<9x128xf32>
    %8 = arith.cmpf oge, %6, %7 : vector<9x128xf32>
    %c0_5 = arith.constant 0 : index
    %c0_6 = arith.constant 0 : index
    %9 = vector.load %arg4[%c0_5, %c0_6] : memref<1x128xf32, #tpu.memory_space<vmem>>, vector<1x128xf32>
    %10 = vector.broadcast %9 : vector<1x128xf32> to vector<9x128xf32>
    %11 = arith.mulf %10, %6 : vector<9x128xf32>
    %12 = arith.select %8, %6, %11 : vector<9x128xi1>, vector<9x128xf32>
    %c0_7 = arith.constant 0 : index
    %c0_8 = arith.constant 0 : index
    %13 = vector.load %arg5[%c0_7, %c0_8] : memref<9x128xf32, #tpu.memory_space<vmem>>, vector<9x128xf32>
    tpu.vector_store %arg5[%c0_7, %c0_8], %12 {strides = array<i32>} : memref<9x128xf32, #tpu.memory_space<vmem>>, vector<9x128xf32>,
    return
  }
  func.func @transform_0(%arg0: i32) -> (i32, i32) {
    %c0_i32 = arith.constant 0 : i32
    %c0_i32_0 = arith.constant 0 : i32
    return %arg0, %c0_i32 : i32, i32
  }
  func.func @transform_1(%arg0: i32) -> (i32, i32) {
    %c0_i32 = arith.constant 0 : i32
    %c0_i32_0 = arith.constant 0 : i32
    %c0_i32_1 = arith.constant 0 : i32
    return %c0_i32, %c0_i32_0 : i32, i32
  }
  func.func @transform_2(%arg0: i32) -> (i32, i32) {
    %c0_i32 = arith.constant 0 : i32
    %c0_i32_0 = arith.constant 0 : i32
    %c0_i32_1 = arith.constant 0 : i32
    return %c0_i32, %c0_i32_0 : i32, i32
  }
  func.func @transform_3(%arg0: i32) -> (i32, i32) {
    %c0_i32 = arith.constant 0 : i32
    %c0_i32_0 = arith.constant 0 : i32
    %c0_i32_1 = arith.constant 0 : i32
    return %c0_i32, %c0_i32_0 : i32, i32
  }
  func.func @transform_4(%arg0: i32) -> (i32, i32) {
    %c0_i32 = arith.constant 0 : i32
    %c0_i32_0 = arith.constant 0 : i32
    return %arg0, %c0_i32 : i32, i32
  }
}

module attributes {stable_mosaic.version = 11 : i64} {
  func.func @_add_matmul_bias_kernel(%arg0: i32, %arg1: memref<512x2xf32, #tpu.memory_space<vmem>>, %arg2: memref<512x2xf32, #tpu.memory_space<vmem>>, %arg3: memref<2x4xbf16, #tpu.memory_space<vmem>>, %arg4: memref<1x4xf32, #tpu.memory_space<vmem>>, %arg5: memref<512x4xf32, #tpu.memory_space<vmem>>) attributes {dimension_semantics = [#tpu.dimension_semantics<parallel>], iteration_bounds = array<i64: 1>, scalar_prefetch = 0 : i64, scratch_operands = 0 : i64, tpu.core_type = #tpu.core_type<tc>, window_params = [{transform_indices = @transform_0, window_bounds = array<i64: 512, 2>}, {transform_indices = @transform_1, window_bounds = array<i64: 512, 2>}, {pipeline_mode = #tpu.pipeline_mode<synchronous>, transform_indices = @transform_2, window_bounds = array<i64: 2, 4>}, {pipeline_mode = #tpu.pipeline_mode<synchronous>, transform_indices = @transform_3, window_bounds = array<i64: 1, 4>}, {transform_indices = @transform_4, window_bounds = array<i64: 512, 4>}]} {
    %c0 = arith.constant 0 : index
    %c0_0 = arith.constant 0 : index
    %0 = vector.load %arg1[%c0, %c0_0] : memref<512x2xf32, #tpu.memory_space<vmem>>, vector<512x2xf32>
    %c0_1 = arith.constant 0 : index
    %c0_2 = arith.constant 0 : index
    %1 = vector.load %arg2[%c0_1, %c0_2] : memref<512x2xf32, #tpu.memory_space<vmem>>, vector<512x2xf32>
    %2 = arith.addf %0, %1 : vector<512x2xf32>
    %3 = arith.truncf %2 : vector<512x2xf32> to vector<512x2xbf16>
    %c0_3 = arith.constant 0 : index
    %c0_4 = arith.constant 0 : index
    %4 = vector.load %arg3[%c0_3, %c0_4] : memref<2x4xbf16, #tpu.memory_space<vmem>>, vector<2x4xbf16>
    %cst = arith.constant dense<0.000000e+00> : vector<512x4xf32>
    %5 = tpu.matmul %3, %4, %cst {dimension_numbers = #tpu.dot_dimension_numbers<[1], [0], [0], [1], [0, 0, 1, 1], [], []>} : vector<512x2xbf16>, vector<2x4xbf16>, vector<512x4xf32> -> vector<512x4xf32>
    %c0_5 = arith.constant 0 : index
    %c0_6 = arith.constant 0 : index
    %6 = vector.load %arg4[%c0_5, %c0_6] : memref<1x4xf32, #tpu.memory_space<vmem>>, vector<1x4xf32>
    %7 = vector.broadcast %6 : vector<1x4xf32> to vector<512x4xf32>
    %8 = arith.addf %5, %7 : vector<512x4xf32>
    %c0_7 = arith.constant 0 : index
    %c0_8 = arith.constant 0 : index
    %9 = vector.load %arg5[%c0_7, %c0_8] : memref<512x4xf32, #tpu.memory_space<vmem>>, vector<512x4xf32>
    tpu.vector_store %arg5[%c0_7, %c0_8], %8 {strides = array<i32>} : memref<512x4xf32, #tpu.memory_space<vmem>>, vector<512x4xf32>,
    return
  }
  func.func @transform_0(%arg0: i32) -> (i32, i32) {
    %c0_i32 = arith.constant 0 : i32
    %c0_i32_0 = arith.constant 0 : i32
    return %arg0, %c0_i32 : i32, i32
  }
  func.func @transform_1(%arg0: i32) -> (i32, i32) {
    %c0_i32 = arith.constant 0 : i32
    %c0_i32_0 = arith.constant 0 : i32
    return %arg0, %c0_i32 : i32, i32
  }
  func.func @transform_2(%arg0: i32) -> (i32, i32) {
    %c0_i32 = arith.constant 0 : i32
    %c0_i32_0 = arith.constant 0 : i32
    %c0_i32_1 = arith.constant 0 : i32
    return %c0_i32, %c0_i32_0 : i32, i32
  }
  func.func @transform_3(%arg0: i32) -> (i32, i32) {
    %c0_i32 = arith.constant 0 : i32
    %c0_i32_0 = arith.constant 0 : i32
    %c0_i32_1 = arith.constant 0 : i32
    return %c0_i32, %c0_i32_0 : i32, i32
  }
  func.func @transform_4(%arg0: i32) -> (i32, i32) {
    %c0_i32 = arith.constant 0 : i32
    %c0_i32_0 = arith.constant 0 : i32
    return %arg0, %c0_i32 : i32, i32
  }
}

module attributes {stable_mosaic.version = 11 : i64} {
  func.func @_matmul_bias_kernel(%arg0: i32, %arg1: memref<512x36xbf16, #tpu.memory_space<vmem>>, %arg2: memref<36x8xbf16, #tpu.memory_space<vmem>>, %arg3: memref<1x8xf32, #tpu.memory_space<vmem>>, %arg4: memref<512x8xf32, #tpu.memory_space<vmem>>) attributes {dimension_semantics = [#tpu.dimension_semantics<parallel>], iteration_bounds = array<i64: 1>, scalar_prefetch = 0 : i64, scratch_operands = 0 : i64, tpu.core_type = #tpu.core_type<tc>, window_params = [{transform_indices = @transform_0, window_bounds = array<i64: 512, 36>}, {pipeline_mode = #tpu.pipeline_mode<synchronous>, transform_indices = @transform_1, window_bounds = array<i64: 36, 8>}, {pipeline_mode = #tpu.pipeline_mode<synchronous>, transform_indices = @transform_2, window_bounds = array<i64: 1, 8>}, {transform_indices = @transform_3, window_bounds = array<i64: 512, 8>}]} {
    %c0 = arith.constant 0 : index
    %c0_0 = arith.constant 0 : index
    %0 = vector.load %arg1[%c0, %c0_0] : memref<512x36xbf16, #tpu.memory_space<vmem>>, vector<512x36xbf16>
    %c0_1 = arith.constant 0 : index
    %c0_2 = arith.constant 0 : index
    %1 = vector.load %arg2[%c0_1, %c0_2] : memref<36x8xbf16, #tpu.memory_space<vmem>>, vector<36x8xbf16>
    %cst = arith.constant dense<0.000000e+00> : vector<512x8xf32>
    %2 = tpu.matmul %0, %1, %cst {dimension_numbers = #tpu.dot_dimension_numbers<[1], [0], [0], [1], [0, 0, 1, 1], [], []>} : vector<512x36xbf16>, vector<36x8xbf16>, vector<512x8xf32> -> vector<512x8xf32>
    %c0_3 = arith.constant 0 : index
    %c0_4 = arith.constant 0 : index
    %3 = vector.load %arg3[%c0_3, %c0_4] : memref<1x8xf32, #tpu.memory_space<vmem>>, vector<1x8xf32>
    %4 = vector.broadcast %3 : vector<1x8xf32> to vector<512x8xf32>
    %5 = arith.addf %2, %4 : vector<512x8xf32>
    %c0_5 = arith.constant 0 : index
    %c0_6 = arith.constant 0 : index
    %6 = vector.load %arg4[%c0_5, %c0_6] : memref<512x8xf32, #tpu.memory_space<vmem>>, vector<512x8xf32>
    tpu.vector_store %arg4[%c0_5, %c0_6], %5 {strides = array<i32>} : memref<512x8xf32, #tpu.memory_space<vmem>>, vector<512x8xf32>,
    return
  }
  func.func @transform_0(%arg0: i32) -> (i32, i32) {
    %c0_i32 = arith.constant 0 : i32
    %c0_i32_0 = arith.constant 0 : i32
    return %arg0, %c0_i32 : i32, i32
  }
  func.func @transform_1(%arg0: i32) -> (i32, i32) {
    %c0_i32 = arith.constant 0 : i32
    %c0_i32_0 = arith.constant 0 : i32
    %c0_i32_1 = arith.constant 0 : i32
    return %c0_i32, %c0_i32_0 : i32, i32
  }
  func.func @transform_2(%arg0: i32) -> (i32, i32) {
    %c0_i32 = arith.constant 0 : i32
    %c0_i32_0 = arith.constant 0 : i32
    %c0_i32_1 = arith.constant 0 : i32
    return %c0_i32, %c0_i32_0 : i32, i32
  }
  func.func @transform_3(%arg0: i32) -> (i32, i32) {
    %c0_i32 = arith.constant 0 : i32
    %c0_i32_0 = arith.constant 0 : i32
    return %arg0, %c0_i32 : i32, i32
  }
}

module attributes {stable_mosaic.version = 11 : i64} {
  func.func @_matmul_bias_kernel(%arg0: i32, %arg1: memref<512x36xbf16, #tpu.memory_space<vmem>>, %arg2: memref<36x4xbf16, #tpu.memory_space<vmem>>, %arg3: memref<1x4xf32, #tpu.memory_space<vmem>>, %arg4: memref<512x4xf32, #tpu.memory_space<vmem>>) attributes {dimension_semantics = [#tpu.dimension_semantics<parallel>], iteration_bounds = array<i64: 1>, scalar_prefetch = 0 : i64, scratch_operands = 0 : i64, tpu.core_type = #tpu.core_type<tc>, window_params = [{transform_indices = @transform_0, window_bounds = array<i64: 512, 36>}, {pipeline_mode = #tpu.pipeline_mode<synchronous>, transform_indices = @transform_1, window_bounds = array<i64: 36, 4>}, {pipeline_mode = #tpu.pipeline_mode<synchronous>, transform_indices = @transform_2, window_bounds = array<i64: 1, 4>}, {transform_indices = @transform_3, window_bounds = array<i64: 512, 4>}]} {
    %c0 = arith.constant 0 : index
    %c0_0 = arith.constant 0 : index
    %0 = vector.load %arg1[%c0, %c0_0] : memref<512x36xbf16, #tpu.memory_space<vmem>>, vector<512x36xbf16>
    %c0_1 = arith.constant 0 : index
    %c0_2 = arith.constant 0 : index
    %1 = vector.load %arg2[%c0_1, %c0_2] : memref<36x4xbf16, #tpu.memory_space<vmem>>, vector<36x4xbf16>
    %cst = arith.constant dense<0.000000e+00> : vector<512x4xf32>
    %2 = tpu.matmul %0, %1, %cst {dimension_numbers = #tpu.dot_dimension_numbers<[1], [0], [0], [1], [0, 0, 1, 1], [], []>} : vector<512x36xbf16>, vector<36x4xbf16>, vector<512x4xf32> -> vector<512x4xf32>
    %c0_3 = arith.constant 0 : index
    %c0_4 = arith.constant 0 : index
    %3 = vector.load %arg3[%c0_3, %c0_4] : memref<1x4xf32, #tpu.memory_space<vmem>>, vector<1x4xf32>
    %4 = vector.broadcast %3 : vector<1x4xf32> to vector<512x4xf32>
    %5 = arith.addf %2, %4 : vector<512x4xf32>
    %c0_5 = arith.constant 0 : index
    %c0_6 = arith.constant 0 : index
    %6 = vector.load %arg4[%c0_5, %c0_6] : memref<512x4xf32, #tpu.memory_space<vmem>>, vector<512x4xf32>
    tpu.vector_store %arg4[%c0_5, %c0_6], %5 {strides = array<i32>} : memref<512x4xf32, #tpu.memory_space<vmem>>, vector<512x4xf32>,
    return
  }
  func.func @transform_0(%arg0: i32) -> (i32, i32) {
    %c0_i32 = arith.constant 0 : i32
    %c0_i32_0 = arith.constant 0 : i32
    return %arg0, %c0_i32 : i32, i32
  }
  func.func @transform_1(%arg0: i32) -> (i32, i32) {
    %c0_i32 = arith.constant 0 : i32
    %c0_i32_0 = arith.constant 0 : i32
    %c0_i32_1 = arith.constant 0 : i32
    return %c0_i32, %c0_i32_0 : i32, i32
  }
  func.func @transform_2(%arg0: i32) -> (i32, i32) {
    %c0_i32 = arith.constant 0 : i32
    %c0_i32_0 = arith.constant 0 : i32
    %c0_i32_1 = arith.constant 0 : i32
    return %c0_i32, %c0_i32_0 : i32, i32
  }
  func.func @transform_3(%arg0: i32) -> (i32, i32) {
    %c0_i32 = arith.constant 0 : i32
    %c0_i32_0 = arith.constant 0 : i32
    return %arg0, %c0_i32 : i32, i32
  }
}

module attributes {stable_mosaic.version = 11 : i64} {
  func.func @_stats_add_kernel(%arg0: i32, %arg1: memref<8x256xf32, #tpu.memory_space<vmem>>, %arg2: memref<8x256xf32, #tpu.memory_space<vmem>>, %arg3: memref<1x256xf32, #tpu.memory_space<vmem>>, %arg4: memref<1x256xf32, #tpu.memory_space<vmem>>) attributes {dimension_semantics = [#tpu.dimension_semantics<arbitrary>], iteration_bounds = array<i64: 1>, scalar_prefetch = 0 : i64, scratch_operands = 0 : i64, tpu.core_type = #tpu.core_type<tc>, window_params = [{transform_indices = @transform_0, window_bounds = array<i64: 8, 256>}, {transform_indices = @transform_1, window_bounds = array<i64: 8, 256>}, {pipeline_mode = #tpu.pipeline_mode<synchronous>, transform_indices = @transform_2, window_bounds = array<i64: 1, 256>}, {pipeline_mode = #tpu.pipeline_mode<synchronous>, transform_indices = @transform_3, window_bounds = array<i64: 1, 256>}]} {
    %c0_i32 = arith.constant 0 : i32
    %0 = arith.cmpi eq, %arg0, %c0_i32 : i32
    %1 = arith.extui %0 : i1 to i32
    %c0_i32_0 = arith.constant 0 : i32
    %2 = arith.cmpi ne, %1, %c0_i32_0 : i32
    scf.if %2 {
      %cst_15 = arith.constant 0.000000e+00 : f32
      %25 = vector.broadcast %cst_15 : f32 to vector<1x256xf32>
      %c0_16 = arith.constant 0 : index
      %c0_17 = arith.constant 0 : index
      %26 = vector.load %arg3[%c0_16, %c0_17] : memref<1x256xf32, #tpu.memory_space<vmem>>, vector<1x256xf32>
      tpu.vector_store %arg3[%c0_16, %c0_17], %25 {strides = array<i32>} : memref<1x256xf32, #tpu.memory_space<vmem>>, vector<1x256xf32>,
      %cst_18 = arith.constant 0.000000e+00 : f32
      %27 = vector.broadcast %cst_18 : f32 to vector<1x256xf32>
      %c0_19 = arith.constant 0 : index
      %c0_20 = arith.constant 0 : index
      %28 = vector.load %arg4[%c0_19, %c0_20] : memref<1x256xf32, #tpu.memory_space<vmem>>, vector<1x256xf32>
      tpu.vector_store %arg4[%c0_19, %c0_20], %27 {strides = array<i32>} : memref<1x256xf32, #tpu.memory_space<vmem>>, vector<1x256xf32>,
    } else {
    }
    %3 = tpu.iota {dimensions = array<i32: 0>} : vector<8x256xi32>
    %c8_i32 = arith.constant 8 : i32
    %4 = arith.muli %arg0, %c8_i32 : i32
    %5 = vector.broadcast %4 : i32 to vector<8x256xi32>
    %6 = arith.addi %3, %5 : vector<8x256xi32>
    %c8_i32_1 = arith.constant 8 : i32
    %7 = vector.broadcast %c8_i32_1 : i32 to vector<8x256xi32>
    %8 = arith.cmpi slt, %6, %7 : vector<8x256xi32>
    %c0 = arith.constant 0 : index
    %c0_2 = arith.constant 0 : index
    %9 = vector.load %arg1[%c0, %c0_2] : memref<8x256xf32, #tpu.memory_space<vmem>>, vector<8x256xf32>
    %c0_3 = arith.constant 0 : index
    %c0_4 = arith.constant 0 : index
    %10 = vector.load %arg2[%c0_3, %c0_4] : memref<8x256xf32, #tpu.memory_space<vmem>>, vector<8x256xf32>
    %11 = arith.addf %9, %10 : vector<8x256xf32>
    %cst = arith.constant 0.000000e+00 : f32
    %12 = vector.broadcast %cst : f32 to vector<8x256xf32>
    %13 = arith.select %8, %11, %12 : vector<8x256xi1>, vector<8x256xf32>
    %c0_5 = arith.constant 0 : index
    %c0_6 = arith.constant 0 : index
    %14 = vector.load %arg3[%c0_5, %c0_6] : memref<1x256xf32, #tpu.memory_space<vmem>>, vector<1x256xf32>
    %cst_7 = arith.constant dense<0.000000e+00> : vector<256xf32>
    %15 = vector.multi_reduction <add>, %13, %cst_7 [0] : vector<8x256xf32> to vector<256xf32>
    %16 = vector.shape_cast %15 : vector<256xf32> to vector<1x256xf32>
    %17 = arith.addf %14, %16 : vector<1x256xf32>
    %c0_8 = arith.constant 0 : index
    %c0_9 = arith.constant 0 : index
    %18 = vector.load %arg3[%c0_8, %c0_9] : memref<1x256xf32, #tpu.memory_space<vmem>>, vector<1x256xf32>
    tpu.vector_store %arg3[%c0_8, %c0_9], %17 {strides = array<i32>} : memref<1x256xf32, #tpu.memory_space<vmem>>, vector<1x256xf32>,
    %c0_10 = arith.constant 0 : index
    %c0_11 = arith.constant 0 : index
    %19 = vector.load %arg4[%c0_10, %c0_11] : memref<1x256xf32, #tpu.memory_space<vmem>>, vector<1x256xf32>
    %20 = arith.mulf %13, %13 : vector<8x256xf32>
    %cst_12 = arith.constant dense<0.000000e+00> : vector<256xf32>
    %21 = vector.multi_reduction <add>, %20, %cst_12 [0] : vector<8x256xf32> to vector<256xf32>
    %22 = vector.shape_cast %21 : vector<256xf32> to vector<1x256xf32>
    %23 = arith.addf %19, %22 : vector<1x256xf32>
    %c0_13 = arith.constant 0 : index
    %c0_14 = arith.constant 0 : index
    %24 = vector.load %arg4[%c0_13, %c0_14] : memref<1x256xf32, #tpu.memory_space<vmem>>, vector<1x256xf32>
    tpu.vector_store %arg4[%c0_13, %c0_14], %23 {strides = array<i32>} : memref<1x256xf32, #tpu.memory_space<vmem>>, vector<1x256xf32>,
    return
  }
  func.func @transform_0(%arg0: i32) -> (i32, i32) {
    %c0_i32 = arith.constant 0 : i32
    %c0_i32_0 = arith.constant 0 : i32
    return %arg0, %c0_i32 : i32, i32
  }
  func.func @transform_1(%arg0: i32) -> (i32, i32) {
    %c0_i32 = arith.constant 0 : i32
    %c0_i32_0 = arith.constant 0 : i32
    return %arg0, %c0_i32 : i32, i32
  }
  func.func @transform_2(%arg0: i32) -> (i32, i32) {
    %c0_i32 = arith.constant 0 : i32
    %c0_i32_0 = arith.constant 0 : i32
    %c0_i32_1 = arith.constant 0 : i32
    return %c0_i32, %c0_i32_0 : i32, i32
  }
  func.func @transform_3(%arg0: i32) -> (i32, i32) {
    %c0_i32 = arith.constant 0 : i32
    %c0_i32_0 = arith.constant 0 : i32
    %c0_i32_1 = arith.constant 0 : i32
    return %c0_i32, %c0_i32_0 : i32, i32
  }
}

module attributes {stable_mosaic.version = 11 : i64} {
  func.func @_add_norm_prelu_res_kernel(%arg0: i32, %arg1: memref<8x256xf32, #tpu.memory_space<vmem>>, %arg2: memref<8x256xf32, #tpu.memory_space<vmem>>, %arg3: memref<8x256xf32, #tpu.memory_space<vmem>>, %arg4: memref<1x256xf32, #tpu.memory_space<vmem>>, %arg5: memref<1x256xf32, #tpu.memory_space<vmem>>, %arg6: memref<1x256xf32, #tpu.memory_space<vmem>>, %arg7: memref<8x256xf32, #tpu.memory_space<vmem>>) attributes {dimension_semantics = [#tpu.dimension_semantics<parallel>], iteration_bounds = array<i64: 1>, scalar_prefetch = 0 : i64, scratch_operands = 0 : i64, tpu.core_type = #tpu.core_type<tc>, window_params = [{transform_indices = @transform_0, window_bounds = array<i64: 8, 256>}, {transform_indices = @transform_1, window_bounds = array<i64: 8, 256>}, {transform_indices = @transform_2, window_bounds = array<i64: 8, 256>}, {pipeline_mode = #tpu.pipeline_mode<synchronous>, transform_indices = @transform_3, window_bounds = array<i64: 1, 256>}, {pipeline_mode = #tpu.pipeline_mode<synchronous>, transform_indices = @transform_4, window_bounds = array<i64: 1, 256>}, {pipeline_mode = #tpu.pipeline_mode<synchronous>, transform_indices = @transform_5, window_bounds = array<i64: 1, 256>}, {transform_indices = @transform_6, window_bounds = array<i64: 8, 256>}]} {
    %c0 = arith.constant 0 : index
    %c0_0 = arith.constant 0 : index
    %0 = vector.load %arg1[%c0, %c0_0] : memref<8x256xf32, #tpu.memory_space<vmem>>, vector<8x256xf32>
    %c0_1 = arith.constant 0 : index
    %c0_2 = arith.constant 0 : index
    %1 = vector.load %arg2[%c0_1, %c0_2] : memref<8x256xf32, #tpu.memory_space<vmem>>, vector<8x256xf32>
    %2 = arith.addf %0, %1 : vector<8x256xf32>
    %c0_3 = arith.constant 0 : index
    %c0_4 = arith.constant 0 : index
    %3 = vector.load %arg4[%c0_3, %c0_4] : memref<1x256xf32, #tpu.memory_space<vmem>>, vector<1x256xf32>
    %4 = vector.broadcast %3 : vector<1x256xf32> to vector<8x256xf32>
    %5 = arith.mulf %2, %4 : vector<8x256xf32>
    %c0_5 = arith.constant 0 : index
    %c0_6 = arith.constant 0 : index
    %6 = vector.load %arg5[%c0_5, %c0_6] : memref<1x256xf32, #tpu.memory_space<vmem>>, vector<1x256xf32>
    %7 = vector.broadcast %6 : vector<1x256xf32> to vector<8x256xf32>
    %8 = arith.addf %5, %7 : vector<8x256xf32>
    %cst = arith.constant 0.000000e+00 : f32
    %9 = vector.broadcast %cst : f32 to vector<8x256xf32>
    %10 = arith.cmpf oge, %8, %9 : vector<8x256xf32>
    %c0_7 = arith.constant 0 : index
    %c0_8 = arith.constant 0 : index
    %11 = vector.load %arg6[%c0_7, %c0_8] : memref<1x256xf32, #tpu.memory_space<vmem>>, vector<1x256xf32>
    %12 = vector.broadcast %11 : vector<1x256xf32> to vector<8x256xf32>
    %13 = arith.mulf %12, %8 : vector<8x256xf32>
    %14 = arith.select %10, %8, %13 : vector<8x256xi1>, vector<8x256xf32>
    %c0_9 = arith.constant 0 : index
    %c0_10 = arith.constant 0 : index
    %15 = vector.load %arg3[%c0_9, %c0_10] : memref<8x256xf32, #tpu.memory_space<vmem>>, vector<8x256xf32>
    %16 = arith.addf %14, %15 : vector<8x256xf32>
    %c0_11 = arith.constant 0 : index
    %c0_12 = arith.constant 0 : index
    %17 = vector.load %arg7[%c0_11, %c0_12] : memref<8x256xf32, #tpu.memory_space<vmem>>, vector<8x256xf32>
    tpu.vector_store %arg7[%c0_11, %c0_12], %16 {strides = array<i32>} : memref<8x256xf32, #tpu.memory_space<vmem>>, vector<8x256xf32>,
    return
  }
  func.func @transform_0(%arg0: i32) -> (i32, i32) {
    %c0_i32 = arith.constant 0 : i32
    %c0_i32_0 = arith.constant 0 : i32
    return %arg0, %c0_i32 : i32, i32
  }
  func.func @transform_1(%arg0: i32) -> (i32, i32) {
    %c0_i32 = arith.constant 0 : i32
    %c0_i32_0 = arith.constant 0 : i32
    return %arg0, %c0_i32 : i32, i32
  }
  func.func @transform_2(%arg0: i32) -> (i32, i32) {
    %c0_i32 = arith.constant 0 : i32
    %c0_i32_0 = arith.constant 0 : i32
    return %arg0, %c0_i32 : i32, i32
  }
  func.func @transform_3(%arg0: i32) -> (i32, i32) {
    %c0_i32 = arith.constant 0 : i32
    %c0_i32_0 = arith.constant 0 : i32
    %c0_i32_1 = arith.constant 0 : i32
    return %c0_i32, %c0_i32_0 : i32, i32
  }
  func.func @transform_4(%arg0: i32) -> (i32, i32) {
    %c0_i32 = arith.constant 0 : i32
    %c0_i32_0 = arith.constant 0 : i32
    %c0_i32_1 = arith.constant 0 : i32
    return %c0_i32, %c0_i32_0 : i32, i32
  }
  func.func @transform_5(%arg0: i32) -> (i32, i32) {
    %c0_i32 = arith.constant 0 : i32
    %c0_i32_0 = arith.constant 0 : i32
    %c0_i32_1 = arith.constant 0 : i32
    return %c0_i32, %c0_i32_0 : i32, i32
  }
  func.func @transform_6(%arg0: i32) -> (i32, i32) {
    %c0_i32 = arith.constant 0 : i32
    %c0_i32_0 = arith.constant 0 : i32
    return %arg0, %c0_i32 : i32, i32
  }
}

</mosaic_0001>

<llo_original>
// kernel: tile.103
$region0: #{tile.103}
  #allocation0 [shape = 's32[1]{0}', space=sflag, size = 0x4, scoped, tag = 'scoped memory for tile.103']
  %s0 = inlined_call_operand.vmem [shape: f32[4], index: 0, kind: input, shape index: {}]
  %s1 = inlined_call_operand.vmem [shape: f32[64,4], index: 1, kind: output, shape index: {}]
  // Predicated region
  $region2: #{tile.103} parent=0 // pred_check
    _
  $region3: #{tile.103} parent=0 // pred_check_branch
    %3 = sbr.rel (0) target = $region5
  $region4: #{tile.103} parent=0 // pred_region
    _
  $region5: #{tile.103} parent=0 // pred_fallthru
    _
  %v4 = vld [vmem:[%s0] ss:$0 sm:$0xff]
  %5 = vst [vmem:[%s1] sm:$0xff] %v4
  %s6 = scalar_lea.vmem %s1, 8
  %7 = vst [vmem:[%s6] sm:$0xff] %v4
  %s8 = scalar_lea.vmem %s1, 16
  %9 = vst [vmem:[%s8] sm:$0xff] %v4
  %s10 = scalar_lea.vmem %s1, 24
  %11 = vst [vmem:[%s10] sm:$0xff] %v4
  %s12 = scalar_lea.vmem %s1, 32
  %13 = vst [vmem:[%s12] sm:$0xff] %v4
  %s14 = scalar_lea.vmem %s1, 40
  %15 = vst [vmem:[%s14] sm:$0xff] %v4
  %s16 = scalar_lea.vmem %s1, 48
  %17 = vst [vmem:[%s16] sm:$0xff] %v4
  %s18 = scalar_lea.vmem %s1, 56
  %19 = vst [vmem:[%s18] sm:$0xff] %v4

// kernel: tile.73
$region0: #{tile.73}
  #allocation0 [shape = 's32[1]{0}', space=sflag, size = 0x4, scoped, tag = 'scoped memory for tile.73']
  %s0 = inlined_call_operand.vmem [shape: f32[2], index: 0, kind: input, shape index: {}]
  %s1 = inlined_call_operand.vmem [shape: f32[64,2], index: 1, kind: output, shape index: {}]
  // Predicated region
  $region2: #{tile.73} parent=0 // pred_check
    _
  $region3: #{tile.73} parent=0 // pred_check_branch
    %3 = sbr.rel (0) target = $region5
  $region4: #{tile.73} parent=0 // pred_region
    _
  $region5: #{tile.73} parent=0 // pred_fallthru
    _
  %v4 = vld [vmem:[%s0] ss:$0 sm:$0xff]
  %5 = vst [vmem:[%s1] sm:$0xff] %v4
  %s6 = scalar_lea.vmem %s1, 8
  %7 = vst [vmem:[%s6] sm:$0xff] %v4
  %s8 = scalar_lea.vmem %s1, 16
  %9 = vst [vmem:[%s8] sm:$0xff] %v4
  %s10 = scalar_lea.vmem %s1, 24
  %11 = vst [vmem:[%s10] sm:$0xff] %v4
  %s12 = scalar_lea.vmem %s1, 32
  %13 = vst [vmem:[%s12] sm:$0xff] %v4
  %s14 = scalar_lea.vmem %s1, 40
  %15 = vst [vmem:[%s14] sm:$0xff] %v4
  %s16 = scalar_lea.vmem %s1, 48
  %17 = vst [vmem:[%s16] sm:$0xff] %v4
  %s18 = scalar_lea.vmem %s1, 56
  %19 = vst [vmem:[%s18] sm:$0xff] %v4

// kernel: tile.104
$region0: #{tile.104}
  %s0 = inlined_call_operand.vmem [shape: f32[64,4], index: 0, kind: input, shape index: {}]
  %s1 = inlined_call_operand.vmem [shape: f32[1,256], index: 1, kind: output, shape index: {}]
  $region1: #{tile.104} parent=0
    #allocation0 [shape = 'u8[8192]{0}', space=vmem, size = 0x2000, scoped, tag = 'scoped mem for output reshape']
    %v2 = vld [vmem:[%s0] sm:$0x1]
    %s3 = scalar_lea.vmem %s0, 31
    %v4 = vld [vmem:[%s3] sm:$0x2]
    %vm5 = vcmask 1041409
    %v6 = vsel %vm5, %v4, %v2
    %vm7 = vcmask 31744
    %8 = vst.msk [vmem:[#allocation0] ss:$8 sm:$0x3] %vm7, %v6
    %s9 = scalar_lea.vmem %s0, 31
    %v10 = vld [vmem:[%s9] sm:$0x1]
    %s11 = scalar_lea.vmem %s0, 62
    %v12 = vld [vmem:[%s11] sm:$0x2]
    %vm13 = vcmask 1041409
    %v14 = vsel %vm13, %v12, %v10
    %15 = vrot.lane.b32.xlu0 %v14, 124
    %v16 = vpop.permute.xlu0 %15
    %vm17 = vcmask 1048544
    %18 = vst.msk [vmem:[#allocation0] ss:$8 sm:$0x3] %vm17, %v16
    %s19 = scalar_lea.vmem %s0, 30
    %v20 = vld [vmem:[%s19] sm:$0x1]
    %s21 = scalar_lea.vmem %s0, 61
    %v22 = vld [vmem:[%s21] sm:$0x2]
    %vm23 = vcmask 1041409
    %v24 = vsel %vm23, %v22, %v20
    %25 = vrot.lane.b32.xlu0 %v24, 120
    %v26 = vpop.permute.xlu0 %25
    %vm27 = vcmask 1015744
    %28 = vst.msk [vmem:[#allocation0] ss:$8 sm:$0x3] %vm27, %v26
    %s29 = scalar_lea.vmem %s0, 29
    %v30 = vld [vmem:[%s29] sm:$0x1]
    %s31 = scalar_lea.vmem %s0, 60
    %v32 = vld [vmem:[%s31] sm:$0x2]
    %vm33 = vcmask 1041409
    %v34 = vsel %vm33, %v32, %v30
    %35 = vrot.lane.b32.xlu0 %v34, 116
    %v36 = vpop.permute.xlu0 %35
    %vm37 = vcmask 982944
    %38 = vst.msk [vmem:[#allocation0] ss:$8 sm:$0x3] %vm37, %v36
    %s39 = scalar_lea.vmem %s0, 28
    %v40 = vld [vmem:[%s39] sm:$0x1]
    %s41 = scalar_lea.vmem %s0, 59
    %v42 = vld [vmem:[%s41] sm:$0x2]
    %vm43 = vcmask 1041409
    %v44 = vsel %vm43, %v42, %v40
    %45 = vrot.lane.b32.xlu0 %v44, 112
    %v46 = vpop.permute.xlu0 %45
    %vm47 = vcmask 950144
    %48 = vst.msk [vmem:[#allocation0] ss:$8 sm:$0x3] %vm47, %v46
    %s49 = scalar_lea.vmem %s0, 27
    %v50 = vld [vmem:[%s49] sm:$0x1]
    %s51 = scalar_lea.vmem %s0, 58
    %v52 = vld [vmem:[%s51] sm:$0x2]
    %vm53 = vcmask 1041409
    %v54 = vsel %vm53, %v52, %v50
    %55 = vrot.lane.b32.xlu0 %v54, 108
    %v56 = vpop.permute.xlu0 %55
    %vm57 = vcmask 917344
    %58 = vst.msk [vmem:[#allocation0] ss:$8 sm:$0x3] %vm57, %v56
    %s59 = scalar_lea.vmem %s0, 26
    %v60 = vld [vmem:[%s59] sm:$0x1]
    %s61 = scalar_lea.vmem %s0, 57
    %v62 = vld [vmem:[%s61] sm:$0x2]
    %vm63 = vcmask 1041409
    %v64 = vsel %vm63, %v62, %v60
    %65 = vrot.lane.b32.xlu0 %v64, 104
    %v66 = vpop.permute.xlu0 %65
    %vm67 = vcmask 884544
    %68 = vst.msk [vmem:[#allocation0] ss:$8 sm:$0x3] %vm67, %v66
    %s69 = scalar_lea.vmem %s0, 25
    %v70 = vld [vmem:[%s69] sm:$0x1]
    %s71 = scalar_lea.vmem %s0, 56
    %v72 = vld [vmem:[%s71] sm:$0x2]
    %vm73 = vcmask 1041409
    %v74 = vsel %vm73, %v72, %v70
    %75 = vrot.lane.b32.xlu0 %v74, 100
    %v76 = vpop.permute.xlu0 %75
    %vm77 = vcmask 851744
    %78 = vst.msk [vmem:[#allocation0] ss:$8 sm:$0x3] %vm77, %v76
    %s79 = scalar_lea.vmem %s0, 24
    %v80 = vld [vmem:[%s79] sm:$0x1]
    %s81 = scalar_lea.vmem %s0, 55
    %v82 = vld [vmem:[%s81] sm:$0x2]
    %vm83 = vcmask 1041409
    %v84 = vsel %vm83, %v82, %v80
    %85 = vrot.lane.b32.xlu0 %v84, 96
    %v86 = vpop.permute.xlu0 %85
    %vm87 = vcmask 818944
    %88 = vst.msk [vmem:[#allocation0] ss:$8 sm:$0x3] %vm87, %v86
    %s89 = scalar_lea.vmem %s0, 23
    %v90 = vld [vmem:[%s89] sm:$0x1]
    %s91 = scalar_lea.vmem %s0, 54
    %v92 = vld [vmem:[%s91] sm:$0x2]
    %vm93 = vcmask 1041409
    %v94 = vsel %vm93, %v92, %v90
    %95 = vrot.lane.b32.xlu0 %v94, 92
    %v96 = vpop.permute.xlu0 %95
    %vm97 = vcmask 786144
    %98 = vst.msk [vmem:[#allocation0] ss:$8 sm:$0x3] %vm97, %v96
    %s99 = scalar_lea.vmem %s0, 22
    %v100 = vld [vmem:[%s99] sm:$0x1]
    %s101 = scalar_lea.vmem %s0, 53
    %v102 = vld [vmem:[%s101] sm:$0x2]
    %vm103 = vcmask 1041409
    %v104 = vsel %vm103, %v102, %v100
    %105 = vrot.lane.b32.xlu0 %v104, 88
    %v106 = vpop.permute.xlu0 %105
    %vm107 = vcmask 753344
    %108 = vst.msk [vmem:[#allocation0] ss:$8 sm:$0x3] %vm107, %v106
    %s109 = scalar_lea.vmem %s0, 21
    %v110 = vld [vmem:[%s109] sm:$0x1]
    %s111 = scalar_lea.vmem %s0, 52
    %v112 = vld [vmem:[%s111] sm:$0x2]
    %vm113 = vcmask 1041409
    %v114 = vsel %vm113, %v112, %v110
    %115 = vrot.lane.b32.xlu0 %v114, 84
    %v116 = vpop.permute.xlu0 %115
    %vm117 = vcmask 720544
    %118 = vst.msk [vmem:[#allocation0] ss:$8 sm:$0x3] %vm117, %v116
    %s119 = scalar_lea.vmem %s0, 20
    %v120 = vld [vmem:[%s119] sm:$0x1]
    %s121 = scalar_lea.vmem %s0, 51
    %v122 = vld [vmem:[%s121] sm:$0x2]
    %vm123 = vcmask 1041409
    %v124 = vsel %vm123, %v122, %v120
    %125 = vrot.lane.b32.xlu0 %v124, 80
    %v126 = vpop.permute.xlu0 %125
    %vm127 = vcmask 687744
    %128 = vst.msk [vmem:[#allocation0] ss:$8 sm:$0x3] %vm127, %v126
    %s129 = scalar_lea.vmem %s0, 19
    %v130 = vld [vmem:[%s129] sm:$0x1]
    %s131 = scalar_lea.vmem %s0, 50
    %v132 = vld [vmem:[%s131] sm:$0x2]
    %vm133 = vcmask 1041409
    %v134 = vsel %vm133, %v132, %v130
    %135 = vrot.lane.b32.xlu0 %v134, 76
    %v136 = vpop.permute.xlu0 %135
    %vm137 = vcmask 654944
    %138 = vst.msk [vmem:[#allocation0] ss:$8 sm:$0x3] %vm137, %v136
    %s139 = scalar_lea.vmem %s0, 18
    %v140 = vld [vmem:[%s139] sm:$0x1]
    %s141 = scalar_lea.vmem %s0, 49
    %v142 = vld [vmem:[%s141] sm:$0x2]
    %vm143 = vcmask 1041409
    %v144 = vsel %vm143, %v142, %v140
    %145 = vrot.lane.b32.xlu0 %v144, 72
    %v146 = vpop.permute.xlu0 %145
    %vm147 = vcmask 622144
    %148 = vst.msk [vmem:[#allocation0] ss:$8 sm:$0x3] %vm147, %v146
    %s149 = scalar_lea.vmem %s0, 17
    %v150 = vld [vmem:[%s149] sm:$0x1]
    %s151 = scalar_lea.vmem %s0, 48
    %v152 = vld [vmem:[%s151] sm:$0x2]
    %vm153 = vcmask 1041409
    %v154 = vsel %vm153, %v152, %v150
    %155 = vrot.lane.b32.xlu0 %v154, 68
    %v156 = vpop.permute.xlu0 %155
    %vm157 = vcmask 589344
    %158 = vst.msk [vmem:[#allocation0] ss:$8 sm:$0x3] %vm157, %v156
    %s159 = scalar_lea.vmem %s0, 16
    %v160 = vld [vmem:[%s159] sm:$0x1]
    %s161 = scalar_lea.vmem %s0, 47
    %v162 = vld [vmem:[%s161] sm:$0x2]
    %vm163 = vcmask 1041409
    %v164 = vsel %vm163, %v162, %v160
    %165 = vrot.lane.b32.xlu0 %v164, 64
    %v166 = vpop.permute.xlu0 %165
    %vm167 = vcmask 556544
    %168 = vst.msk [vmem:[#allocation0] ss:$8 sm:$0x3] %vm167, %v166
    %s169 = scalar_lea.vmem %s0, 15
    %v170 = vld [vmem:[%s169] sm:$0x1]
    %s171 = scalar_lea.vmem %s0, 46
    %v172 = vld [vmem:[%s171] sm:$0x2]
    %vm173 = vcmask 1041409
    %v174 = vsel %vm173, %v172, %v170
    %175 = vrot.lane.b32.xlu0 %v174, 60
    %v176 = vpop.permute.xlu0 %175
    %vm177 = vcmask 523744
    %178 = vst.msk [vmem:[#allocation0] ss:$8 sm:$0x3] %vm177, %v176
    %s179 = scalar_lea.vmem %s0, 14
    %v180 = vld [vmem:[%s179] sm:$0x1]
    %s181 = scalar_lea.vmem %s0, 45
    %v182 = vld [vmem:[%s181] sm:$0x2]
    %vm183 = vcmask 1041409
    %v184 = vsel %vm183, %v182, %v180
    %185 = vrot.lane.b32.xlu0 %v184, 56
    %v186 = vpop.permute.xlu0 %185
    %vm187 = vcmask 490944
    %188 = vst.msk [vmem:[#allocation0] ss:$8 sm:$0x3] %vm187, %v186
    %s189 = scalar_lea.vmem %s0, 13
    %v190 = vld [vmem:[%s189] sm:$0x1]
    %s191 = scalar_lea.vmem %s0, 44
    %v192 = vld [vmem:[%s191] sm:$0x2]
    %vm193 = vcmask 1041409
    %v194 = vsel %vm193, %v192, %v190
    %195 = vrot.lane.b32.xlu0 %v194, 52
    %v196 = vpop.permute.xlu0 %195
    %vm197 = vcmask 458144
    %198 = vst.msk [vmem:[#allocation0] ss:$8 sm:$0x3] %vm197, %v196
    %s199 = scalar_lea.vmem %s0, 12
    %v200 = vld [vmem:[%s199] sm:$0x1]
    %s201 = scalar_lea.vmem %s0, 43
    %v202 = vld [vmem:[%s201] sm:$0x2]
    %vm203 = vcmask 1041409
    %v204 = vsel %vm203, %v202, %v200
    %205 = vrot.lane.b32.xlu0 %v204, 48
    %v206 = vpop.permute.xlu0 %205
    %vm207 = vcmask 425344
    %208 = vst.msk [vmem:[#allocation0] ss:$8 sm:$0x3] %vm207, %v206
    %s209 = scalar_lea.vmem %s0, 11
    %v210 = vld [vmem:[%s209] sm:$0x1]
    %s211 = scalar_lea.vmem %s0, 42
    %v212 = vld [vmem:[%s211] sm:$0x2]
    %vm213 = vcmask 1041409
    %v214 = vsel %vm213, %v212, %v210
    %215 = vrot.lane.b32.xlu0 %v214, 44
    %v216 = vpop.permute.xlu0 %215
    %vm217 = vcmask 392544
    %218 = vst.msk [vmem:[#allocation0] ss:$8 sm:$0x3] %vm217, %v216
    %s219 = scalar_lea.vmem %s0, 10
    %v220 = vld [vmem:[%s219] sm:$0x1]
    %s221 = scalar_lea.vmem %s0, 41
    %v222 = vld [vmem:[%s221] sm:$0x2]
    %vm223 = vcmask 1041409
    %v224 = vsel %vm223, %v222, %v220
    %225 = vrot.lane.b32.xlu0 %v224, 40
    %v226 = vpop.permute.xlu0 %225
    %vm227 = vcmask 359744
    %228 = vst.msk [vmem:[#allocation0] ss:$8 sm:$0x3] %vm227, %v226
    %s229 = scalar_lea.vmem %s0, 9
    %v230 = vld [vmem:[%s229] sm:$0x1]
    %s231 = scalar_lea.vmem %s0, 40
    %v232 = vld [vmem:[%s231] sm:$0x2]
    %vm233 = vcmask 1041409
    %v234 = vsel %vm233, %v232, %v230
    %235 = vrot.lane.b32.xlu0 %v234, 36
    %v236 = vpop.permute.xlu0 %235
    %vm237 = vcmask 326944
    %238 = vst.msk [vmem:[#allocation0] ss:$8 sm:$0x3] %vm237, %v236
    %s239 = scalar_lea.vmem %s0, 8
    %v240 = vld [vmem:[%s239] sm:$0x1]
    %s241 = scalar_lea.vmem %s0, 39
    %v242 = vld [vmem:[%s241] sm:$0x2]
    %vm243 = vcmask 1041409
    %v244 = vsel %vm243, %v242, %v240
    %245 = vrot.lane.b32.xlu0 %v244, 32
    %v246 = vpop.permute.xlu0 %245
    %vm247 = vcmask 294144
    %248 = vst.msk [vmem:[#allocation0] ss:$8 sm:$0x3] %vm247, %v246
    %s249 = scalar_lea.vmem %s0, 7
    %v250 = vld [vmem:[%s249] sm:$0x1]
    %s251 = scalar_lea.vmem %s0, 38
    %v252 = vld [vmem:[%s251] sm:$0x2]
    %vm253 = vcmask 1041409
    %v254 = vsel %vm253, %v252, %v250
    %255 = vrot.lane.b32.xlu0 %v254, 28
    %v256 = vpop.permute.xlu0 %255
    %vm257 = vcmask 261344
    %258 = vst.msk [vmem:[#allocation0] ss:$8 sm:$0x3] %vm257, %v256
    %s259 = scalar_lea.vmem %s0, 6
    %v260 = vld [vmem:[%s259] sm:$0x1]
    %s261 = scalar_lea.vmem %s0, 37
    %v262 = vld [vmem:[%s261] sm:$0x2]
    %vm263 = vcmask 1041409
    %v264 = vsel %vm263, %v262, %v260
    %265 = vrot.lane.b32.xlu0 %v264, 24
    %v266 = vpop.permute.xlu0 %265
    %vm267 = vcmask 228544
    %268 = vst.msk [vmem:[#allocation0] ss:$8 sm:$0x3] %vm267, %v266
    %s269 = scalar_lea.vmem %s0, 5
    %v270 = vld [vmem:[%s269] sm:$0x1]
    %s271 = scalar_lea.vmem %s0, 36
    %v272 = vld [vmem:[%s271] sm:$0x2]
    %vm273 = vcmask 1041409
    %v274 = vsel %vm273, %v272, %v270
    %275 = vrot.lane.b32.xlu0 %v274, 20
    %v276 = vpop.permute.xlu0 %275
    %vm277 = vcmask 195744
    %278 = vst.msk [vmem:[#allocation0] ss:$8 sm:$0x3] %vm277, %v276
    %s279 = scalar_lea.vmem %s0, 4
    %v280 = vld [vmem:[%s279] sm:$0x1]
    %s281 = scalar_lea.vmem %s0, 35
    %v282 = vld [vmem:[%s281] sm:$0x2]
    %vm283 = vcmask 1041409
    %v284 = vsel %vm283, %v282, %v280
    %285 = vrot.lane.b32.xlu0 %v284, 16
    %v286 = vpop.permute.xlu0 %285
    %vm287 = vcmask 162944
    %288 = vst.msk [vmem:[#allocation0] ss:$8 sm:$0x3] %vm287, %v286
    %s289 = scalar_lea.vmem %s0, 3
    %v290 = vld [vmem:[%s289] sm:$0x1]
    %s291 = scalar_lea.vmem %s0, 34
    %v292 = vld [vmem:[%s291] sm:$0x2]
    %vm293 = vcmask 1041409
    %v294 = vsel %vm293, %v292, %v290
    %295 = vrot.lane.b32.xlu0 %v294, 12
    %v296 = vpop.permute.xlu0 %295
    %vm297 = vcmask 130144
    %298 = vst.msk [vmem:[#allocation0] ss:$8 sm:$0x3] %vm297, %v296
    %s299 = scalar_lea.vmem %s0, 2
    %v300 = vld [vmem:[%s299] sm:$0x1]
    %s301 = scalar_lea.vmem %s0, 33
    %v302 = vld [vmem:[%s301] sm:$0x2]
    %vm303 = vcmask 1041409
    %v304 = vsel %vm303, %v302, %v300
    %305 = vrot.lane.b32.xlu0 %v304, 8
    %v306 = vpop.permute.xlu0 %305
    %vm307 = vcmask 97344
    %308 = vst.msk [vmem:[#allocation0] ss:$8 sm:$0x3] %vm307, %v306
    %s309 = scalar_lea.vmem %s0, 1
    %v310 = vld [vmem:[%s309] sm:$0x1]
    %s311 = scalar_lea.vmem %s0, 32
    %v312 = vld [vmem:[%s311] sm:$0x2]
    %vm313 = vcmask 1041409
    %v314 = vsel %vm313, %v312, %v310
    %315 = vrot.lane.b32.xlu0 %v314, 4
    %v316 = vpop.permute.xlu0 %315
    %vm317 = vcmask 64544
    %318 = vst.msk [vmem:[#allocation0] ss:$8 sm:$0x3] %vm317, %v316
    %s320 = sshllo.u32 0, 1
    %v322 = vld [vmem:[#allocation0] sm:%s320]
    %s323 = sshllo.u32 0, 1
    %324 = vst [vmem:[%s1] sm:%s323] %v322
    %s325 = scalar_lea.vmem [#allocation0], 8
    %v326 = vld [vmem:[%s325] sm:%s320]
    %s327 = sshllo.u32 0, 1
    %s328 = scalar_lea.vmem %s1, 1
    %329 = vst [vmem:[%s328] sm:%s327] %v326

// kernel: tile.74
$region0: #{tile.74}
  %s0 = inlined_call_operand.vmem [shape: f32[64,2], index: 0, kind: input, shape index: {}]
  %s1 = inlined_call_operand.vmem [shape: f32[1,128], index: 1, kind: output, shape index: {}]
  $region1: #{tile.74} parent=0
    #allocation0 [shape = 'u8[4096]{0}', space=vmem, size = 0x1000, scoped, tag = 'scoped mem for output reshape']
    %v2 = vld [vmem:[%s0] sm:$0x1]
    %vm3 = vcmask 15360
    %4 = vst.msk [vmem:[#allocation0] sm:$0x1] %vm3, %v2
    %s5 = scalar_lea.vmem %s0, 63
    %v6 = vld [vmem:[%s5] sm:$0x1]
    %7 = vrot.lane.b32.xlu0 %v6, 126
    %v8 = vpop.permute.xlu0 %7
    %vm9 = vcmask 1048560
    %10 = vst.msk [vmem:[#allocation0] sm:$0x1] %vm9, %v8
    %s11 = scalar_lea.vmem %s0, 62
    %v12 = vld [vmem:[%s11] sm:$0x1]
    %13 = vrot.lane.b32.xlu0 %v12, 124
    %v14 = vpop.permute.xlu0 %13
    %vm15 = vcmask 1032160
    %16 = vst.msk [vmem:[#allocation0] sm:$0x1] %vm15, %v14
    %s17 = scalar_lea.vmem %s0, 61
    %v18 = vld [vmem:[%s17] sm:$0x1]
    %19 = vrot.lane.b32.xlu0 %v18, 122
    %v20 = vpop.permute.xlu0 %19
    %vm21 = vcmask 1015760
    %22 = vst.msk [vmem:[#allocation0] sm:$0x1] %vm21, %v20
    %s23 = scalar_lea.vmem %s0, 60
    %v24 = vld [vmem:[%s23] sm:$0x1]
    %25 = vrot.lane.b32.xlu0 %v24, 120
    %v26 = vpop.permute.xlu0 %25
    %vm27 = vcmask 999360
    %28 = vst.msk [vmem:[#allocation0] sm:$0x1] %vm27, %v26
    %s29 = scalar_lea.vmem %s0, 59
    %v30 = vld [vmem:[%s29] sm:$0x1]
    %31 = vrot.lane.b32.xlu0 %v30, 118
    %v32 = vpop.permute.xlu0 %31
    %vm33 = vcmask 982960
    %34 = vst.msk [vmem:[#allocation0] sm:$0x1] %vm33, %v32
    %s35 = scalar_lea.vmem %s0, 58
    %v36 = vld [vmem:[%s35] sm:$0x1]
    %37 = vrot.lane.b32.xlu0 %v36, 116
    %v38 = vpop.permute.xlu0 %37
    %vm39 = vcmask 966560
    %40 = vst.msk [vmem:[#allocation0] sm:$0x1] %vm39, %v38
    %s41 = scalar_lea.vmem %s0, 57
    %v42 = vld [vmem:[%s41] sm:$0x1]
    %43 = vrot.lane.b32.xlu0 %v42, 114
    %v44 = vpop.permute.xlu0 %43
    %vm45 = vcmask 950160
    %46 = vst.msk [vmem:[#allocation0] sm:$0x1] %vm45, %v44
    %s47 = scalar_lea.vmem %s0, 56
    %v48 = vld [vmem:[%s47] sm:$0x1]
    %49 = vrot.lane.b32.xlu0 %v48, 112
    %v50 = vpop.permute.xlu0 %49
    %vm51 = vcmask 933760
    %52 = vst.msk [vmem:[#allocation0] sm:$0x1] %vm51, %v50
    %s53 = scalar_lea.vmem %s0, 55
    %v54 = vld [vmem:[%s53] sm:$0x1]
    %55 = vrot.lane.b32.xlu0 %v54, 110
    %v56 = vpop.permute.xlu0 %55
    %vm57 = vcmask 917360
    %58 = vst.msk [vmem:[#allocation0] sm:$0x1] %vm57, %v56
    %s59 = scalar_lea.vmem %s0, 54
    %v60 = vld [vmem:[%s59] sm:$0x1]
    %61 = vrot.lane.b32.xlu0 %v60, 108
    %v62 = vpop.permute.xlu0 %61
    %vm63 = vcmask 900960
    %64 = vst.msk [vmem:[#allocation0] sm:$0x1] %vm63, %v62
    %s65 = scalar_lea.vmem %s0, 53
    %v66 = vld [vmem:[%s65] sm:$0x1]
    %67 = vrot.lane.b32.xlu0 %v66, 106
    %v68 = vpop.permute.xlu0 %67
    %vm69 = vcmask 884560
    %70 = vst.msk [vmem:[#allocation0] sm:$0x1] %vm69, %v68
    %s71 = scalar_lea.vmem %s0, 52
    %v72 = vld [vmem:[%s71] sm:$0x1]
    %73 = vrot.lane.b32.xlu0 %v72, 104
    %v74 = vpop.permute.xlu0 %73
    %vm75 = vcmask 868160
    %76 = vst.msk [vmem:[#allocation0] sm:$0x1] %vm75, %v74
    %s77 = scalar_lea.vmem %s0, 51
    %v78 = vld [vmem:[%s77] sm:$0x1]
    %79 = vrot.lane.b32.xlu0 %v78, 102
    %v80 = vpop.permute.xlu0 %79
    %vm81 = vcmask 851760
    %82 = vst.msk [vmem:[#allocation0] sm:$0x1] %vm81, %v80
    %s83 = scalar_lea.vmem %s0, 50
    %v84 = vld [vmem:[%s83] sm:$0x1]
    %85 = vrot.lane.b32.xlu0 %v84, 100
    %v86 = vpop.permute.xlu0 %85
    %vm87 = vcmask 835360
    %88 = vst.msk [vmem:[#allocation0] sm:$0x1] %vm87, %v86
    %s89 = scalar_lea.vmem %s0, 49
    %v90 = vld [vmem:[%s89] sm:$0x1]
    %91 = vrot.lane.b32.xlu0 %v90, 98
    %v92 = vpop.permute.xlu0 %91
    %vm93 = vcmask 818960
    %94 = vst.msk [vmem:[#allocation0] sm:$0x1] %vm93, %v92
    %s95 = scalar_lea.vmem %s0, 48
    %v96 = vld [vmem:[%s95] sm:$0x1]
    %97 = vrot.lane.b32.xlu0 %v96, 96
    %v98 = vpop.permute.xlu0 %97
    %vm99 = vcmask 802560
    %100 = vst.msk [vmem:[#allocation0] sm:$0x1] %vm99, %v98
    %s101 = scalar_lea.vmem %s0, 47
    %v102 = vld [vmem:[%s101] sm:$0x1]
    %103 = vrot.lane.b32.xlu0 %v102, 94
    %v104 = vpop.permute.xlu0 %103
    %vm105 = vcmask 786160
    %106 = vst.msk [vmem:[#allocation0] sm:$0x1] %vm105, %v104
    %s107 = scalar_lea.vmem %s0, 46
    %v108 = vld [vmem:[%s107] sm:$0x1]
    %109 = vrot.lane.b32.xlu0 %v108, 92
    %v110 = vpop.permute.xlu0 %109
    %vm111 = vcmask 769760
    %112 = vst.msk [vmem:[#allocation0] sm:$0x1] %vm111, %v110
    %s113 = scalar_lea.vmem %s0, 45
    %v114 = vld [vmem:[%s113] sm:$0x1]
    %115 = vrot.lane.b32.xlu0 %v114, 90
    %v116 = vpop.permute.xlu0 %115
    %vm117 = vcmask 753360
    %118 = vst.msk [vmem:[#allocation0] sm:$0x1] %vm117, %v116
    %s119 = scalar_lea.vmem %s0, 44
    %v120 = vld [vmem:[%s119] sm:$0x1]
    %121 = vrot.lane.b32.xlu0 %v120, 88
    %v122 = vpop.permute.xlu0 %121
    %vm123 = vcmask 736960
    %124 = vst.msk [vmem:[#allocation0] sm:$0x1] %vm123, %v122
    %s125 = scalar_lea.vmem %s0, 43
    %v126 = vld [vmem:[%s125] sm:$0x1]
    %127 = vrot.lane.b32.xlu0 %v126, 86
    %v128 = vpop.permute.xlu0 %127
    %vm129 = vcmask 720560
    %130 = vst.msk [vmem:[#allocation0] sm:$0x1] %vm129, %v128
    %s131 = scalar_lea.vmem %s0, 42
    %v132 = vld [vmem:[%s131] sm:$0x1]
    %133 = vrot.lane.b32.xlu0 %v132, 84
    %v134 = vpop.permute.xlu0 %133
    %vm135 = vcmask 704160
    %136 = vst.msk [vmem:[#allocation0] sm:$0x1] %vm135, %v134
    %s137 = scalar_lea.vmem %s0, 41
    %v138 = vld [vmem:[%s137] sm:$0x1]
    %139 = vrot.lane.b32.xlu0 %v138, 82
    %v140 = vpop.permute.xlu0 %139
    %vm141 = vcmask 687760
    %142 = vst.msk [vmem:[#allocation0] sm:$0x1] %vm141, %v140
    %s143 = scalar_lea.vmem %s0, 40
    %v144 = vld [vmem:[%s143] sm:$0x1]
    %145 = vrot.lane.b32.xlu0 %v144, 80
    %v146 = vpop.permute.xlu0 %145
    %vm147 = vcmask 671360
    %148 = vst.msk [vmem:[#allocation0] sm:$0x1] %vm147, %v146
    %s149 = scalar_lea.vmem %s0, 39
    %v150 = vld [vmem:[%s149] sm:$0x1]
    %151 = vrot.lane.b32.xlu0 %v150, 78
    %v152 = vpop.permute.xlu0 %151
    %vm153 = vcmask 654960
    %154 = vst.msk [vmem:[#allocation0] sm:$0x1] %vm153, %v152
    %s155 = scalar_lea.vmem %s0, 38
    %v156 = vld [vmem:[%s155] sm:$0x1]
    %157 = vrot.lane.b32.xlu0 %v156, 76
    %v158 = vpop.permute.xlu0 %157
    %vm159 = vcmask 638560
    %160 = vst.msk [vmem:[#allocation0] sm:$0x1] %vm159, %v158
    %s161 = scalar_lea.vmem %s0, 37
    %v162 = vld [vmem:[%s161] sm:$0x1]
    %163 = vrot.lane.b32.xlu0 %v162, 74
    %v164 = vpop.permute.xlu0 %163
    %vm165 = vcmask 622160
    %166 = vst.msk [vmem:[#allocation0] sm:$0x1] %vm165, %v164
    %s167 = scalar_lea.vmem %s0, 36
    %v168 = vld [vmem:[%s167] sm:$0x1]
    %169 = vrot.lane.b32.xlu0 %v168, 72
    %v170 = vpop.permute.xlu0 %169
    %vm171 = vcmask 605760
    %172 = vst.msk [vmem:[#allocation0] sm:$0x1] %vm171, %v170
    %s173 = scalar_lea.vmem %s0, 35
    %v174 = vld [vmem:[%s173] sm:$0x1]
    %175 = vrot.lane.b32.xlu0 %v174, 70
    %v176 = vpop.permute.xlu0 %175
    %vm177 = vcmask 589360
    %178 = vst.msk [vmem:[#allocation0] sm:$0x1] %vm177, %v176
    %s179 = scalar_lea.vmem %s0, 34
    %v180 = vld [vmem:[%s179] sm:$0x1]
    %181 = vrot.lane.b32.xlu0 %v180, 68
    %v182 = vpop.permute.xlu0 %181
    %vm183 = vcmask 572960
    %184 = vst.msk [vmem:[#allocation0] sm:$0x1] %vm183, %v182
    %s185 = scalar_lea.vmem %s0, 33
    %v186 = vld [vmem:[%s185] sm:$0x1]
    %187 = vrot.lane.b32.xlu0 %v186, 66
    %v188 = vpop.permute.xlu0 %187
    %vm189 = vcmask 556560
    %190 = vst.msk [vmem:[#allocation0] sm:$0x1] %vm189, %v188
    %s191 = scalar_lea.vmem %s0, 32
    %v192 = vld [vmem:[%s191] sm:$0x1]
    %193 = vrot.lane.b32.xlu0 %v192, 64
    %v194 = vpop.permute.xlu0 %193
    %vm195 = vcmask 540160
    %196 = vst.msk [vmem:[#allocation0] sm:$0x1] %vm195, %v194
    %s197 = scalar_lea.vmem %s0, 31
    %v198 = vld [vmem:[%s197] sm:$0x1]
    %199 = vrot.lane.b32.xlu0 %v198, 62
    %v200 = vpop.permute.xlu0 %199
    %vm201 = vcmask 523760
    %202 = vst.msk [vmem:[#allocation0] sm:$0x1] %vm201, %v200
    %s203 = scalar_lea.vmem %s0, 30
    %v204 = vld [vmem:[%s203] sm:$0x1]
    %205 = vrot.lane.b32.xlu0 %v204, 60
    %v206 = vpop.permute.xlu0 %205
    %vm207 = vcmask 507360
    %208 = vst.msk [vmem:[#allocation0] sm:$0x1] %vm207, %v206
    %s209 = scalar_lea.vmem %s0, 29
    %v210 = vld [vmem:[%s209] sm:$0x1]
    %211 = vrot.lane.b32.xlu0 %v210, 58
    %v212 = vpop.permute.xlu0 %211
    %vm213 = vcmask 490960
    %214 = vst.msk [vmem:[#allocation0] sm:$0x1] %vm213, %v212
    %s215 = scalar_lea.vmem %s0, 28
    %v216 = vld [vmem:[%s215] sm:$0x1]
    %217 = vrot.lane.b32.xlu0 %v216, 56
    %v218 = vpop.permute.xlu0 %217
    %vm219 = vcmask 474560
    %220 = vst.msk [vmem:[#allocation0] sm:$0x1] %vm219, %v218
    %s221 = scalar_lea.vmem %s0, 27
    %v222 = vld [vmem:[%s221] sm:$0x1]
    %223 = vrot.lane.b32.xlu0 %v222, 54
    %v224 = vpop.permute.xlu0 %223
    %vm225 = vcmask 458160
    %226 = vst.msk [vmem:[#allocation0] sm:$0x1] %vm225, %v224
    %s227 = scalar_lea.vmem %s0, 26
    %v228 = vld [vmem:[%s227] sm:$0x1]
    %229 = vrot.lane.b32.xlu0 %v228, 52
    %v230 = vpop.permute.xlu0 %229
    %vm231 = vcmask 441760
    %232 = vst.msk [vmem:[#allocation0] sm:$0x1] %vm231, %v230
    %s233 = scalar_lea.vmem %s0, 25
    %v234 = vld [vmem:[%s233] sm:$0x1]
    %235 = vrot.lane.b32.xlu0 %v234, 50
    %v236 = vpop.permute.xlu0 %235
    %vm237 = vcmask 425360
    %238 = vst.msk [vmem:[#allocation0] sm:$0x1] %vm237, %v236
    %s239 = scalar_lea.vmem %s0, 24
    %v240 = vld [vmem:[%s239] sm:$0x1]
    %241 = vrot.lane.b32.xlu0 %v240, 48
    %v242 = vpop.permute.xlu0 %241
    %vm243 = vcmask 408960
    %244 = vst.msk [vmem:[#allocation0] sm:$0x1] %vm243, %v242
    %s245 = scalar_lea.vmem %s0, 23
    %v246 = vld [vmem:[%s245] sm:$0x1]
    %247 = vrot.lane.b32.xlu0 %v246, 46
    %v248 = vpop.permute.xlu0 %247
    %vm249 = vcmask 392560
    %250 = vst.msk [vmem:[#allocation0] sm:$0x1] %vm249, %v248
    %s251 = scalar_lea.vmem %s0, 22
    %v252 = vld [vmem:[%s251] sm:$0x1]
    %253 = vrot.lane.b32.xlu0 %v252, 44
    %v254 = vpop.permute.xlu0 %253
    %vm255 = vcmask 376160
    %256 = vst.msk [vmem:[#allocation0] sm:$0x1] %vm255, %v254
    %s257 = scalar_lea.vmem %s0, 21
    %v258 = vld [vmem:[%s257] sm:$0x1]
    %259 = vrot.lane.b32.xlu0 %v258, 42
    %v260 = vpop.permute.xlu0 %259
    %vm261 = vcmask 359760
    %262 = vst.msk [vmem:[#allocation0] sm:$0x1] %vm261, %v260
    %s263 = scalar_lea.vmem %s0, 20
    %v264 = vld [vmem:[%s263] sm:$0x1]
    %265 = vrot.lane.b32.xlu0 %v264, 40
    %v266 = vpop.permute.xlu0 %265
    %vm267 = vcmask 343360
    %268 = vst.msk [vmem:[#allocation0] sm:$0x1] %vm267, %v266
    %s269 = scalar_lea.vmem %s0, 19
    %v270 = vld [vmem:[%s269] sm:$0x1]
    %271 = vrot.lane.b32.xlu0 %v270, 38
    %v272 = vpop.permute.xlu0 %271
    %vm273 = vcmask 326960
    %274 = vst.msk [vmem:[#allocation0] sm:$0x1] %vm273, %v272
    %s275 = scalar_lea.vmem %s0, 18
    %v276 = vld [vmem:[%s275] sm:$0x1]
    %277 = vrot.lane.b32.xlu0 %v276, 36
    %v278 = vpop.permute.xlu0 %277
    %vm279 = vcmask 310560
    %280 = vst.msk [vmem:[#allocation0] sm:$0x1] %vm279, %v278
    %s281 = scalar_lea.vmem %s0, 17
    %v282 = vld [vmem:[%s281] sm:$0x1]
    %283 = vrot.lane.b32.xlu0 %v282, 34
    %v284 = vpop.permute.xlu0 %283
    %vm285 = vcmask 294160
    %286 = vst.msk [vmem:[#allocation0] sm:$0x1] %vm285, %v284
    %s287 = scalar_lea.vmem %s0, 16
    %v288 = vld [vmem:[%s287] sm:$0x1]
    %289 = vrot.lane.b32.xlu0 %v288, 32
    %v290 = vpop.permute.xlu0 %289
    %vm291 = vcmask 277760
    %292 = vst.msk [vmem:[#allocation0] sm:$0x1] %vm291, %v290
    %s293 = scalar_lea.vmem %s0, 15
    %v294 = vld [vmem:[%s293] sm:$0x1]
    %295 = vrot.lane.b32.xlu0 %v294, 30
    %v296 = vpop.permute.xlu0 %295
    %vm297 = vcmask 261360
    %298 = vst.msk [vmem:[#allocation0] sm:$0x1] %vm297, %v296
    %s299 = scalar_lea.vmem %s0, 14
    %v300 = vld [vmem:[%s299] sm:$0x1]
    %301 = vrot.lane.b32.xlu0 %v300, 28
    %v302 = vpop.permute.xlu0 %301
    %vm303 = vcmask 244960
    %304 = vst.msk [vmem:[#allocation0] sm:$0x1] %vm303, %v302
    %s305 = scalar_lea.vmem %s0, 13
    %v306 = vld [vmem:[%s305] sm:$0x1]
    %307 = vrot.lane.b32.xlu0 %v306, 26
    %v308 = vpop.permute.xlu0 %307
    %vm309 = vcmask 228560
    %310 = vst.msk [vmem:[#allocation0] sm:$0x1] %vm309, %v308
    %s311 = scalar_lea.vmem %s0, 12
    %v312 = vld [vmem:[%s311] sm:$0x1]
    %313 = vrot.lane.b32.xlu0 %v312, 24
    %v314 = vpop.permute.xlu0 %313
    %vm315 = vcmask 212160
    %316 = vst.msk [vmem:[#allocation0] sm:$0x1] %vm315, %v314
    %s317 = scalar_lea.vmem %s0, 11
    %v318 = vld [vmem:[%s317] sm:$0x1]
    %319 = vrot.lane.b32.xlu0 %v318, 22
    %v320 = vpop.permute.xlu0 %319
    %vm321 = vcmask 195760
    %322 = vst.msk [vmem:[#allocation0] sm:$0x1] %vm321, %v320
    %s323 = scalar_lea.vmem %s0, 10
    %v324 = vld [vmem:[%s323] sm:$0x1]
    %325 = vrot.lane.b32.xlu0 %v324, 20
    %v326 = vpop.permute.xlu0 %325
    %vm327 = vcmask 179360
    %328 = vst.msk [vmem:[#allocation0] sm:$0x1] %vm327, %v326
    %s329 = scalar_lea.vmem %s0, 9
    %v330 = vld [vmem:[%s329] sm:$0x1]
    %331 = vrot.lane.b32.xlu0 %v330, 18
    %v332 = vpop.permute.xlu0 %331
    %vm333 = vcmask 162960
    %334 = vst.msk [vmem:[#allocation0] sm:$0x1] %vm333, %v332
    %s335 = scalar_lea.vmem %s0, 8
    %v336 = vld [vmem:[%s335] sm:$0x1]
    %337 = vrot.lane.b32.xlu0 %v336, 16
    %v338 = vpop.permute.xlu0 %337
    %vm339 = vcmask 146560
    %340 = vst.msk [vmem:[#allocation0] sm:$0x1] %vm339, %v338
    %s341 = scalar_lea.vmem %s0, 7
    %v342 = vld [vmem:[%s341] sm:$0x1]
    %343 = vrot.lane.b32.xlu0 %v342, 14
    %v344 = vpop.permute.xlu0 %343
    %vm345 = vcmask 130160
    %346 = vst.msk [vmem:[#allocation0] sm:$0x1] %vm345, %v344
    %s347 = scalar_lea.vmem %s0, 6
    %v348 = vld [vmem:[%s347] sm:$0x1]
    %349 = vrot.lane.b32.xlu0 %v348, 12
    %v350 = vpop.permute.xlu0 %349
    %vm351 = vcmask 113760
    %352 = vst.msk [vmem:[#allocation0] sm:$0x1] %vm351, %v350
    %s353 = scalar_lea.vmem %s0, 5
    %v354 = vld [vmem:[%s353] sm:$0x1]
    %355 = vrot.lane.b32.xlu0 %v354, 10
    %v356 = vpop.permute.xlu0 %355
    %vm357 = vcmask 97360
    %358 = vst.msk [vmem:[#allocation0] sm:$0x1] %vm357, %v356
    %s359 = scalar_lea.vmem %s0, 4
    %v360 = vld [vmem:[%s359] sm:$0x1]
    %361 = vrot.lane.b32.xlu0 %v360, 8
    %v362 = vpop.permute.xlu0 %361
    %vm363 = vcmask 80960
    %364 = vst.msk [vmem:[#allocation0] sm:$0x1] %vm363, %v362
    %s365 = scalar_lea.vmem %s0, 3
    %v366 = vld [vmem:[%s365] sm:$0x1]
    %367 = vrot.lane.b32.xlu0 %v366, 6
    %v368 = vpop.permute.xlu0 %367
    %vm369 = vcmask 64560
    %370 = vst.msk [vmem:[#allocation0] sm:$0x1] %vm369, %v368
    %s371 = scalar_lea.vmem %s0, 2
    %v372 = vld [vmem:[%s371] sm:$0x1]
    %373 = vrot.lane.b32.xlu0 %v372, 4
    %v374 = vpop.permute.xlu0 %373
    %vm375 = vcmask 48160
    %376 = vst.msk [vmem:[#allocation0] sm:$0x1] %vm375, %v374
    %s377 = scalar_lea.vmem %s0, 1
    %v378 = vld [vmem:[%s377] sm:$0x1]
    %379 = vrot.lane.b32.xlu0 %v378, 2
    %v380 = vpop.permute.xlu0 %379
    %vm381 = vcmask 31760
    %382 = vst.msk [vmem:[#allocation0] sm:$0x1] %vm381, %v380
    %s384 = sshllo.u32 0, 1
    %v386 = vld [vmem:[#allocation0] sm:%s384]
    %s387 = sshllo.u32 0, 1
    %388 = vst [vmem:[%s1] sm:%s387] %v386

// kernel: fastfc_forward.18
$region0: #{fastfc_forward.18}
  #allocation0 [shape = 'u32[]', space=smem, size = 0x4, offset = 0x4, fixed_abs, tag = 'smem constant byte address 0x4 - core index']
  #allocation1 [shape = 'u32[144,128]{1,0:T(1,128)}', space=vmem, size = 0x12000, scoped, tag = 'internal scratch']
  %s0 = inlined_call_operand.vmem [shape: f32[8,128], index: 0, kind: input, shape index: {}]
  %s1 = inlined_call_operand.vmem [shape: f32[1,128], index: 1, kind: output, shape index: {0}]
  %s2 = inlined_call_operand.vmem [shape: f32[1,128], index: 2, kind: output, shape index: {1}]
  %3 = xla_tuple %s1, %s2
  %s4 = sld [smem:[#allocation0]]
  $region26: #{fastfc_forward.18} parent=0
    _
  %s6 = ssub.s32 1, %s4
  %s7 = scalar_select 0, %s6, %s4
  // Predicated region
  $region2: #{fastfc_forward.18} parent=0 // pred_check
    _
  $region3: #{fastfc_forward.18} parent=0 // pred_check_branch
    %9 = sbr.rel (0) target = $region5
  $region4: #{fastfc_forward.18} parent=0 // pred_region
    _
  $region5: #{fastfc_forward.18} parent=0 // pred_fallthru
    _
  %p10 = scmp.eq.s32.totalorder 0, 0
  // Predicated region
  $region6: #{fastfc_forward.18} parent=0 // pred_check
    %p11 = pneg %p10
  $region7: #{fastfc_forward.18} parent=0 // pred_check_branch
    %13 = sbr.rel (%p11) target = $region9
  $region8: #{fastfc_forward.18} parent=0 // pred_region
    %14 = vst [vmem:[%s1] sm:$0x1] 0.0
    %15 = vst [vmem:[%s2] sm:$0x1] 0.0
  $region9: #{fastfc_forward.18} parent=0 // pred_fallthru
    _
  %v16 = vlaneseq
  %v17 = vshrl.u32 %v16, 7
  %s18 = smul.u32 0, 8
  %v19 = vstv %s18
  %v20 = vadd.s32 %v17, %v19
  %vm21 = vcmp.lt.s32.totalorder %v20, 8
  %v22 = vld [vmem:[%s0] sm:$0xff]
  %v23 = vsel %vm21, %v22, 0.0
  %v24 = vld [vmem:[%s1] sm:$0x1]
  %v25 = vrot.slane %v23, 4
  %v26 = vadd.f32 %v23, %v25
  %v27 = vrot.slane %v26, 2
  %v28 = vadd.f32 %v26, %v27
  %v29 = vrot.slane %v28, 1
  %v30 = vadd.f32 %v28, %v29
  %v31 = vadd.f32 %v24, %v30
  %32 = vst [vmem:[%s1] sm:$0x1] %v31
  %v33 = vld [vmem:[%s2] sm:$0x1]
  %v34 = vmul.f32 %v23, %v23
  %v35 = vrot.slane %v34, 4
  %v36 = vadd.f32 %v34, %v35
  %v37 = vrot.slane %v36, 2
  %v38 = vadd.f32 %v36, %v37
  %v39 = vrot.slane %v38, 1
  %v40 = vadd.f32 %v38, %v39
  %v41 = vadd.f32 %v33, %v40
  %42 = vst [vmem:[%s2] sm:$0x1] %v41
  // Predicated region
  $region10: #{fastfc_forward.18} parent=0 // pred_check
    _
  $region11: #{fastfc_forward.18} parent=0 // pred_check_branch
    %44 = sbr.rel (0) target = $region13
  $region12: #{fastfc_forward.18} parent=0 // pred_region
    _
  $region13: #{fastfc_forward.18} parent=0 // pred_fallthru
    _
  // Predicated region
  $region14: #{fastfc_forward.18} parent=0 // pred_check
    _
  $region15: #{fastfc_forward.18} parent=0 // pred_check_branch
    %46 = sbr.rel (0) target = $region17
  $region16: #{fastfc_forward.18} parent=0 // pred_region
    _
  $region17: #{fastfc_forward.18} parent=0 // pred_fallthru
    _
  // Predicated region
  $region18: #{fastfc_forward.18} parent=0 // pred_check
    _
  $region19: #{fastfc_forward.18} parent=0 // pred_check_branch
    %48 = sbr.rel (0) target = $region21
  $region20: #{fastfc_forward.18} parent=0 // pred_region
    _
  $region21: #{fastfc_forward.18} parent=0 // pred_fallthru
    _
  // Predicated region
  $region22: #{fastfc_forward.18} parent=0 // pred_check
    _
  $region23: #{fastfc_forward.18} parent=0 // pred_check_branch
    %50 = sbr.rel (0) target = $region25
  $region24: #{fastfc_forward.18} parent=0 // pred_region
    _
  $region25: #{fastfc_forward.18} parent=0 // pred_fallthru
    _

// kernel: fastfc_forward.17
$region0: #{fastfc_forward.17}
  #allocation0 [shape = 'u32[]', space=smem, size = 0x4, offset = 0x4, fixed_abs, tag = 'smem constant byte address 0x4 - core index']
  #allocation1 [shape = 'u32[144,128]{1,0:T(1,128)}', space=vmem, size = 0x12000, scoped, tag = 'internal scratch']
  %s0 = inlined_call_operand.vmem [shape: f32[512,4], index: 0, kind: input, shape index: {}]
  %s1 = inlined_call_operand.vmem [shape: bf16[4,2], index: 1, kind: input, shape index: {}]
  %s2 = inlined_call_operand.vmem [shape: f32[1,2], index: 2, kind: input, shape index: {}]
  %s3 = inlined_call_operand.vmem [shape: f32[512,2], index: 3, kind: output, shape index: {}]
  %s4 = sld [smem:[#allocation0]]
  $region22: #{fastfc_forward.17} parent=0
    _
  %s6 = ssub.s32 1, %s4
  %s7 = scalar_select 0, %s6, %s4
  // Predicated region
  $region2: #{fastfc_forward.17} parent=0 // pred_check
    _
  $region3: #{fastfc_forward.17} parent=0 // pred_check_branch
    %9 = sbr.rel (0) target = $region5
  $region4: #{fastfc_forward.17} parent=0 // pred_region
    _
  $region5: #{fastfc_forward.17} parent=0 // pred_fallthru
    _
  // Predicated region
  $region6: #{fastfc_forward.17} parent=0 // pred_check
    _
  $region7: #{fastfc_forward.17} parent=0 // pred_check_branch
    %11 = sbr.rel (0) target = $region9
  $region8: #{fastfc_forward.17} parent=0 // pred_region
    _
  $region9: #{fastfc_forward.17} parent=0 // pred_fallthru
    _
  // Predicated region
  $region10: #{fastfc_forward.17} parent=0 // pred_check
    _
  $region11: #{fastfc_forward.17} parent=0 // pred_check_branch
    %13 = sbr.rel (0) target = $region13
  $region12: #{fastfc_forward.17} parent=0 // pred_region
    _
  $region13: #{fastfc_forward.17} parent=0 // pred_fallthru
    _
  %v15 = vld [vmem:[%s0] sm:$0xff]
  %v16 = vld [vmem:[%s0 + $0x8] sm:$0xff]
  %v17 = vld [vmem:[%s0 + $0x10] sm:$0xff]
  %v18 = vld [vmem:[%s0 + $0x18] sm:$0xff]
  %v19 = vld [vmem:[%s0 + $0x20] sm:$0xff]
  %v20 = vld [vmem:[%s0 + $0x28] sm:$0xff]
  %v21 = vld [vmem:[%s0 + $0x30] sm:$0xff]
  %v22 = vld [vmem:[%s0 + $0x38] sm:$0xff]
  %v23 = vld [vmem:[%s0 + $0x40] sm:$0xff]
  %v24 = vld [vmem:[%s0 + $0x48] sm:$0xff]
  %v25 = vld [vmem:[%s0 + $0x50] sm:$0xff]
  %v26 = vld [vmem:[%s0 + $0x58] sm:$0xff]
  %v27 = vld [vmem:[%s0 + $0x60] sm:$0xff]
  %v28 = vld [vmem:[%s0 + $0x68] sm:$0xff]
  %v29 = vld [vmem:[%s0 + $0x70] sm:$0xff]
  %v30 = vld [vmem:[%s0 + $0x78] sm:$0xff]
  %v31 = vld [vmem:[%s0 + $0x80] sm:$0xff]
  %v32 = vld [vmem:[%s0 + $0x88] sm:$0xff]
  %v33 = vld [vmem:[%s0 + $0x90] sm:$0xff]
  %v34 = vld [vmem:[%s0 + $0x98] sm:$0xff]
  %v35 = vld [vmem:[%s0 + $0xa0] sm:$0xff]
  %v36 = vld [vmem:[%s0 + $0xa8] sm:$0xff]
  %v37 = vld [vmem:[%s0 + $0xb0] sm:$0xff]
  %v38 = vld [vmem:[%s0 + $0xb8] sm:$0xff]
  %v39 = vld [vmem:[%s0 + $0xc0] sm:$0xff]
  %v40 = vld [vmem:[%s0 + $0xc8] sm:$0xff]
  %v41 = vld [vmem:[%s0 + $0xd0] sm:$0xff]
  %v42 = vld [vmem:[%s0 + $0xd8] sm:$0xff]
  %v43 = vld [vmem:[%s0 + $0xe0] sm:$0xff]
  %v44 = vld [vmem:[%s0 + $0xe8] sm:$0xff]
  %v45 = vld [vmem:[%s0 + $0xf0] sm:$0xff]
  %v46 = vld [vmem:[%s0 + $0xf8] sm:$0xff]
  %v47 = vld [vmem:[%s0 + $0x100] sm:$0xff]
  %v48 = vld [vmem:[%s0 + $0x108] sm:$0xff]
  %v49 = vld [vmem:[%s0 + $0x110] sm:$0xff]
  %v50 = vld [vmem:[%s0 + $0x118] sm:$0xff]
  %v51 = vld [vmem:[%s0 + $0x120] sm:$0xff]
  %v52 = vld [vmem:[%s0 + $0x128] sm:$0xff]
  %v53 = vld [vmem:[%s0 + $0x130] sm:$0xff]
  %v54 = vld [vmem:[%s0 + $0x138] sm:$0xff]
  %v55 = vld [vmem:[%s0 + $0x140] sm:$0xff]
  %v56 = vld [vmem:[%s0 + $0x148] sm:$0xff]
  %v57 = vld [vmem:[%s0 + $0x150] sm:$0xff]
  %v58 = vld [vmem:[%s0 + $0x158] sm:$0xff]
  %v59 = vld [vmem:[%s0 + $0x160] sm:$0xff]
  %v60 = vld [vmem:[%s0 + $0x168] sm:$0xff]
  %v61 = vld [vmem:[%s0 + $0x170] sm:$0xff]
  %v62 = vld [vmem:[%s0 + $0x178] sm:$0xff]
  %v63 = vld [vmem:[%s0 + $0x180] sm:$0xff]
  %v64 = vld [vmem:[%s0 + $0x188] sm:$0xff]
  %v65 = vld [vmem:[%s0 + $0x190] sm:$0xff]
  %v66 = vld [vmem:[%s0 + $0x198] sm:$0xff]
  %v67 = vld [vmem:[%s0 + $0x1a0] sm:$0xff]
  %v68 = vld [vmem:[%s0 + $0x1a8] sm:$0xff]
  %v69 = vld [vmem:[%s0 + $0x1b0] sm:$0xff]
  %v70 = vld [vmem:[%s0 + $0x1b8] sm:$0xff]
  %v71 = vld [vmem:[%s0 + $0x1c0] sm:$0xff]
  %v72 = vld [vmem:[%s0 + $0x1c8] sm:$0xff]
  %v73 = vld [vmem:[%s0 + $0x1d0] sm:$0xff]
  %v74 = vld [vmem:[%s0 + $0x1d8] sm:$0xff]
  %v75 = vld [vmem:[%s0 + $0x1e0] sm:$0xff]
  %v76 = vld [vmem:[%s0 + $0x1e8] sm:$0xff]
  %v77 = vld [vmem:[%s0 + $0x1f0] sm:$0xff]
  %v78 = vld [vmem:[%s0 + $0x1f8] sm:$0xff]
  %v79 = vpack.c.bf16 %v16, %v15
  %v80 = vpack.c.bf16 %v18, %v17
  %v81 = vpack.c.bf16 %v20, %v19
  %v82 = vpack.c.bf16 %v22, %v21
  %v83 = vpack.c.bf16 %v24, %v23
  %v84 = vpack.c.bf16 %v26, %v25
  %v85 = vpack.c.bf16 %v28, %v27
  %v86 = vpack.c.bf16 %v30, %v29
  %v87 = vpack.c.bf16 %v32, %v31
  %v88 = vpack.c.bf16 %v34, %v33
  %v89 = vpack.c.bf16 %v36, %v35
  %v90 = vpack.c.bf16 %v38, %v37
  %v91 = vpack.c.bf16 %v40, %v39
  %v92 = vpack.c.bf16 %v42, %v41
  %v93 = vpack.c.bf16 %v44, %v43
  %v94 = vpack.c.bf16 %v46, %v45
  %v95 = vpack.c.bf16 %v48, %v47
  %v96 = vpack.c.bf16 %v50, %v49
  %v97 = vpack.c.bf16 %v52, %v51
  %v98 = vpack.c.bf16 %v54, %v53
  %v99 = vpack.c.bf16 %v56, %v55
  %v100 = vpack.c.bf16 %v58, %v57
  %v101 = vpack.c.bf16 %v60, %v59
  %v102 = vpack.c.bf16 %v62, %v61
  %v103 = vpack.c.bf16 %v64, %v63
  %v104 = vpack.c.bf16 %v66, %v65
  %v105 = vpack.c.bf16 %v68, %v67
  %v106 = vpack.c.bf16 %v70, %v69
  %v107 = vpack.c.bf16 %v72, %v71
  %v108 = vpack.c.bf16 %v74, %v73
  %v109 = vpack.c.bf16 %v76, %v75
  %v110 = vpack.c.bf16 %v78, %v77
  %v111 = vld [vmem:[%s1] sm:$0x3]
  %v112 = vld [vmem:[%s2] sm:$0x1]
  %v114 = vlaneseq
  %v115 = vshrl.u32 %v114, 7
  %v116 = vsub.s32 0, %v115
  %v117 = vrot.slane %v112, %v116
  %vm119 = vcmask 31744
  %v121 = vsel %vm119, %v79, 0
  %v124 = vsel %vm119, %v80, 0
  %v127 = vsel %vm119, %v81, 0
  %v130 = vsel %vm119, %v82, 0
  %v133 = vsel %vm119, %v83, 0
  %v136 = vsel %vm119, %v84, 0
  %v139 = vsel %vm119, %v85, 0
  %v142 = vsel %vm119, %v86, 0
  %v145 = vsel %vm119, %v87, 0
  %v148 = vsel %vm119, %v88, 0
  %v151 = vsel %vm119, %v89, 0
  %v154 = vsel %vm119, %v90, 0
  %v157 = vsel %vm119, %v91, 0
  %v160 = vsel %vm119, %v92, 0
  %v163 = vsel %vm119, %v93, 0
  %v166 = vsel %vm119, %v94, 0
  %v169 = vsel %vm119, %v95, 0
  %v172 = vsel %vm119, %v96, 0
  %v175 = vsel %vm119, %v97, 0
  %v178 = vsel %vm119, %v98, 0
  %v181 = vsel %vm119, %v99, 0
  %v184 = vsel %vm119, %v100, 0
  %v187 = vsel %vm119, %v101, 0
  %v190 = vsel %vm119, %v102, 0
  %v193 = vsel %vm119, %v103, 0
  %v196 = vsel %vm119, %v104, 0
  %v199 = vsel %vm119, %v105, 0
  %v202 = vsel %vm119, %v106, 0
  %v205 = vsel %vm119, %v107, 0
  %v208 = vsel %vm119, %v108, 0
  %v211 = vsel %vm119, %v109, 0
  %v214 = vsel %vm119, %v110, 0
  %vm216 = vcmask 1041408
  %v218 = vsel %vm216, %v111, 0
  %220 = vmatprep.subr.bf16.mxu0 0
  %221 = vmatpush1.bf16.msra.mxu0 %v218
  %222 = vmatprep.subr.bf16.mxu0 0
  %223 = vmatpush1.bf16.msra.mxu0 0
  %224 = vmatprep.subr.bf16.mxu0 0
  %225 = vmatpush1.bf16.msra.mxu0 0
  %226 = vmatprep.subr.bf16.mxu0 0
  %227 = vmatpush1.bf16.msra.mxu0 0
  %228 = vmatprep.subr.bf16.mxu0 0
  %229 = vmatpush1.bf16.msra.mxu0 0
  %230 = vmatprep.subr.bf16.mxu0 0
  %231 = vmatpush1.bf16.msra.mxu0 0
  %232 = vmatprep.subr.bf16.mxu0 0
  %233 = vmatpush1.bf16.msra.mxu0 0
  %234 = vmatprep.subr.bf16.mxu0 0
  %235 = vmatpush1.bf16.msra.mxu0 0
  %236 = vmatprep.subr.bf16.mxu0 0
  %237 = vmatpush1.bf16.msra.mxu0 0
  %238 = vmatprep.subr.bf16.mxu0 0
  %239 = vmatpush1.bf16.msra.mxu0 0
  %240 = vmatprep.subr.bf16.mxu0 0
  %241 = vmatpush1.bf16.msra.mxu0 0
  %242 = vmatprep.subr.bf16.mxu0 0
  %243 = vmatpush1.bf16.msra.mxu0 0
  %244 = vmatprep.subr.bf16.mxu0 0
  %245 = vmatpush1.bf16.msra.mxu0 0
  %246 = vmatprep.subr.bf16.mxu0 0
  %247 = vmatpush1.bf16.msra.mxu0 0
  %248 = vmatprep.subr.bf16.mxu0 0
  %249 = vmatpush1.bf16.msra.mxu0 0
  %250 = vmatprep.subr.bf16.mxu0 0
  %251 = vmatpush1.bf16.msra.mxu0 0
  %252 = vmatprep.mubr.bf16.mxu0 0
  %253 = vmatmul.mubr.bf16.gmra.mrb[0].mxu0 %v121
  %v254 = vpop.f32.mrb[0].mxu0
  %v255 = vadd.f32 %v117, %v254
  %v256 = vpop.f32.mrb[0].mxu0
  %v257 = vpop.f32.mrb[0].mxu0
  %v258 = vadd.f32 %v117, %v257
  %v259 = vpop.f32.mrb[0].mxu0
  %260 = vmatprep.mubr.bf16.mxu0 0
  %261 = vmatmul.mubr.bf16.gmra.mrb[0].mxu0 %v124
  %v262 = vpop.f32.mrb[0].mxu0
  %v263 = vadd.f32 %v117, %v262
  %v264 = vpop.f32.mrb[0].mxu0
  %v265 = vpop.f32.mrb[0].mxu0
  %v266 = vadd.f32 %v117, %v265
  %v267 = vpop.f32.mrb[0].mxu0
  %268 = vmatprep.mubr.bf16.mxu0 0
  %269 = vmatmul.mubr.bf16.gmra.mrb[0].mxu0 %v127
  %v270 = vpop.f32.mrb[0].mxu0
  %v271 = vadd.f32 %v117, %v270
  %v272 = vpop.f32.mrb[0].mxu0
  %v273 = vpop.f32.mrb[0].mxu0
  %v274 = vadd.f32 %v117, %v273
  %v275 = vpop.f32.mrb[0].mxu0
  %276 = vmatprep.mubr.bf16.mxu0 0
  %277 = vmatmul.mubr.bf16.gmra.mrb[0].mxu0 %v130
  %v278 = vpop.f32.mrb[0].mxu0
  %v279 = vadd.f32 %v117, %v278
  %v280 = vpop.f32.mrb[0].mxu0
  %v281 = vpop.f32.mrb[0].mxu0
  %v282 = vadd.f32 %v117, %v281
  %v283 = vpop.f32.mrb[0].mxu0
  %284 = vmatprep.mubr.bf16.mxu0 0
  %285 = vmatmul.mubr.bf16.gmra.mrb[0].mxu0 %v133
  %v286 = vpop.f32.mrb[0].mxu0
  %v287 = vadd.f32 %v117, %v286
  %v288 = vpop.f32.mrb[0].mxu0
  %v289 = vpop.f32.mrb[0].mxu0
  %v290 = vadd.f32 %v117, %v289
  %v291 = vpop.f32.mrb[0].mxu0
  %292 = vmatprep.mubr.bf16.mxu0 0
  %293 = vmatmul.mubr.bf16.gmra.mrb[0].mxu0 %v136
  %v294 = vpop.f32.mrb[0].mxu0
  %v295 = vadd.f32 %v117, %v294
  %v296 = vpop.f32.mrb[0].mxu0
  %v297 = vpop.f32.mrb[0].mxu0
  %v298 = vadd.f32 %v117, %v297
  %v299 = vpop.f32.mrb[0].mxu0
  %300 = vmatprep.mubr.bf16.mxu0 0
  %301 = vmatmul.mubr.bf16.gmra.mrb[0].mxu0 %v139
  %v302 = vpop.f32.mrb[0].mxu0
  %v303 = vadd.f32 %v117, %v302
  %v304 = vpop.f32.mrb[0].mxu0
  %v305 = vpop.f32.mrb[0].mxu0
  %v306 = vadd.f32 %v117, %v305
  %v307 = vpop.f32.mrb[0].mxu0
  %308 = vmatprep.mubr.bf16.mxu0 0
  %309 = vmatmul.mubr.bf16.gmra.mrb[0].mxu0 %v142
  %v310 = vpop.f32.mrb[0].mxu0
  %v311 = vadd.f32 %v117, %v310
  %v312 = vpop.f32.mrb[0].mxu0
  %v313 = vpop.f32.mrb[0].mxu0
  %v314 = vadd.f32 %v117, %v313
  %v315 = vpop.f32.mrb[0].mxu0
  %316 = vmatprep.mubr.bf16.mxu0 0
  %317 = vmatmul.mubr.bf16.gmra.mrb[0].mxu0 %v145
  %v318 = vpop.f32.mrb[0].mxu0
  %v319 = vadd.f32 %v117, %v318
  %v320 = vpop.f32.mrb[0].mxu0
  %v321 = vpop.f32.mrb[0].mxu0
  %v322 = vadd.f32 %v117, %v321
  %v323 = vpop.f32.mrb[0].mxu0
  %324 = vmatprep.mubr.bf16.mxu0 0
  %325 = vmatmul.mubr.bf16.gmra.mrb[0].mxu0 %v148
  %v326 = vpop.f32.mrb[0].mxu0
  %v327 = vadd.f32 %v117, %v326
  %v328 = vpop.f32.mrb[0].mxu0
  %v329 = vpop.f32.mrb[0].mxu0
  %v330 = vadd.f32 %v117, %v329
  %v331 = vpop.f32.mrb[0].mxu0
  %332 = vmatprep.mubr.bf16.mxu0 0
  %333 = vmatmul.mubr.bf16.gmra.mrb[0].mxu0 %v151
  %v334 = vpop.f32.mrb[0].mxu0
  %v335 = vadd.f32 %v117, %v334
  %v336 = vpop.f32.mrb[0].mxu0
  %v337 = vpop.f32.mrb[0].mxu0
  %v338 = vadd.f32 %v117, %v337
  %v339 = vpop.f32.mrb[0].mxu0
  %340 = vmatprep.mubr.bf16.mxu0 0
  %341 = vmatmul.mubr.bf16.gmra.mrb[0].mxu0 %v154
  %v342 = vpop.f32.mrb[0].mxu0
  %v343 = vadd.f32 %v117, %v342
  %v344 = vpop.f32.mrb[0].mxu0
  %v345 = vpop.f32.mrb[0].mxu0
  %v346 = vadd.f32 %v117, %v345
  %v347 = vpop.f32.mrb[0].mxu0
  %348 = vmatprep.mubr.bf16.mxu0 0
  %349 = vmatmul.mubr.bf16.gmra.mrb[0].mxu0 %v157
  %v350 = vpop.f32.mrb[0].mxu0
  %v351 = vadd.f32 %v117, %v350
  %v352 = vpop.f32.mrb[0].mxu0
  %v353 = vpop.f32.mrb[0].mxu0
  %v354 = vadd.f32 %v117, %v353
  %v355 = vpop.f32.mrb[0].mxu0
  %356 = vmatprep.mubr.bf16.mxu0 0
  %357 = vmatmul.mubr.bf16.gmra.mrb[0].mxu0 %v160
  %v358 = vpop.f32.mrb[0].mxu0
  %v359 = vadd.f32 %v117, %v358
  %v360 = vpop.f32.mrb[0].mxu0
  %v361 = vpop.f32.mrb[0].mxu0
  %v362 = vadd.f32 %v117, %v361
  %v363 = vpop.f32.mrb[0].mxu0
  %364 = vmatprep.mubr.bf16.mxu0 0
  %365 = vmatmul.mubr.bf16.gmra.mrb[0].mxu0 %v163
  %v366 = vpop.f32.mrb[0].mxu0
  %v367 = vadd.f32 %v117, %v366
  %v368 = vpop.f32.mrb[0].mxu0
  %v369 = vpop.f32.mrb[0].mxu0
  %v370 = vadd.f32 %v117, %v369
  %v371 = vpop.f32.mrb[0].mxu0
  %372 = vmatprep.mubr.bf16.mxu0 0
  %373 = vmatmul.mubr.bf16.gmra.mrb[0].mxu0 %v166
  %v374 = vpop.f32.mrb[0].mxu0
  %v375 = vadd.f32 %v117, %v374
  %v376 = vpop.f32.mrb[0].mxu0
  %v377 = vpop.f32.mrb[0].mxu0
  %v378 = vadd.f32 %v117, %v377
  %v379 = vpop.f32.mrb[0].mxu0
  %380 = vmatprep.mubr.bf16.mxu0 0
  %381 = vmatmul.mubr.bf16.gmra.mrb[0].mxu0 %v169
  %v382 = vpop.f32.mrb[0].mxu0
  %v383 = vadd.f32 %v117, %v382
  %v384 = vpop.f32.mrb[0].mxu0
  %v385 = vpop.f32.mrb[0].mxu0
  %v386 = vadd.f32 %v117, %v385
  %v387 = vpop.f32.mrb[0].mxu0
  %388 = vmatprep.mubr.bf16.mxu0 0
  %389 = vmatmul.mubr.bf16.gmra.mrb[0].mxu0 %v172
  %v390 = vpop.f32.mrb[0].mxu0
  %v391 = vadd.f32 %v117, %v390
  %v392 = vpop.f32.mrb[0].mxu0
  %v393 = vpop.f32.mrb[0].mxu0
  %v394 = vadd.f32 %v117, %v393
  %v395 = vpop.f32.mrb[0].mxu0
  %396 = vmatprep.mubr.bf16.mxu0 0
  %397 = vmatmul.mubr.bf16.gmra.mrb[0].mxu0 %v175
  %v398 = vpop.f32.mrb[0].mxu0
  %v399 = vadd.f32 %v117, %v398
  %v400 = vpop.f32.mrb[0].mxu0
  %v401 = vpop.f32.mrb[0].mxu0
  %v402 = vadd.f32 %v117, %v401
  %v403 = vpop.f32.mrb[0].mxu0
  %404 = vmatprep.mubr.bf16.mxu0 0
  %405 = vmatmul.mubr.bf16.gmra.mrb[0].mxu0 %v178
  %v406 = vpop.f32.mrb[0].mxu0
  %v407 = vadd.f32 %v117, %v406
  %v408 = vpop.f32.mrb[0].mxu0
  %v409 = vpop.f32.mrb[0].mxu0
  %v410 = vadd.f32 %v117, %v409
  %v411 = vpop.f32.mrb[0].mxu0
  %412 = vmatprep.mubr.bf16.mxu0 0
  %413 = vmatmul.mubr.bf16.gmra.mrb[0].mxu0 %v181
  %v414 = vpop.f32.mrb[0].mxu0
  %v415 = vadd.f32 %v117, %v414
  %v416 = vpop.f32.mrb[0].mxu0
  %v417 = vpop.f32.mrb[0].mxu0
  %v418 = vadd.f32 %v117, %v417
  %v419 = vpop.f32.mrb[0].mxu0
  %420 = vmatprep.mubr.bf16.mxu0 0
  %421 = vmatmul.mubr.bf16.gmra.mrb[0].mxu0 %v184
  %v422 = vpop.f32.mrb[0].mxu0
  %v423 = vadd.f32 %v117, %v422
  %v424 = vpop.f32.mrb[0].mxu0
  %v425 = vpop.f32.mrb[0].mxu0
  %v426 = vadd.f32 %v117, %v425
  %v427 = vpop.f32.mrb[0].mxu0
  %428 = vmatprep.mubr.bf16.mxu0 0
  %429 = vmatmul.mubr.bf16.gmra.mrb[0].mxu0 %v187
  %v430 = vpop.f32.mrb[0].mxu0
  %v431 = vadd.f32 %v117, %v430
  %v432 = vpop.f32.mrb[0].mxu0
  %v433 = vpop.f32.mrb[0].mxu0
  %v434 = vadd.f32 %v117, %v433
  %v435 = vpop.f32.mrb[0].mxu0
  %436 = vmatprep.mubr.bf16.mxu0 0
  %437 = vmatmul.mubr.bf16.gmra.mrb[0].mxu0 %v190
  %v438 = vpop.f32.mrb[0].mxu0
  %v439 = vadd.f32 %v117, %v438
  %v440 = vpop.f32.mrb[0].mxu0
  %v441 = vpop.f32.mrb[0].mxu0
  %v442 = vadd.f32 %v117, %v441
  %v443 = vpop.f32.mrb[0].mxu0
  %444 = vmatprep.mubr.bf16.mxu0 0
  %445 = vmatmul.mubr.bf16.gmra.mrb[0].mxu0 %v193
  %v446 = vpop.f32.mrb[0].mxu0
  %v447 = vadd.f32 %v117, %v446
  %v448 = vpop.f32.mrb[0].mxu0
  %v449 = vpop.f32.mrb[0].mxu0
  %v450 = vadd.f32 %v117, %v449
  %v451 = vpop.f32.mrb[0].mxu0
  %452 = vmatprep.mubr.bf16.mxu0 0
  %453 = vmatmul.mubr.bf16.gmra.mrb[0].mxu0 %v196
  %v454 = vpop.f32.mrb[0].mxu0
  %v455 = vadd.f32 %v117, %v454
  %v456 = vpop.f32.mrb[0].mxu0
  %v457 = vpop.f32.mrb[0].mxu0
  %v458 = vadd.f32 %v117, %v457
  %v459 = vpop.f32.mrb[0].mxu0
  %460 = vmatprep.mubr.bf16.mxu0 0
  %461 = vmatmul.mubr.bf16.gmra.mrb[0].mxu0 %v199
  %v462 = vpop.f32.mrb[0].mxu0
  %v463 = vadd.f32 %v117, %v462
  %v464 = vpop.f32.mrb[0].mxu0
  %v465 = vpop.f32.mrb[0].mxu0
  %v466 = vadd.f32 %v117, %v465
  %v467 = vpop.f32.mrb[0].mxu0
  %468 = vmatprep.mubr.bf16.mxu0 0
  %469 = vmatmul.mubr.bf16.gmra.mrb[0].mxu0 %v202
  %v470 = vpop.f32.mrb[0].mxu0
  %v471 = vadd.f32 %v117, %v470
  %v472 = vpop.f32.mrb[0].mxu0
  %v473 = vpop.f32.mrb[0].mxu0
  %v474 = vadd.f32 %v117, %v473
  %v475 = vpop.f32.mrb[0].mxu0
  %476 = vmatprep.mubr.bf16.mxu0 0
  %477 = vmatmul.mubr.bf16.gmra.mrb[0].mxu0 %v205
  %v478 = vpop.f32.mrb[0].mxu0
  %v479 = vadd.f32 %v117, %v478
  %v480 = vpop.f32.mrb[0].mxu0
  %v481 = vpop.f32.mrb[0].mxu0
  %v482 = vadd.f32 %v117, %v481
  %v483 = vpop.f32.mrb[0].mxu0
  %484 = vmatprep.mubr.bf16.mxu0 0
  %485 = vmatmul.mubr.bf16.gmra.mrb[0].mxu0 %v208
  %v486 = vpop.f32.mrb[0].mxu0
  %v487 = vadd.f32 %v117, %v486
  %v488 = vpop.f32.mrb[0].mxu0
  %v489 = vpop.f32.mrb[0].mxu0
  %v490 = vadd.f32 %v117, %v489
  %v491 = vpop.f32.mrb[0].mxu0
  %492 = vmatprep.mubr.bf16.mxu0 0
  %493 = vmatmul.mubr.bf16.gmra.mrb[0].mxu0 %v211
  %v494 = vpop.f32.mrb[0].mxu0
  %v495 = vadd.f32 %v117, %v494
  %v496 = vpop.f32.mrb[0].mxu0
  %v497 = vpop.f32.mrb[0].mxu0
  %v498 = vadd.f32 %v117, %v497
  %v499 = vpop.f32.mrb[0].mxu0
  %500 = vmatprep.mubr.bf16.mxu0 0
  %501 = vmatmul.mubr.bf16.gmra.mrb[0].mxu0 %v214
  %v502 = vpop.f32.mrb[0].mxu0
  %v503 = vadd.f32 %v117, %v502
  %v504 = vpop.f32.mrb[0].mxu0
  %v505 = vpop.f32.mrb[0].mxu0
  %v506 = vadd.f32 %v117, %v505
  %v507 = vpop.f32.mrb[0].mxu0
  %508 = vdwg.mxu0
  %vm509 = vcmask 15360
  %510 = vst.msk [vmem:[%s3] sm:$0xff] %vm509, %v255
  %511 = vst.msk [vmem:[%s3 + $0x8] sm:$0xff] %vm509, %v258
  %512 = vst.msk [vmem:[%s3 + $0x10] sm:$0xff] %vm509, %v263
  %513 = vst.msk [vmem:[%s3 + $0x18] sm:$0xff] %vm509, %v266
  %514 = vst.msk [vmem:[%s3 + $0x20] sm:$0xff] %vm509, %v271
  %515 = vst.msk [vmem:[%s3 + $0x28] sm:$0xff] %vm509, %v274
  %516 = vst.msk [vmem:[%s3 + $0x30] sm:$0xff] %vm509, %v279
  %517 = vst.msk [vmem:[%s3 + $0x38] sm:$0xff] %vm509, %v282
  %518 = vst.msk [vmem:[%s3 + $0x40] sm:$0xff] %vm509, %v287
  %519 = vst.msk [vmem:[%s3 + $0x48] sm:$0xff] %vm509, %v290
  %520 = vst.msk [vmem:[%s3 + $0x50] sm:$0xff] %vm509, %v295
  %521 = vst.msk [vmem:[%s3 + $0x58] sm:$0xff] %vm509, %v298
  %522 = vst.msk [vmem:[%s3 + $0x60] sm:$0xff] %vm509, %v303
  %523 = vst.msk [vmem:[%s3 + $0x68] sm:$0xff] %vm509, %v306
  %524 = vst.msk [vmem:[%s3 + $0x70] sm:$0xff] %vm509, %v311
  %525 = vst.msk [vmem:[%s3 + $0x78] sm:$0xff] %vm509, %v314
  %526 = vst.msk [vmem:[%s3 + $0x80] sm:$0xff] %vm509, %v319
  %527 = vst.msk [vmem:[%s3 + $0x88] sm:$0xff] %vm509, %v322
  %528 = vst.msk [vmem:[%s3 + $0x90] sm:$0xff] %vm509, %v327
  %529 = vst.msk [vmem:[%s3 + $0x98] sm:$0xff] %vm509, %v330
  %530 = vst.msk [vmem:[%s3 + $0xa0] sm:$0xff] %vm509, %v335
  %531 = vst.msk [vmem:[%s3 + $0xa8] sm:$0xff] %vm509, %v338
  %532 = vst.msk [vmem:[%s3 + $0xb0] sm:$0xff] %vm509, %v343
  %533 = vst.msk [vmem:[%s3 + $0xb8] sm:$0xff] %vm509, %v346
  %534 = vst.msk [vmem:[%s3 + $0xc0] sm:$0xff] %vm509, %v351
  %535 = vst.msk [vmem:[%s3 + $0xc8] sm:$0xff] %vm509, %v354
  %536 = vst.msk [vmem:[%s3 + $0xd0] sm:$0xff] %vm509, %v359
  %537 = vst.msk [vmem:[%s3 + $0xd8] sm:$0xff] %vm509, %v362
  %538 = vst.msk [vmem:[%s3 + $0xe0] sm:$0xff] %vm509, %v367
  %539 = vst.msk [vmem:[%s3 + $0xe8] sm:$0xff] %vm509, %v370
  %540 = vst.msk [vmem:[%s3 + $0xf0] sm:$0xff] %vm509, %v375
  %541 = vst.msk [vmem:[%s3 + $0xf8] sm:$0xff] %vm509, %v378
  %542 = vst.msk [vmem:[%s3 + $0x100] sm:$0xff] %vm509, %v383
  %543 = vst.msk [vmem:[%s3 + $0x108] sm:$0xff] %vm509, %v386
  %544 = vst.msk [vmem:[%s3 + $0x110] sm:$0xff] %vm509, %v391
  %545 = vst.msk [vmem:[%s3 + $0x118] sm:$0xff] %vm509, %v394
  %546 = vst.msk [vmem:[%s3 + $0x120] sm:$0xff] %vm509, %v399
  %547 = vst.msk [vmem:[%s3 + $0x128] sm:$0xff] %vm509, %v402
  %548 = vst.msk [vmem:[%s3 + $0x130] sm:$0xff] %vm509, %v407
  %549 = vst.msk [vmem:[%s3 + $0x138] sm:$0xff] %vm509, %v410
  %550 = vst.msk [vmem:[%s3 + $0x140] sm:$0xff] %vm509, %v415
  %551 = vst.msk [vmem:[%s3 + $0x148] sm:$0xff] %vm509, %v418
  %552 = vst.msk [vmem:[%s3 + $0x150] sm:$0xff] %vm509, %v423
  %553 = vst.msk [vmem:[%s3 + $0x158] sm:$0xff] %vm509, %v426
  %554 = vst.msk [vmem:[%s3 + $0x160] sm:$0xff] %vm509, %v431
  %555 = vst.msk [vmem:[%s3 + $0x168] sm:$0xff] %vm509, %v434
  %556 = vst.msk [vmem:[%s3 + $0x170] sm:$0xff] %vm509, %v439
  %557 = vst.msk [vmem:[%s3 + $0x178] sm:$0xff] %vm509, %v442
  %558 = vst.msk [vmem:[%s3 + $0x180] sm:$0xff] %vm509, %v447
  %559 = vst.msk [vmem:[%s3 + $0x188] sm:$0xff] %vm509, %v450
  %560 = vst.msk [vmem:[%s3 + $0x190] sm:$0xff] %vm509, %v455
  %561 = vst.msk [vmem:[%s3 + $0x198] sm:$0xff] %vm509, %v458
  %562 = vst.msk [vmem:[%s3 + $0x1a0] sm:$0xff] %vm509, %v463
  %563 = vst.msk [vmem:[%s3 + $0x1a8] sm:$0xff] %vm509, %v466
  %564 = vst.msk [vmem:[%s3 + $0x1b0] sm:$0xff] %vm509, %v471
  %565 = vst.msk [vmem:[%s3 + $0x1b8] sm:$0xff] %vm509, %v474
  %566 = vst.msk [vmem:[%s3 + $0x1c0] sm:$0xff] %vm509, %v479
  %567 = vst.msk [vmem:[%s3 + $0x1c8] sm:$0xff] %vm509, %v482
  %568 = vst.msk [vmem:[%s3 + $0x1d0] sm:$0xff] %vm509, %v487
  %569 = vst.msk [vmem:[%s3 + $0x1d8] sm:$0xff] %vm509, %v490
  %570 = vst.msk [vmem:[%s3 + $0x1e0] sm:$0xff] %vm509, %v495
  %571 = vst.msk [vmem:[%s3 + $0x1e8] sm:$0xff] %vm509, %v498
  %572 = vst.msk [vmem:[%s3 + $0x1f0] sm:$0xff] %vm509, %v503
  %573 = vst.msk [vmem:[%s3 + $0x1f8] sm:$0xff] %vm509, %v506
  // Predicated region
  $region14: #{fastfc_forward.17} parent=0 // pred_check
    _
  $region15: #{fastfc_forward.17} parent=0 // pred_check_branch
    %575 = sbr.rel (0) target = $region17
  $region16: #{fastfc_forward.17} parent=0 // pred_region
    _
  $region17: #{fastfc_forward.17} parent=0 // pred_fallthru
    _
  // Predicated region
  $region18: #{fastfc_forward.17} parent=0 // pred_check
    _
  $region19: #{fastfc_forward.17} parent=0 // pred_check_branch
    %577 = sbr.rel (0) target = $region21
  $region20: #{fastfc_forward.17} parent=0 // pred_region
    _
  $region21: #{fastfc_forward.17} parent=0 // pred_fallthru
    _

// kernel: fastfc_forward.19
$region0: #{fastfc_forward.19}
  #allocation0 [shape = 'u32[]', space=smem, size = 0x4, offset = 0x4, fixed_abs, tag = 'smem constant byte address 0x4 - core index']
  #allocation1 [shape = 'u32[144,128]{1,0:T(1,128)}', space=vmem, size = 0x12000, scoped, tag = 'internal scratch']
  %s0 = inlined_call_operand.vmem [shape: f32[8,128], index: 0, kind: input, shape index: {}]
  %s1 = inlined_call_operand.vmem [shape: f32[1,128], index: 1, kind: input, shape index: {}]
  %s2 = inlined_call_operand.vmem [shape: f32[1,128], index: 2, kind: input, shape index: {}]
  %s3 = inlined_call_operand.vmem [shape: f32[1,128], index: 3, kind: input, shape index: {}]
  %s4 = inlined_call_operand.vmem [shape: f32[8,128], index: 4, kind: output, shape index: {}]
  %s5 = sld [smem:[#allocation0]]
  $region26: #{fastfc_forward.19} parent=0
    _
  %s7 = ssub.s32 1, %s5
  %s8 = scalar_select 0, %s7, %s5
  // Predicated region
  $region2: #{fastfc_forward.19} parent=0 // pred_check
    _
  $region3: #{fastfc_forward.19} parent=0 // pred_check_branch
    %10 = sbr.rel (0) target = $region5
  $region4: #{fastfc_forward.19} parent=0 // pred_region
    _
  $region5: #{fastfc_forward.19} parent=0 // pred_fallthru
    _
  // Predicated region
  $region6: #{fastfc_forward.19} parent=0 // pred_check
    _
  $region7: #{fastfc_forward.19} parent=0 // pred_check_branch
    %12 = sbr.rel (0) target = $region9
  $region8: #{fastfc_forward.19} parent=0 // pred_region
    _
  $region9: #{fastfc_forward.19} parent=0 // pred_fallthru
    _
  // Predicated region
  $region10: #{fastfc_forward.19} parent=0 // pred_check
    _
  $region11: #{fastfc_forward.19} parent=0 // pred_check_branch
    %14 = sbr.rel (0) target = $region13
  $region12: #{fastfc_forward.19} parent=0 // pred_region
    _
  $region13: #{fastfc_forward.19} parent=0 // pred_fallthru
    _
  // Predicated region
  $region14: #{fastfc_forward.19} parent=0 // pred_check
    _
  $region15: #{fastfc_forward.19} parent=0 // pred_check_branch
    %16 = sbr.rel (0) target = $region17
  $region16: #{fastfc_forward.19} parent=0 // pred_region
    _
  $region17: #{fastfc_forward.19} parent=0 // pred_fallthru
    _
  %v17 = vld [vmem:[%s0] sm:$0xff]
  %v18 = vld [vmem:[%s1] sm:$0x1]
  %v20 = vlaneseq
  %v21 = vshrl.u32 %v20, 7
  %v22 = vsub.s32 0, %v21
  %v23 = vrot.slane %v18, %v22
  %v25 = vmul.f32 %v17, %v23
  %v26 = vld [vmem:[%s2] sm:$0x1]
  %v28 = vlaneseq
  %v29 = vshrl.u32 %v28, 7
  %v30 = vsub.s32 0, %v29
  %v31 = vrot.slane %v26, %v30
  %v33 = vadd.f32 %v25, %v31
  %vm34 = vcmp.ge.f32.partialorder %v33, 0.0
  %v35 = vld [vmem:[%s3] sm:$0x1]
  %v37 = vlaneseq
  %v38 = vshrl.u32 %v37, 7
  %v39 = vsub.s32 0, %v38
  %v40 = vrot.slane %v35, %v39
  %v42 = vmul.f32 %v40, %v33
  %v43 = vsel %vm34, %v33, %v42
  %44 = vst [vmem:[%s4] sm:$0xff] %v43
  // Predicated region
  $region18: #{fastfc_forward.19} parent=0 // pred_check
    _
  $region19: #{fastfc_forward.19} parent=0 // pred_check_branch
    %46 = sbr.rel (0) target = $region21
  $region20: #{fastfc_forward.19} parent=0 // pred_region
    _
  $region21: #{fastfc_forward.19} parent=0 // pred_fallthru
    _
  // Predicated region
  $region22: #{fastfc_forward.19} parent=0 // pred_check
    _
  $region23: #{fastfc_forward.19} parent=0 // pred_check_branch
    %48 = sbr.rel (0) target = $region25
  $region24: #{fastfc_forward.19} parent=0 // pred_region
    _
  $region25: #{fastfc_forward.19} parent=0 // pred_fallthru
    _

// kernel: fastfc_forward.21
$region0: #{fastfc_forward.21}
  #allocation0 [shape = 'u32[]', space=smem, size = 0x4, offset = 0x4, fixed_abs, tag = 'smem constant byte address 0x4 - core index']
  #allocation1 [shape = 'u32[144,128]{1,0:T(1,128)}', space=vmem, size = 0x12000, scoped, tag = 'internal scratch']
  %s0 = inlined_call_operand.vmem [shape: f32[9,128], index: 0, kind: input, shape index: {}]
  %s1 = inlined_call_operand.vmem [shape: f32[1,128], index: 1, kind: output, shape index: {0}]
  %s2 = inlined_call_operand.vmem [shape: f32[1,128], index: 2, kind: output, shape index: {1}]
  %3 = xla_tuple %s1, %s2
  %s4 = sld [smem:[#allocation0]]
  $region26: #{fastfc_forward.21} parent=0
    _
  %s6 = ssub.s32 1, %s4
  %s7 = scalar_select 0, %s6, %s4
  // Predicated region
  $region2: #{fastfc_forward.21} parent=0 // pred_check
    _
  $region3: #{fastfc_forward.21} parent=0 // pred_check_branch
    %9 = sbr.rel (0) target = $region5
  $region4: #{fastfc_forward.21} parent=0 // pred_region
    _
  $region5: #{fastfc_forward.21} parent=0 // pred_fallthru
    _
  %p10 = scmp.eq.s32.totalorder 0, 0
  // Predicated region
  $region6: #{fastfc_forward.21} parent=0 // pred_check
    %p11 = pneg %p10
  $region7: #{fastfc_forward.21} parent=0 // pred_check_branch
    %13 = sbr.rel (%p11) target = $region9
  $region8: #{fastfc_forward.21} parent=0 // pred_region
    %14 = vst [vmem:[%s1] sm:$0x1] 0.0
    %15 = vst [vmem:[%s2] sm:$0x1] 0.0
  $region9: #{fastfc_forward.21} parent=0 // pred_fallthru
    _
  %v16 = vlaneseq
  %v17 = vshrl.u32 %v16, 7
  %v18 = vadd.s32 %v17, 8
  %s19 = smul.u32 0, 9
  %v20 = vstv %s19
  %v21 = vadd.s32 %v17, %v20
  %v22 = vadd.s32 %v18, %v20
  %vm23 = vcmp.lt.s32.totalorder %v21, 9
  %vm24 = vcmp.lt.s32.totalorder %v22, 9
  %v25 = vld [vmem:[%s0] sm:$0xff]
  %v26 = vld [vmem:[%s0 + $0x8] sm:$0x1]
  %v27 = vsel %vm23, %v25, 0.0
  %v28 = vsel %vm24, %v26, 0.0
  %v29 = vld [vmem:[%s1] sm:$0x1]
  %vm30 = vcmask 1040384
  %v31 = vsel %vm30, %v28, 0.0
  %v32 = vadd.f32 %v27, %v31
  %v33 = vrot.slane %v32, 4
  %v34 = vadd.f32 %v32, %v33
  %v35 = vrot.slane %v34, 2
  %v36 = vadd.f32 %v34, %v35
  %v37 = vrot.slane %v36, 1
  %v38 = vadd.f32 %v36, %v37
  %v39 = vadd.f32 %v29, %v38
  %40 = vst [vmem:[%s1] sm:$0x1] %v39
  %v41 = vld [vmem:[%s2] sm:$0x1]
  %v42 = vmul.f32 %v27, %v27
  %v43 = vmul.f32 %v28, %v28
  %v44 = vsel %vm30, %v43, 0.0
  %v45 = vadd.f32 %v42, %v44
  %v46 = vrot.slane %v45, 4
  %v47 = vadd.f32 %v45, %v46
  %v48 = vrot.slane %v47, 2
  %v49 = vadd.f32 %v47, %v48
  %v50 = vrot.slane %v49, 1
  %v51 = vadd.f32 %v49, %v50
  %v52 = vadd.f32 %v41, %v51
  %53 = vst [vmem:[%s2] sm:$0x1] %v52
  // Predicated region
  $region10: #{fastfc_forward.21} parent=0 // pred_check
    _
  $region11: #{fastfc_forward.21} parent=0 // pred_check_branch
    %55 = sbr.rel (0) target = $region13
  $region12: #{fastfc_forward.21} parent=0 // pred_region
    _
  $region13: #{fastfc_forward.21} parent=0 // pred_fallthru
    _
  // Predicated region
  $region14: #{fastfc_forward.21} parent=0 // pred_check
    _
  $region15: #{fastfc_forward.21} parent=0 // pred_check_branch
    %57 = sbr.rel (0) target = $region17
  $region16: #{fastfc_forward.21} parent=0 // pred_region
    _
  $region17: #{fastfc_forward.21} parent=0 // pred_fallthru
    _
  // Predicated region
  $region18: #{fastfc_forward.21} parent=0 // pred_check
    _
  $region19: #{fastfc_forward.21} parent=0 // pred_check_branch
    %59 = sbr.rel (0) target = $region21
  $region20: #{fastfc_forward.21} parent=0 // pred_region
    _
  $region21: #{fastfc_forward.21} parent=0 // pred_fallthru
    _
  // Predicated region
  $region22: #{fastfc_forward.21} parent=0 // pred_check
    _
  $region23: #{fastfc_forward.21} parent=0 // pred_check_branch
    %61 = sbr.rel (0) target = $region25
  $region24: #{fastfc_forward.21} parent=0 // pred_region
    _
  $region25: #{fastfc_forward.21} parent=0 // pred_fallthru
    _

// kernel: fastfc_forward.20
$region0: #{fastfc_forward.20}
  #allocation0 [shape = 'u32[]', space=smem, size = 0x4, offset = 0x4, fixed_abs, tag = 'smem constant byte address 0x4 - core index']
  #allocation1 [shape = 'u32[144,128]{1,0:T(1,128)}', space=vmem, size = 0x12000, scoped, tag = 'internal scratch']
  %s0 = inlined_call_operand.vmem [shape: f32[576,2], index: 0, kind: input, shape index: {}]
  %s1 = inlined_call_operand.vmem [shape: bf16[2,2], index: 1, kind: input, shape index: {}]
  %s2 = inlined_call_operand.vmem [shape: f32[1,2], index: 2, kind: input, shape index: {}]
  %s3 = inlined_call_operand.vmem [shape: f32[576,2], index: 3, kind: output, shape index: {}]
  %s4 = sld [smem:[#allocation0]]
  $region22: #{fastfc_forward.20} parent=0
    _
  %s6 = ssub.s32 1, %s4
  %s7 = scalar_select 0, %s6, %s4
  // Predicated region
  $region2: #{fastfc_forward.20} parent=0 // pred_check
    _
  $region3: #{fastfc_forward.20} parent=0 // pred_check_branch
    %9 = sbr.rel (0) target = $region5
  $region4: #{fastfc_forward.20} parent=0 // pred_region
    _
  $region5: #{fastfc_forward.20} parent=0 // pred_fallthru
    _
  // Predicated region
  $region6: #{fastfc_forward.20} parent=0 // pred_check
    _
  $region7: #{fastfc_forward.20} parent=0 // pred_check_branch
    %11 = sbr.rel (0) target = $region9
  $region8: #{fastfc_forward.20} parent=0 // pred_region
    _
  $region9: #{fastfc_forward.20} parent=0 // pred_fallthru
    _
  // Predicated region
  $region10: #{fastfc_forward.20} parent=0 // pred_check
    _
  $region11: #{fastfc_forward.20} parent=0 // pred_check_branch
    %13 = sbr.rel (0) target = $region13
  $region12: #{fastfc_forward.20} parent=0 // pred_region
    _
  $region13: #{fastfc_forward.20} parent=0 // pred_fallthru
    _
  %v15 = vld [vmem:[%s0] sm:$0xff]
  %v16 = vld [vmem:[%s0 + $0x8] sm:$0xff]
  %v17 = vld [vmem:[%s0 + $0x10] sm:$0xff]
  %v18 = vld [vmem:[%s0 + $0x18] sm:$0xff]
  %v19 = vld [vmem:[%s0 + $0x20] sm:$0xff]
  %v20 = vld [vmem:[%s0 + $0x28] sm:$0xff]
  %v21 = vld [vmem:[%s0 + $0x30] sm:$0xff]
  %v22 = vld [vmem:[%s0 + $0x38] sm:$0xff]
  %v23 = vld [vmem:[%s0 + $0x40] sm:$0xff]
  %v24 = vld [vmem:[%s0 + $0x48] sm:$0xff]
  %v25 = vld [vmem:[%s0 + $0x50] sm:$0xff]
  %v26 = vld [vmem:[%s0 + $0x58] sm:$0xff]
  %v27 = vld [vmem:[%s0 + $0x60] sm:$0xff]
  %v28 = vld [vmem:[%s0 + $0x68] sm:$0xff]
  %v29 = vld [vmem:[%s0 + $0x70] sm:$0xff]
  %v30 = vld [vmem:[%s0 + $0x78] sm:$0xff]
  %v31 = vld [vmem:[%s0 + $0x80] sm:$0xff]
  %v32 = vld [vmem:[%s0 + $0x88] sm:$0xff]
  %v33 = vld [vmem:[%s0 + $0x90] sm:$0xff]
  %v34 = vld [vmem:[%s0 + $0x98] sm:$0xff]
  %v35 = vld [vmem:[%s0 + $0xa0] sm:$0xff]
  %v36 = vld [vmem:[%s0 + $0xa8] sm:$0xff]
  %v37 = vld [vmem:[%s0 + $0xb0] sm:$0xff]
  %v38 = vld [vmem:[%s0 + $0xb8] sm:$0xff]
  %v39 = vld [vmem:[%s0 + $0xc0] sm:$0xff]
  %v40 = vld [vmem:[%s0 + $0xc8] sm:$0xff]
  %v41 = vld [vmem:[%s0 + $0xd0] sm:$0xff]
  %v42 = vld [vmem:[%s0 + $0xd8] sm:$0xff]
  %v43 = vld [vmem:[%s0 + $0xe0] sm:$0xff]
  %v44 = vld [vmem:[%s0 + $0xe8] sm:$0xff]
  %v45 = vld [vmem:[%s0 + $0xf0] sm:$0xff]
  %v46 = vld [vmem:[%s0 + $0xf8] sm:$0xff]
  %v47 = vld [vmem:[%s0 + $0x100] sm:$0xff]
  %v48 = vld [vmem:[%s0 + $0x108] sm:$0xff]
  %v49 = vld [vmem:[%s0 + $0x110] sm:$0xff]
  %v50 = vld [vmem:[%s0 + $0x118] sm:$0xff]
  %v51 = vld [vmem:[%s0 + $0x120] sm:$0xff]
  %v52 = vld [vmem:[%s0 + $0x128] sm:$0xff]
  %v53 = vld [vmem:[%s0 + $0x130] sm:$0xff]
  %v54 = vld [vmem:[%s0 + $0x138] sm:$0xff]
  %v55 = vld [vmem:[%s0 + $0x140] sm:$0xff]
  %v56 = vld [vmem:[%s0 + $0x148] sm:$0xff]
  %v57 = vld [vmem:[%s0 + $0x150] sm:$0xff]
  %v58 = vld [vmem:[%s0 + $0x158] sm:$0xff]
  %v59 = vld [vmem:[%s0 + $0x160] sm:$0xff]
  %v60 = vld [vmem:[%s0 + $0x168] sm:$0xff]
  %v61 = vld [vmem:[%s0 + $0x170] sm:$0xff]
  %v62 = vld [vmem:[%s0 + $0x178] sm:$0xff]
  %v63 = vld [vmem:[%s0 + $0x180] sm:$0xff]
  %v64 = vld [vmem:[%s0 + $0x188] sm:$0xff]
  %v65 = vld [vmem:[%s0 + $0x190] sm:$0xff]
  %v66 = vld [vmem:[%s0 + $0x198] sm:$0xff]
  %v67 = vld [vmem:[%s0 + $0x1a0] sm:$0xff]
  %v68 = vld [vmem:[%s0 + $0x1a8] sm:$0xff]
  %v69 = vld [vmem:[%s0 + $0x1b0] sm:$0xff]
  %v70 = vld [vmem:[%s0 + $0x1b8] sm:$0xff]
  %v71 = vld [vmem:[%s0 + $0x1c0] sm:$0xff]
  %v72 = vld [vmem:[%s0 + $0x1c8] sm:$0xff]
  %v73 = vld [vmem:[%s0 + $0x1d0] sm:$0xff]
  %v74 = vld [vmem:[%s0 + $0x1d8] sm:$0xff]
  %v75 = vld [vmem:[%s0 + $0x1e0] sm:$0xff]
  %v76 = vld [vmem:[%s0 + $0x1e8] sm:$0xff]
  %v77 = vld [vmem:[%s0 + $0x1f0] sm:$0xff]
  %v78 = vld [vmem:[%s0 + $0x1f8] sm:$0xff]
  %v79 = vld [vmem:[%s0 + $0x200] sm:$0xff]
  %v80 = vld [vmem:[%s0 + $0x208] sm:$0xff]
  %v81 = vld [vmem:[%s0 + $0x210] sm:$0xff]
  %v82 = vld [vmem:[%s0 + $0x218] sm:$0xff]
  %v83 = vld [vmem:[%s0 + $0x220] sm:$0xff]
  %v84 = vld [vmem:[%s0 + $0x228] sm:$0xff]
  %v85 = vld [vmem:[%s0 + $0x230] sm:$0xff]
  %v86 = vld [vmem:[%s0 + $0x238] sm:$0xff]
  %v87 = vpack.c.bf16 %v16, %v15
  %v88 = vpack.c.bf16 %v18, %v17
  %v89 = vpack.c.bf16 %v20, %v19
  %v90 = vpack.c.bf16 %v22, %v21
  %v91 = vpack.c.bf16 %v24, %v23
  %v92 = vpack.c.bf16 %v26, %v25
  %v93 = vpack.c.bf16 %v28, %v27
  %v94 = vpack.c.bf16 %v30, %v29
  %v95 = vpack.c.bf16 %v32, %v31
  %v96 = vpack.c.bf16 %v34, %v33
  %v97 = vpack.c.bf16 %v36, %v35
  %v98 = vpack.c.bf16 %v38, %v37
  %v99 = vpack.c.bf16 %v40, %v39
  %v100 = vpack.c.bf16 %v42, %v41
  %v101 = vpack.c.bf16 %v44, %v43
  %v102 = vpack.c.bf16 %v46, %v45
  %v103 = vpack.c.bf16 %v48, %v47
  %v104 = vpack.c.bf16 %v50, %v49
  %v105 = vpack.c.bf16 %v52, %v51
  %v106 = vpack.c.bf16 %v54, %v53
  %v107 = vpack.c.bf16 %v56, %v55
  %v108 = vpack.c.bf16 %v58, %v57
  %v109 = vpack.c.bf16 %v60, %v59
  %v110 = vpack.c.bf16 %v62, %v61
  %v111 = vpack.c.bf16 %v64, %v63
  %v112 = vpack.c.bf16 %v66, %v65
  %v113 = vpack.c.bf16 %v68, %v67
  %v114 = vpack.c.bf16 %v70, %v69
  %v115 = vpack.c.bf16 %v72, %v71
  %v116 = vpack.c.bf16 %v74, %v73
  %v117 = vpack.c.bf16 %v76, %v75
  %v118 = vpack.c.bf16 %v78, %v77
  %v119 = vpack.c.bf16 %v80, %v79
  %v120 = vpack.c.bf16 %v82, %v81
  %v121 = vpack.c.bf16 %v84, %v83
  %v122 = vpack.c.bf16 %v86, %v85
  %v123 = vld [vmem:[%s1] sm:$0x1]
  %v124 = vld [vmem:[%s2] sm:$0x1]
  %v126 = vlaneseq
  %v127 = vshrl.u32 %v126, 7
  %v128 = vsub.s32 0, %v127
  %v129 = vrot.slane %v124, %v128
  %vm131 = vcmask 15360
  %v133 = vsel %vm131, %v87, 0
  %v136 = vsel %vm131, %v88, 0
  %v139 = vsel %vm131, %v89, 0
  %v142 = vsel %vm131, %v90, 0
  %v145 = vsel %vm131, %v91, 0
  %v148 = vsel %vm131, %v92, 0
  %v151 = vsel %vm131, %v93, 0
  %v154 = vsel %vm131, %v94, 0
  %v157 = vsel %vm131, %v95, 0
  %v160 = vsel %vm131, %v96, 0
  %v163 = vsel %vm131, %v97, 0
  %v166 = vsel %vm131, %v98, 0
  %v169 = vsel %vm131, %v99, 0
  %v172 = vsel %vm131, %v100, 0
  %v175 = vsel %vm131, %v101, 0
  %v178 = vsel %vm131, %v102, 0
  %v181 = vsel %vm131, %v103, 0
  %v184 = vsel %vm131, %v104, 0
  %v187 = vsel %vm131, %v105, 0
  %v190 = vsel %vm131, %v106, 0
  %v193 = vsel %vm131, %v107, 0
  %v196 = vsel %vm131, %v108, 0
  %v199 = vsel %vm131, %v109, 0
  %v202 = vsel %vm131, %v110, 0
  %v205 = vsel %vm131, %v111, 0
  %v208 = vsel %vm131, %v112, 0
  %v211 = vsel %vm131, %v113, 0
  %v214 = vsel %vm131, %v114, 0
  %v217 = vsel %vm131, %v115, 0
  %v220 = vsel %vm131, %v116, 0
  %v223 = vsel %vm131, %v117, 0
  %v226 = vsel %vm131, %v118, 0
  %v229 = vsel %vm131, %v119, 0
  %v232 = vsel %vm131, %v120, 0
  %v235 = vsel %vm131, %v121, 0
  %v238 = vsel %vm131, %v122, 0
  %vm240 = vcmask 1040384
  %v242 = vsel %vm240, %v123, 0
  %244 = vmatprep.subr.bf16.mxu0 0
  %245 = vmatpush1.bf16.msra.mxu0 %v242
  %246 = vmatprep.subr.bf16.mxu0 0
  %247 = vmatpush1.bf16.msra.mxu0 0
  %248 = vmatprep.subr.bf16.mxu0 0
  %249 = vmatpush1.bf16.msra.mxu0 0
  %250 = vmatprep.subr.bf16.mxu0 0
  %251 = vmatpush1.bf16.msra.mxu0 0
  %252 = vmatprep.subr.bf16.mxu0 0
  %253 = vmatpush1.bf16.msra.mxu0 0
  %254 = vmatprep.subr.bf16.mxu0 0
  %255 = vmatpush1.bf16.msra.mxu0 0
  %256 = vmatprep.subr.bf16.mxu0 0
  %257 = vmatpush1.bf16.msra.mxu0 0
  %258 = vmatprep.subr.bf16.mxu0 0
  %259 = vmatpush1.bf16.msra.mxu0 0
  %260 = vmatprep.subr.bf16.mxu0 0
  %261 = vmatpush1.bf16.msra.mxu0 0
  %262 = vmatprep.subr.bf16.mxu0 0
  %263 = vmatpush1.bf16.msra.mxu0 0
  %264 = vmatprep.subr.bf16.mxu0 0
  %265 = vmatpush1.bf16.msra.mxu0 0
  %266 = vmatprep.subr.bf16.mxu0 0
  %267 = vmatpush1.bf16.msra.mxu0 0
  %268 = vmatprep.subr.bf16.mxu0 0
  %269 = vmatpush1.bf16.msra.mxu0 0
  %270 = vmatprep.subr.bf16.mxu0 0
  %271 = vmatpush1.bf16.msra.mxu0 0
  %272 = vmatprep.subr.bf16.mxu0 0
  %273 = vmatpush1.bf16.msra.mxu0 0
  %274 = vmatprep.subr.bf16.mxu0 0
  %275 = vmatpush1.bf16.msra.mxu0 0
  %276 = vmatprep.mubr.bf16.mxu0 0
  %277 = vmatmul.mubr.bf16.gmra.mrb[0].mxu0 %v133
  %v278 = vpop.f32.mrb[0].mxu0
  %v279 = vadd.f32 %v129, %v278
  %v280 = vpop.f32.mrb[0].mxu0
  %v281 = vpop.f32.mrb[0].mxu0
  %v282 = vadd.f32 %v129, %v281
  %v283 = vpop.f32.mrb[0].mxu0
  %284 = vmatprep.mubr.bf16.mxu0 0
  %285 = vmatmul.mubr.bf16.gmra.mrb[0].mxu0 %v136
  %v286 = vpop.f32.mrb[0].mxu0
  %v287 = vadd.f32 %v129, %v286
  %v288 = vpop.f32.mrb[0].mxu0
  %v289 = vpop.f32.mrb[0].mxu0
  %v290 = vadd.f32 %v129, %v289
  %v291 = vpop.f32.mrb[0].mxu0
  %292 = vmatprep.mubr.bf16.mxu0 0
  %293 = vmatmul.mubr.bf16.gmra.mrb[0].mxu0 %v139
  %v294 = vpop.f32.mrb[0].mxu0
  %v295 = vadd.f32 %v129, %v294
  %v296 = vpop.f32.mrb[0].mxu0
  %v297 = vpop.f32.mrb[0].mxu0
  %v298 = vadd.f32 %v129, %v297
  %v299 = vpop.f32.mrb[0].mxu0
  %300 = vmatprep.mubr.bf16.mxu0 0
  %301 = vmatmul.mubr.bf16.gmra.mrb[0].mxu0 %v142
  %v302 = vpop.f32.mrb[0].mxu0
  %v303 = vadd.f32 %v129, %v302
  %v304 = vpop.f32.mrb[0].mxu0
  %v305 = vpop.f32.mrb[0].mxu0
  %v306 = vadd.f32 %v129, %v305
  %v307 = vpop.f32.mrb[0].mxu0
  %308 = vmatprep.mubr.bf16.mxu0 0
  %309 = vmatmul.mubr.bf16.gmra.mrb[0].mxu0 %v145
  %v310 = vpop.f32.mrb[0].mxu0
  %v311 = vadd.f32 %v129, %v310
  %v312 = vpop.f32.mrb[0].mxu0
  %v313 = vpop.f32.mrb[0].mxu0
  %v314 = vadd.f32 %v129, %v313
  %v315 = vpop.f32.mrb[0].mxu0
  %316 = vmatprep.mubr.bf16.mxu0 0
  %317 = vmatmul.mubr.bf16.gmra.mrb[0].mxu0 %v148
  %v318 = vpop.f32.mrb[0].mxu0
  %v319 = vadd.f32 %v129, %v318
  %v320 = vpop.f32.mrb[0].mxu0
  %v321 = vpop.f32.mrb[0].mxu0
  %v322 = vadd.f32 %v129, %v321
  %v323 = vpop.f32.mrb[0].mxu0
  %324 = vmatprep.mubr.bf16.mxu0 0
  %325 = vmatmul.mubr.bf16.gmra.mrb[0].mxu0 %v151
  %v326 = vpop.f32.mrb[0].mxu0
  %v327 = vadd.f32 %v129, %v326
  %v328 = vpop.f32.mrb[0].mxu0
  %v329 = vpop.f32.mrb[0].mxu0
  %v330 = vadd.f32 %v129, %v329
  %v331 = vpop.f32.mrb[0].mxu0
  %332 = vmatprep.mubr.bf16.mxu0 0
  %333 = vmatmul.mubr.bf16.gmra.mrb[0].mxu0 %v154
  %v334 = vpop.f32.mrb[0].mxu0
  %v335 = vadd.f32 %v129, %v334
  %v336 = vpop.f32.mrb[0].mxu0
  %v337 = vpop.f32.mrb[0].mxu0
  %v338 = vadd.f32 %v129, %v337
  %v339 = vpop.f32.mrb[0].mxu0
  %340 = vmatprep.mubr.bf16.mxu0 0
  %341 = vmatmul.mubr.bf16.gmra.mrb[0].mxu0 %v157
  %v342 = vpop.f32.mrb[0].mxu0
  %v343 = vadd.f32 %v129, %v342
  %v344 = vpop.f32.mrb[0].mxu0
  %v345 = vpop.f32.mrb[0].mxu0
  %v346 = vadd.f32 %v129, %v345
  %v347 = vpop.f32.mrb[0].mxu0
  %348 = vmatprep.mubr.bf16.mxu0 0
  %349 = vmatmul.mubr.bf16.gmra.mrb[0].mxu0 %v160
  %v350 = vpop.f32.mrb[0].mxu0
  %v351 = vadd.f32 %v129, %v350
  %v352 = vpop.f32.mrb[0].mxu0
  %v353 = vpop.f32.mrb[0].mxu0
  %v354 = vadd.f32 %v129, %v353
  %v355 = vpop.f32.mrb[0].mxu0
  %356 = vmatprep.mubr.bf16.mxu0 0
  %357 = vmatmul.mubr.bf16.gmra.mrb[0].mxu0 %v163
  %v358 = vpop.f32.mrb[0].mxu0
  %v359 = vadd.f32 %v129, %v358
  %v360 = vpop.f32.mrb[0].mxu0
  %v361 = vpop.f32.mrb[0].mxu0
  %v362 = vadd.f32 %v129, %v361
  %v363 = vpop.f32.mrb[0].mxu0
  %364 = vmatprep.mubr.bf16.mxu0 0
  %365 = vmatmul.mubr.bf16.gmra.mrb[0].mxu0 %v166
  %v366 = vpop.f32.mrb[0].mxu0
  %v367 = vadd.f32 %v129, %v366
  %v368 = vpop.f32.mrb[0].mxu0
  %v369 = vpop.f32.mrb[0].mxu0
  %v370 = vadd.f32 %v129, %v369
  %v371 = vpop.f32.mrb[0].mxu0
  %372 = vmatprep.mubr.bf16.mxu0 0
  %373 = vmatmul.mubr.bf16.gmra.mrb[0].mxu0 %v169
  %v374 = vpop.f32.mrb[0].mxu0
  %v375 = vadd.f32 %v129, %v374
  %v376 = vpop.f32.mrb[0].mxu0
  %v377 = vpop.f32.mrb[0].mxu0
  %v378 = vadd.f32 %v129, %v377
  %v379 = vpop.f32.mrb[0].mxu0
  %380 = vmatprep.mubr.bf16.mxu0 0
  %381 = vmatmul.mubr.bf16.gmra.mrb[0].mxu0 %v172
  %v382 = vpop.f32.mrb[0].mxu0
  %v383 = vadd.f32 %v129, %v382
  %v384 = vpop.f32.mrb[0].mxu0
  %v385 = vpop.f32.mrb[0].mxu0
  %v386 = vadd.f32 %v129, %v385
  %v387 = vpop.f32.mrb[0].mxu0
  %388 = vmatprep.mubr.bf16.mxu0 0
  %389 = vmatmul.mubr.bf16.gmra.mrb[0].mxu0 %v175
  %v390 = vpop.f32.mrb[0].mxu0
  %v391 = vadd.f32 %v129, %v390
  %v392 = vpop.f32.mrb[0].mxu0
  %v393 = vpop.f32.mrb[0].mxu0
  %v394 = vadd.f32 %v129, %v393
  %v395 = vpop.f32.mrb[0].mxu0
  %396 = vmatprep.mubr.bf16.mxu0 0
  %397 = vmatmul.mubr.bf16.gmra.mrb[0].mxu0 %v178
  %v398 = vpop.f32.mrb[0].mxu0
  %v399 = vadd.f32 %v129, %v398
  %v400 = vpop.f32.mrb[0].mxu0
  %v401 = vpop.f32.mrb[0].mxu0
  %v402 = vadd.f32 %v129, %v401
  %v403 = vpop.f32.mrb[0].mxu0
  %404 = vmatprep.mubr.bf16.mxu0 0
  %405 = vmatmul.mubr.bf16.gmra.mrb[0].mxu0 %v181
  %v406 = vpop.f32.mrb[0].mxu0
  %v407 = vadd.f32 %v129, %v406
  %v408 = vpop.f32.mrb[0].mxu0
  %v409 = vpop.f32.mrb[0].mxu0
  %v410 = vadd.f32 %v129, %v409
  %v411 = vpop.f32.mrb[0].mxu0
  %412 = vmatprep.mubr.bf16.mxu0 0
  %413 = vmatmul.mubr.bf16.gmra.mrb[0].mxu0 %v184
  %v414 = vpop.f32.mrb[0].mxu0
  %v415 = vadd.f32 %v129, %v414
  %v416 = vpop.f32.mrb[0].mxu0
  %v417 = vpop.f32.mrb[0].mxu0
  %v418 = vadd.f32 %v129, %v417
  %v419 = vpop.f32.mrb[0].mxu0
  %420 = vmatprep.mubr.bf16.mxu0 0
  %421 = vmatmul.mubr.bf16.gmra.mrb[0].mxu0 %v187
  %v422 = vpop.f32.mrb[0].mxu0
  %v423 = vadd.f32 %v129, %v422
  %v424 = vpop.f32.mrb[0].mxu0
  %v425 = vpop.f32.mrb[0].mxu0
  %v426 = vadd.f32 %v129, %v425
  %v427 = vpop.f32.mrb[0].mxu0
  %428 = vmatprep.mubr.bf16.mxu0 0
  %429 = vmatmul.mubr.bf16.gmra.mrb[0].mxu0 %v190
  %v430 = vpop.f32.mrb[0].mxu0
  %v431 = vadd.f32 %v129, %v430
  %v432 = vpop.f32.mrb[0].mxu0
  %v433 = vpop.f32.mrb[0].mxu0
  %v434 = vadd.f32 %v129, %v433
  %v435 = vpop.f32.mrb[0].mxu0
  %436 = vmatprep.mubr.bf16.mxu0 0
  %437 = vmatmul.mubr.bf16.gmra.mrb[0].mxu0 %v193
  %v438 = vpop.f32.mrb[0].mxu0
  %v439 = vadd.f32 %v129, %v438
  %v440 = vpop.f32.mrb[0].mxu0
  %v441 = vpop.f32.mrb[0].mxu0
  %v442 = vadd.f32 %v129, %v441
  %v443 = vpop.f32.mrb[0].mxu0
  %444 = vmatprep.mubr.bf16.mxu0 0
  %445 = vmatmul.mubr.bf16.gmra.mrb[0].mxu0 %v196
  %v446 = vpop.f32.mrb[0].mxu0
  %v447 = vadd.f32 %v129, %v446
  %v448 = vpop.f32.mrb[0].mxu0
  %v449 = vpop.f32.mrb[0].mxu0
  %v450 = vadd.f32 %v129, %v449
  %v451 = vpop.f32.mrb[0].mxu0
  %452 = vmatprep.mubr.bf16.mxu0 0
  %453 = vmatmul.mubr.bf16.gmra.mrb[0].mxu0 %v199
  %v454 = vpop.f32.mrb[0].mxu0
  %v455 = vadd.f32 %v129, %v454
  %v456 = vpop.f32.mrb[0].mxu0
  %v457 = vpop.f32.mrb[0].mxu0
  %v458 = vadd.f32 %v129, %v457
  %v459 = vpop.f32.mrb[0].mxu0
  %460 = vmatprep.mubr.bf16.mxu0 0
  %461 = vmatmul.mubr.bf16.gmra.mrb[0].mxu0 %v202
  %v462 = vpop.f32.mrb[0].mxu0
  %v463 = vadd.f32 %v129, %v462
  %v464 = vpop.f32.mrb[0].mxu0
  %v465 = vpop.f32.mrb[0].mxu0
  %v466 = vadd.f32 %v129, %v465
  %v467 = vpop.f32.mrb[0].mxu0
  %468 = vmatprep.mubr.bf16.mxu0 0
  %469 = vmatmul.mubr.bf16.gmra.mrb[0].mxu0 %v205
  %v470 = vpop.f32.mrb[0].mxu0
  %v471 = vadd.f32 %v129, %v470
  %v472 = vpop.f32.mrb[0].mxu0
  %v473 = vpop.f32.mrb[0].mxu0
  %v474 = vadd.f32 %v129, %v473
  %v475 = vpop.f32.mrb[0].mxu0
  %476 = vmatprep.mubr.bf16.mxu0 0
  %477 = vmatmul.mubr.bf16.gmra.mrb[0].mxu0 %v208
  %v478 = vpop.f32.mrb[0].mxu0
  %v479 = vadd.f32 %v129, %v478
  %v480 = vpop.f32.mrb[0].mxu0
  %v481 = vpop.f32.mrb[0].mxu0
  %v482 = vadd.f32 %v129, %v481
  %v483 = vpop.f32.mrb[0].mxu0
  %484 = vmatprep.mubr.bf16.mxu0 0
  %485 = vmatmul.mubr.bf16.gmra.mrb[0].mxu0 %v211
  %v486 = vpop.f32.mrb[0].mxu0
  %v487 = vadd.f32 %v129, %v486
  %v488 = vpop.f32.mrb[0].mxu0
  %v489 = vpop.f32.mrb[0].mxu0
  %v490 = vadd.f32 %v129, %v489
  %v491 = vpop.f32.mrb[0].mxu0
  %492 = vmatprep.mubr.bf16.mxu0 0
  %493 = vmatmul.mubr.bf16.gmra.mrb[0].mxu0 %v214
  %v494 = vpop.f32.mrb[0].mxu0
  %v495 = vadd.f32 %v129, %v494
  %v496 = vpop.f32.mrb[0].mxu0
  %v497 = vpop.f32.mrb[0].mxu0
  %v498 = vadd.f32 %v129, %v497
  %v499 = vpop.f32.mrb[0].mxu0
  %500 = vmatprep.mubr.bf16.mxu0 0
  %501 = vmatmul.mubr.bf16.gmra.mrb[0].mxu0 %v217
  %v502 = vpop.f32.mrb[0].mxu0
  %v503 = vadd.f32 %v129, %v502
  %v504 = vpop.f32.mrb[0].mxu0
  %v505 = vpop.f32.mrb[0].mxu0
  %v506 = vadd.f32 %v129, %v505
  %v507 = vpop.f32.mrb[0].mxu0
  %508 = vmatprep.mubr.bf16.mxu0 0
  %509 = vmatmul.mubr.bf16.gmra.mrb[0].mxu0 %v220
  %v510 = vpop.f32.mrb[0].mxu0
  %v511 = vadd.f32 %v129, %v510
  %v512 = vpop.f32.mrb[0].mxu0
  %v513 = vpop.f32.mrb[0].mxu0
  %v514 = vadd.f32 %v129, %v513
  %v515 = vpop.f32.mrb[0].mxu0
  %516 = vmatprep.mubr.bf16.mxu0 0
  %517 = vmatmul.mubr.bf16.gmra.mrb[0].mxu0 %v223
  %v518 = vpop.f32.mrb[0].mxu0
  %v519 = vadd.f32 %v129, %v518
  %v520 = vpop.f32.mrb[0].mxu0
  %v521 = vpop.f32.mrb[0].mxu0
  %v522 = vadd.f32 %v129, %v521
  %v523 = vpop.f32.mrb[0].mxu0
  %524 = vmatprep.mubr.bf16.mxu0 0
  %525 = vmatmul.mubr.bf16.gmra.mrb[0].mxu0 %v226
  %v526 = vpop.f32.mrb[0].mxu0
  %v527 = vadd.f32 %v129, %v526
  %v528 = vpop.f32.mrb[0].mxu0
  %v529 = vpop.f32.mrb[0].mxu0
  %v530 = vadd.f32 %v129, %v529
  %v531 = vpop.f32.mrb[0].mxu0
  %532 = vmatprep.mubr.bf16.mxu0 0
  %533 = vmatmul.mubr.bf16.gmra.mrb[0].mxu0 %v229
  %v534 = vpop.f32.mrb[0].mxu0
  %v535 = vadd.f32 %v129, %v534
  %v536 = vpop.f32.mrb[0].mxu0
  %v537 = vpop.f32.mrb[0].mxu0
  %v538 = vadd.f32 %v129, %v537
  %v539 = vpop.f32.mrb[0].mxu0
  %540 = vmatprep.mubr.bf16.mxu0 0
  %541 = vmatmul.mubr.bf16.gmra.mrb[0].mxu0 %v232
  %v542 = vpop.f32.mrb[0].mxu0
  %v543 = vadd.f32 %v129, %v542
  %v544 = vpop.f32.mrb[0].mxu0
  %v545 = vpop.f32.mrb[0].mxu0
  %v546 = vadd.f32 %v129, %v545
  %v547 = vpop.f32.mrb[0].mxu0
  %548 = vmatprep.mubr.bf16.mxu0 0
  %549 = vmatmul.mubr.bf16.gmra.mrb[0].mxu0 %v235
  %v550 = vpop.f32.mrb[0].mxu0
  %v551 = vadd.f32 %v129, %v550
  %v552 = vpop.f32.mrb[0].mxu0
  %v553 = vpop.f32.mrb[0].mxu0
  %v554 = vadd.f32 %v129, %v553
  %v555 = vpop.f32.mrb[0].mxu0
  %556 = vmatprep.mubr.bf16.mxu0 0
  %557 = vmatmul.mubr.bf16.gmra.mrb[0].mxu0 %v238
  %v558 = vpop.f32.mrb[0].mxu0
  %v559 = vadd.f32 %v129, %v558
  %v560 = vpop.f32.mrb[0].mxu0
  %v561 = vpop.f32.mrb[0].mxu0
  %v562 = vadd.f32 %v129, %v561
  %v563 = vpop.f32.mrb[0].mxu0
  %564 = vdwg.mxu0
  %565 = vst.msk [vmem:[%s3] sm:$0xff] %vm131, %v279
  %566 = vst.msk [vmem:[%s3 + $0x8] sm:$0xff] %vm131, %v282
  %567 = vst.msk [vmem:[%s3 + $0x10] sm:$0xff] %vm131, %v287
  %568 = vst.msk [vmem:[%s3 + $0x18] sm:$0xff] %vm131, %v290
  %569 = vst.msk [vmem:[%s3 + $0x20] sm:$0xff] %vm131, %v295
  %570 = vst.msk [vmem:[%s3 + $0x28] sm:$0xff] %vm131, %v298
  %571 = vst.msk [vmem:[%s3 + $0x30] sm:$0xff] %vm131, %v303
  %572 = vst.msk [vmem:[%s3 + $0x38] sm:$0xff] %vm131, %v306
  %573 = vst.msk [vmem:[%s3 + $0x40] sm:$0xff] %vm131, %v311
  %574 = vst.msk [vmem:[%s3 + $0x48] sm:$0xff] %vm131, %v314
  %575 = vst.msk [vmem:[%s3 + $0x50] sm:$0xff] %vm131, %v319
  %576 = vst.msk [vmem:[%s3 + $0x58] sm:$0xff] %vm131, %v322
  %577 = vst.msk [vmem:[%s3 + $0x60] sm:$0xff] %vm131, %v327
  %578 = vst.msk [vmem:[%s3 + $0x68] sm:$0xff] %vm131, %v330
  %579 = vst.msk [vmem:[%s3 + $0x70] sm:$0xff] %vm131, %v335
  %580 = vst.msk [vmem:[%s3 + $0x78] sm:$0xff] %vm131, %v338
  %581 = vst.msk [vmem:[%s3 + $0x80] sm:$0xff] %vm131, %v343
  %582 = vst.msk [vmem:[%s3 + $0x88] sm:$0xff] %vm131, %v346
  %583 = vst.msk [vmem:[%s3 + $0x90] sm:$0xff] %vm131, %v351
  %584 = vst.msk [vmem:[%s3 + $0x98] sm:$0xff] %vm131, %v354
  %585 = vst.msk [vmem:[%s3 + $0xa0] sm:$0xff] %vm131, %v359
  %586 = vst.msk [vmem:[%s3 + $0xa8] sm:$0xff] %vm131, %v362
  %587 = vst.msk [vmem:[%s3 + $0xb0] sm:$0xff] %vm131, %v367
  %588 = vst.msk [vmem:[%s3 + $0xb8] sm:$0xff] %vm131, %v370
  %589 = vst.msk [vmem:[%s3 + $0xc0] sm:$0xff] %vm131, %v375
  %590 = vst.msk [vmem:[%s3 + $0xc8] sm:$0xff] %vm131, %v378
  %591 = vst.msk [vmem:[%s3 + $0xd0] sm:$0xff] %vm131, %v383
  %592 = vst.msk [vmem:[%s3 + $0xd8] sm:$0xff] %vm131, %v386
  %593 = vst.msk [vmem:[%s3 + $0xe0] sm:$0xff] %vm131, %v391
  %594 = vst.msk [vmem:[%s3 + $0xe8] sm:$0xff] %vm131, %v394
  %595 = vst.msk [vmem:[%s3 + $0xf0] sm:$0xff] %vm131, %v399
  %596 = vst.msk [vmem:[%s3 + $0xf8] sm:$0xff] %vm131, %v402
  %597 = vst.msk [vmem:[%s3 + $0x100] sm:$0xff] %vm131, %v407
  %598 = vst.msk [vmem:[%s3 + $0x108] sm:$0xff] %vm131, %v410
  %599 = vst.msk [vmem:[%s3 + $0x110] sm:$0xff] %vm131, %v415
  %600 = vst.msk [vmem:[%s3 + $0x118] sm:$0xff] %vm131, %v418
  %601 = vst.msk [vmem:[%s3 + $0x120] sm:$0xff] %vm131, %v423
  %602 = vst.msk [vmem:[%s3 + $0x128] sm:$0xff] %vm131, %v426
  %603 = vst.msk [vmem:[%s3 + $0x130] sm:$0xff] %vm131, %v431
  %604 = vst.msk [vmem:[%s3 + $0x138] sm:$0xff] %vm131, %v434
  %605 = vst.msk [vmem:[%s3 + $0x140] sm:$0xff] %vm131, %v439
  %606 = vst.msk [vmem:[%s3 + $0x148] sm:$0xff] %vm131, %v442
  %607 = vst.msk [vmem:[%s3 + $0x150] sm:$0xff] %vm131, %v447
  %608 = vst.msk [vmem:[%s3 + $0x158] sm:$0xff] %vm131, %v450
  %609 = vst.msk [vmem:[%s3 + $0x160] sm:$0xff] %vm131, %v455
  %610 = vst.msk [vmem:[%s3 + $0x168] sm:$0xff] %vm131, %v458
  %611 = vst.msk [vmem:[%s3 + $0x170] sm:$0xff] %vm131, %v463
  %612 = vst.msk [vmem:[%s3 + $0x178] sm:$0xff] %vm131, %v466
  %613 = vst.msk [vmem:[%s3 + $0x180] sm:$0xff] %vm131, %v471
  %614 = vst.msk [vmem:[%s3 + $0x188] sm:$0xff] %vm131, %v474
  %615 = vst.msk [vmem:[%s3 + $0x190] sm:$0xff] %vm131, %v479
  %616 = vst.msk [vmem:[%s3 + $0x198] sm:$0xff] %vm131, %v482
  %617 = vst.msk [vmem:[%s3 + $0x1a0] sm:$0xff] %vm131, %v487
  %618 = vst.msk [vmem:[%s3 + $0x1a8] sm:$0xff] %vm131, %v490
  %619 = vst.msk [vmem:[%s3 + $0x1b0] sm:$0xff] %vm131, %v495
  %620 = vst.msk [vmem:[%s3 + $0x1b8] sm:$0xff] %vm131, %v498
  %621 = vst.msk [vmem:[%s3 + $0x1c0] sm:$0xff] %vm131, %v503
  %622 = vst.msk [vmem:[%s3 + $0x1c8] sm:$0xff] %vm131, %v506
  %623 = vst.msk [vmem:[%s3 + $0x1d0] sm:$0xff] %vm131, %v511
  %624 = vst.msk [vmem:[%s3 + $0x1d8] sm:$0xff] %vm131, %v514
  %625 = vst.msk [vmem:[%s3 + $0x1e0] sm:$0xff] %vm131, %v519
  %626 = vst.msk [vmem:[%s3 + $0x1e8] sm:$0xff] %vm131, %v522
  %627 = vst.msk [vmem:[%s3 + $0x1f0] sm:$0xff] %vm131, %v527
  %628 = vst.msk [vmem:[%s3 + $0x1f8] sm:$0xff] %vm131, %v530
  %629 = vst.msk [vmem:[%s3 + $0x200] sm:$0xff] %vm131, %v535
  %630 = vst.msk [vmem:[%s3 + $0x208] sm:$0xff] %vm131, %v538
  %631 = vst.msk [vmem:[%s3 + $0x210] sm:$0xff] %vm131, %v543
  %632 = vst.msk [vmem:[%s3 + $0x218] sm:$0xff] %vm131, %v546
  %633 = vst.msk [vmem:[%s3 + $0x220] sm:$0xff] %vm131, %v551
  %634 = vst.msk [vmem:[%s3 + $0x228] sm:$0xff] %vm131, %v554
  %635 = vst.msk [vmem:[%s3 + $0x230] sm:$0xff] %vm131, %v559
  %636 = vst.msk [vmem:[%s3 + $0x238] sm:$0xff] %vm131, %v562
  // Predicated region
  $region14: #{fastfc_forward.20} parent=0 // pred_check
    _
  $region15: #{fastfc_forward.20} parent=0 // pred_check_branch
    %638 = sbr.rel (0) target = $region17
  $region16: #{fastfc_forward.20} parent=0 // pred_region
    _
  $region17: #{fastfc_forward.20} parent=0 // pred_fallthru
    _
  // Predicated region
  $region18: #{fastfc_forward.20} parent=0 // pred_check
    _
  $region19: #{fastfc_forward.20} parent=0 // pred_check_branch
    %640 = sbr.rel (0) target = $region21
  $region20: #{fastfc_forward.20} parent=0 // pred_region
    _
  $region21: #{fastfc_forward.20} parent=0 // pred_fallthru
    _

// kernel: fastfc_forward.22
$region0: #{fastfc_forward.22}
  #allocation0 [shape = 'u32[]', space=smem, size = 0x4, offset = 0x4, fixed_abs, tag = 'smem constant byte address 0x4 - core index']
  #allocation1 [shape = 'u32[144,128]{1,0:T(1,128)}', space=vmem, size = 0x12000, scoped, tag = 'internal scratch']
  %s0 = inlined_call_operand.vmem [shape: f32[9,128], index: 0, kind: input, shape index: {}]
  %s1 = inlined_call_operand.vmem [shape: f32[1,128], index: 1, kind: input, shape index: {}]
  %s2 = inlined_call_operand.vmem [shape: f32[1,128], index: 2, kind: input, shape index: {}]
  %s3 = inlined_call_operand.vmem [shape: f32[1,128], index: 3, kind: input, shape index: {}]
  %s4 = inlined_call_operand.vmem [shape: f32[9,128], index: 4, kind: output, shape index: {}]
  %s5 = sld [smem:[#allocation0]]
  $region26: #{fastfc_forward.22} parent=0
    _
  %s7 = ssub.s32 1, %s5
  %s8 = scalar_select 0, %s7, %s5
  // Predicated region
  $region2: #{fastfc_forward.22} parent=0 // pred_check
    _
  $region3: #{fastfc_forward.22} parent=0 // pred_check_branch
    %10 = sbr.rel (0) target = $region5
  $region4: #{fastfc_forward.22} parent=0 // pred_region
    _
  $region5: #{fastfc_forward.22} parent=0 // pred_fallthru
    _
  // Predicated region
  $region6: #{fastfc_forward.22} parent=0 // pred_check
    _
  $region7: #{fastfc_forward.22} parent=0 // pred_check_branch
    %12 = sbr.rel (0) target = $region9
  $region8: #{fastfc_forward.22} parent=0 // pred_region
    _
  $region9: #{fastfc_forward.22} parent=0 // pred_fallthru
    _
  // Predicated region
  $region10: #{fastfc_forward.22} parent=0 // pred_check
    _
  $region11: #{fastfc_forward.22} parent=0 // pred_check_branch
    %14 = sbr.rel (0) target = $region13
  $region12: #{fastfc_forward.22} parent=0 // pred_region
    _
  $region13: #{fastfc_forward.22} parent=0 // pred_fallthru
    _
  // Predicated region
  $region14: #{fastfc_forward.22} parent=0 // pred_check
    _
  $region15: #{fastfc_forward.22} parent=0 // pred_check_branch
    %16 = sbr.rel (0) target = $region17
  $region16: #{fastfc_forward.22} parent=0 // pred_region
    _
  $region17: #{fastfc_forward.22} parent=0 // pred_fallthru
    _
  %v17 = vld [vmem:[%s0] sm:$0xff]
  %v18 = vld [vmem:[%s0 + $0x8] sm:$0x1]
  %v19 = vld [vmem:[%s1] sm:$0x1]
  %v21 = vlaneseq
  %v22 = vshrl.u32 %v21, 7
  %v23 = vsub.s32 0, %v22
  %v24 = vrot.slane %v19, %v23
  %v26 = vmul.f32 %v17, %v24
  %v27 = vmul.f32 %v18, %v24
  %v28 = vld [vmem:[%s2] sm:$0x1]
  %v30 = vlaneseq
  %v31 = vshrl.u32 %v30, 7
  %v32 = vsub.s32 0, %v31
  %v33 = vrot.slane %v28, %v32
  %v35 = vadd.f32 %v26, %v33
  %v36 = vadd.f32 %v27, %v33
  %vm37 = vcmp.ge.f32.partialorder %v35, 0.0
  %vm38 = vcmp.ge.f32.partialorder %v36, 0.0
  %v39 = vld [vmem:[%s3] sm:$0x1]
  %v41 = vlaneseq
  %v42 = vshrl.u32 %v41, 7
  %v43 = vsub.s32 0, %v42
  %v44 = vrot.slane %v39, %v43
  %v46 = vmul.f32 %v44, %v35
  %v47 = vmul.f32 %v44, %v36
  %v48 = vsel %vm37, %v35, %v46
  %v49 = vsel %vm38, %v36, %v47
  %50 = vst [vmem:[%s4] sm:$0xff] %v48
  %51 = vst [vmem:[%s4 + $0x8] sm:$0x1] %v49
  // Predicated region
  $region18: #{fastfc_forward.22} parent=0 // pred_check
    _
  $region19: #{fastfc_forward.22} parent=0 // pred_check_branch
    %53 = sbr.rel (0) target = $region21
  $region20: #{fastfc_forward.22} parent=0 // pred_region
    _
  $region21: #{fastfc_forward.22} parent=0 // pred_fallthru
    _
  // Predicated region
  $region22: #{fastfc_forward.22} parent=0 // pred_check
    _
  $region23: #{fastfc_forward.22} parent=0 // pred_check_branch
    %55 = sbr.rel (0) target = $region25
  $region24: #{fastfc_forward.22} parent=0 // pred_region
    _
  $region25: #{fastfc_forward.22} parent=0 // pred_fallthru
    _

// kernel: reverse.1
$region0: #{reverse.1}
  %s0 = inlined_call_operand.vmem [shape: f32[2,2,16,7], index: 0, kind: input, shape index: {}]
  %s1 = inlined_call_operand.vmem [shape: f32[2,2,16,7], index: 1, kind: output, shape index: {}]
  $region1: #{reverse.1} parent=0
    #allocation0 [shape = 'u8[32768]{0}', space=vmem, size = 0x8000, scoped, tag = 'operand span for operand 0']
    #allocation1 [shape = 'u8[16384]{0}', space=vmem, size = 0x4000, scoped, tag = 'operand span for operand 1']
    %s2 = scalar_lea.vmem [#allocation0], 8
    // Predicated region
    $region2: #{reverse.1} parent=1 // pred_check
      _
    $region3: #{reverse.1} parent=1 // pred_check_branch
      %4 = sbr.rel (0) target = $region5
    $region4: #{reverse.1} parent=1 // pred_region
      // Predicated region
      $region6: #{reverse.1} parent=4 // pred_check
        _
      $region7: #{reverse.1} parent=4 // pred_check_branch
        %6 = sbr.rel (0) target = $region9
      $region8: #{reverse.1} parent=4 // pred_region
        // Predicated region
        $region21: #{reverse.1} parent=8 // pred_check
          _
        $region22: #{reverse.1} parent=8 // pred_check_branch
          %27 = sbr.rel (0) target = $region24
        $region23: #{reverse.1} parent=8 // pred_region
          loop: start=0, step=1, limit=1
          $region25: #{reverse.1} parent=23 // loop_pre_header
            _
          $region26: #{reverse.1} parent=23 // loop_header
            %s29 = sphi 0, %s33
            %p30 = scmp.ge.s32.totalorder %s29, 1
            %s34 = sphi %s0, %s0
            %s35 = sphi %s2, %s2
          $region27: #{reverse.1} parent=23 // loop_header_branch
            %32 = sbr.rel (%p30) target = $region31
          $region28: #{reverse.1} parent=23 // loop_body
            %v36 = vld [vmem:[%s34] sm:$0xff]
            %37 = vst [vmem:[%s35] sm:$0xff] %v36
            %v38 = vld [vmem:[%s34 + $0x8] sm:$0xff]
            %39 = vst [vmem:[%s35 + $0x10] sm:$0xff] %v38
            %v40 = vld [vmem:[%s34 + $0x10] sm:$0xff]
            %41 = vst [vmem:[%s35 + $0x20] sm:$0xff] %v40
            %v42 = vld [vmem:[%s34 + $0x18] sm:$0xff]
            %43 = vst [vmem:[%s35 + $0x30] sm:$0xff] %v42
          $region29: #{reverse.1} parent=23 // loop_footer
            %s33 = sadd.s32 1, %s29
          $region30: #{reverse.1} parent=23 // loop_footer_branch
            %28 = sbr.rel target = $region26
          $region31: #{reverse.1} parent=23 // loop_exit
            _
        $region24: #{reverse.1} parent=8 // pred_fallthru
          _
        // Predicated region
        $region32: #{reverse.1} parent=8 // pred_check
          _
        $region33: #{reverse.1} parent=8 // pred_check_branch
          %45 = sbr.rel target = $region35
        $region34: #{reverse.1} parent=8 // pred_region
          _
        $region35: #{reverse.1} parent=8 // pred_fallthru
          _
      $region9: #{reverse.1} parent=4 // pred_fallthru
        _
      // Predicated region
      $region10: #{reverse.1} parent=4 // pred_check
        _
      $region11: #{reverse.1} parent=4 // pred_check_branch
        %8 = sbr.rel target = $region13
      $region12: #{reverse.1} parent=4 // pred_region
        loop: start=0, step=1, limit=1
        $region14: #{reverse.1} parent=12 // loop_pre_header
          _
        $region15: #{reverse.1} parent=12 // loop_header
          %s11 = sphi 0, %s15
          %p12 = scmp.ge.s32.totalorder %s11, 1
          %s16 = sphi %s0, %s0
          %s17 = sphi %s2, %s2
        $region16: #{reverse.1} parent=12 // loop_header_branch
          %14 = sbr.rel (%p12) target = $region20
        $region17: #{reverse.1} parent=12 // loop_body
          %v18 = vld [vmem:[%s16] sm:$0xff]
          %19 = vst [vmem:[%s17] sm:$0xff] %v18
          %v20 = vld [vmem:[%s16 + $0x8] sm:$0xff]
          %21 = vst [vmem:[%s17 + $0x10] sm:$0xff] %v20
          %v22 = vld [vmem:[%s16 + $0x10] sm:$0xff]
          %23 = vst [vmem:[%s17 + $0x20] sm:$0xff] %v22
          %v24 = vld [vmem:[%s16 + $0x18] sm:$0xff]
          %25 = vst [vmem:[%s17 + $0x30] sm:$0xff] %v24
        $region18: #{reverse.1} parent=12 // loop_footer
          %s15 = sadd.s32 1, %s11
        $region19: #{reverse.1} parent=12 // loop_footer_branch
          %10 = sbr.rel target = $region15
        $region20: #{reverse.1} parent=12 // loop_exit
          _
      $region13: #{reverse.1} parent=4 // pred_fallthru
        _
    $region5: #{reverse.1} parent=1 // pred_fallthru
      _
    %46 = vnop
    %s47 = scalar_lea.vmem [#allocation0], 7
    %v48 = vld [vmem:[%s47] ss:$-1 sm:$0xff]
    %v49 = vrot.slane %v48, 1
    %50 = vst [vmem:[#allocation1] sm:$0xff] %v49
    %s51 = scalar_lea.vmem [#allocation0], 8
    %s52 = scalar_lea.vmem %s51, 7 [#allocation0]
    %v53 = vld [vmem:[%s52] ss:$-1 sm:$0xff]
    %v54 = vrot.slane %v53, 1
    %v55 = vlaneseq
    %v56 = vshrl.u32 %v55, 7
    %vm57 = vcmp.lt.s32.totalorder %v56, 7
    %58 = vst.msk [vmem:[#allocation1] sm:$0xff] %vm57, %v54
    %s59 = scalar_lea.vmem [#allocation1], 8
    %s60 = scalar_lea.vmem [#allocation0], 16
    %s61 = scalar_lea.vmem %s60, 7 [#allocation0]
    %v62 = vld [vmem:[%s61] ss:$-1 sm:$0xff]
    %v63 = vrot.slane %v62, 1
    %64 = vst [vmem:[%s59] sm:$0xff] %v63
    %s65 = scalar_lea.vmem %s60, 8 [#allocation0]
    %s66 = scalar_lea.vmem %s65, 7 [#allocation0]
    %v67 = vld [vmem:[%s66] ss:$-1 sm:$0xff]
    %v68 = vrot.slane %v67, 1
    %v69 = vlaneseq
    %v70 = vshrl.u32 %v69, 7
    %vm71 = vcmp.lt.s32.totalorder %v70, 7
    %72 = vst.msk [vmem:[%s59] sm:$0xff] %vm71, %v68
    %s73 = scalar_lea.vmem [#allocation1], 16
    %s74 = scalar_lea.vmem [#allocation0], 32
    %s75 = scalar_lea.vmem %s74, 7 [#allocation0]
    %v76 = vld [vmem:[%s75] ss:$-1 sm:$0xff]
    %v77 = vrot.slane %v76, 1
    %78 = vst [vmem:[%s73] sm:$0xff] %v77
    %s79 = scalar_lea.vmem %s74, 8 [#allocation0]
    %s80 = scalar_lea.vmem %s79, 7 [#allocation0]
    %v81 = vld [vmem:[%s80] ss:$-1 sm:$0xff]
    %v82 = vrot.slane %v81, 1
    %v83 = vlaneseq
    %v84 = vshrl.u32 %v83, 7
    %vm85 = vcmp.lt.s32.totalorder %v84, 7
    %86 = vst.msk [vmem:[%s73] sm:$0xff] %vm85, %v82
    %s87 = scalar_lea.vmem [#allocation1], 24
    %s88 = scalar_lea.vmem [#allocation0], 48
    %s89 = scalar_lea.vmem %s88, 7 [#allocation0]
    %v90 = vld [vmem:[%s89] ss:$-1 sm:$0xff]
    %v91 = vrot.slane %v90, 1
    %92 = vst [vmem:[%s87] sm:$0xff] %v91
    %s93 = scalar_lea.vmem %s88, 8 [#allocation0]
    %s94 = scalar_lea.vmem %s93, 7 [#allocation0]
    %v95 = vld [vmem:[%s94] ss:$-1 sm:$0xff]
    %v96 = vrot.slane %v95, 1
    %v97 = vlaneseq
    %v98 = vshrl.u32 %v97, 7
    %vm99 = vcmp.lt.s32.totalorder %v98, 7
    %100 = vst.msk [vmem:[%s87] sm:$0xff] %vm99, %v96
    // Predicated region
    $region36: #{reverse.1} parent=1 // pred_check
      _
    $region37: #{reverse.1} parent=1 // pred_check_branch
      %102 = sbr.rel (0) target = $region39
    $region38: #{reverse.1} parent=1 // pred_region
      // Predicated region
      $region40: #{reverse.1} parent=38 // pred_check
        _
      $region41: #{reverse.1} parent=38 // pred_check_branch
        %104 = sbr.rel (0) target = $region43
      $region42: #{reverse.1} parent=38 // pred_region
        // Predicated region
        $region55: #{reverse.1} parent=42 // pred_check
          _
        $region56: #{reverse.1} parent=42 // pred_check_branch
          %125 = sbr.rel (0) target = $region58
        $region57: #{reverse.1} parent=42 // pred_region
          loop: start=0, step=1, limit=1
          $region59: #{reverse.1} parent=57 // loop_pre_header
            _
          $region60: #{reverse.1} parent=57 // loop_header
            %s127 = sphi 0, %s131
            %p128 = scmp.ge.s32.totalorder %s127, 1
            %s132 = sphi [#allocation1], [#allocation1]
            %s133 = sphi %s1, %s1
          $region61: #{reverse.1} parent=57 // loop_header_branch
            %130 = sbr.rel (%p128) target = $region65
          $region62: #{reverse.1} parent=57 // loop_body
            %v134 = vld [vmem:[%s132] sm:$0xff]
            %135 = vst [vmem:[%s133] sm:$0xff] %v134
            %v136 = vld [vmem:[%s132 + $0x8] sm:$0xff]
            %137 = vst [vmem:[%s133 + $0x8] sm:$0xff] %v136
            %v138 = vld [vmem:[%s132 + $0x10] sm:$0xff]
            %139 = vst [vmem:[%s133 + $0x10] sm:$0xff] %v138
            %v140 = vld [vmem:[%s132 + $0x18] sm:$0xff]
            %141 = vst [vmem:[%s133 + $0x18] sm:$0xff] %v140
          $region63: #{reverse.1} parent=57 // loop_footer
            %s131 = sadd.s32 1, %s127
          $region64: #{reverse.1} parent=57 // loop_footer_branch
            %126 = sbr.rel target = $region60
          $region65: #{reverse.1} parent=57 // loop_exit
            _
        $region58: #{reverse.1} parent=42 // pred_fallthru
          _
        // Predicated region
        $region66: #{reverse.1} parent=42 // pred_check
          _
        $region67: #{reverse.1} parent=42 // pred_check_branch
          %143 = sbr.rel target = $region69
        $region68: #{reverse.1} parent=42 // pred_region
          _
        $region69: #{reverse.1} parent=42 // pred_fallthru
          _
      $region43: #{reverse.1} parent=38 // pred_fallthru
        _
      // Predicated region
      $region44: #{reverse.1} parent=38 // pred_check
        _
      $region45: #{reverse.1} parent=38 // pred_check_branch
        %106 = sbr.rel target = $region47
      $region46: #{reverse.1} parent=38 // pred_region
        loop: start=0, step=1, limit=1
        $region48: #{reverse.1} parent=46 // loop_pre_header
          _
        $region49: #{reverse.1} parent=46 // loop_header
          %s109 = sphi 0, %s113
          %p110 = scmp.ge.s32.totalorder %s109, 1
          %s114 = sphi [#allocation1], [#allocation1]
          %s115 = sphi %s1, %s1
        $region50: #{reverse.1} parent=46 // loop_header_branch
          %112 = sbr.rel (%p110) target = $region54
        $region51: #{reverse.1} parent=46 // loop_body
          %v116 = vld [vmem:[%s114] sm:$0xff]
          %117 = vst [vmem:[%s115] sm:$0xff] %v116
          %v118 = vld [vmem:[%s114 + $0x8] sm:$0xff]
          %119 = vst [vmem:[%s115 + $0x8] sm:$0xff] %v118
          %v120 = vld [vmem:[%s114 + $0x10] sm:$0xff]
          %121 = vst [vmem:[%s115 + $0x10] sm:$0xff] %v120
          %v122 = vld [vmem:[%s114 + $0x18] sm:$0xff]
          %123 = vst [vmem:[%s115 + $0x18] sm:$0xff] %v122
        $region52: #{reverse.1} parent=46 // loop_footer
          %s113 = sadd.s32 1, %s109
        $region53: #{reverse.1} parent=46 // loop_footer_branch
          %108 = sbr.rel target = $region49
        $region54: #{reverse.1} parent=46 // loop_exit
          _
      $region47: #{reverse.1} parent=38 // pred_fallthru
        _
    $region39: #{reverse.1} parent=1 // pred_fallthru
      _
    %144 = vnop

// kernel: fastfc_forward.23
$region0: #{fastfc_forward.23}
  #allocation0 [shape = 'u32[]', space=smem, size = 0x4, offset = 0x4, fixed_abs, tag = 'smem constant byte address 0x4 - core index']
  #allocation1 [shape = 'u32[144,128]{1,0:T(1,128)}', space=vmem, size = 0x12000, scoped, tag = 'internal scratch']
  %s0 = inlined_call_operand.vmem [shape: f32[512,2], index: 0, kind: input, shape index: {}]
  %s1 = inlined_call_operand.vmem [shape: f32[512,2], index: 1, kind: input, shape index: {}]
  %s2 = inlined_call_operand.vmem [shape: bf16[2,4], index: 2, kind: input, shape index: {}]
  %s3 = inlined_call_operand.vmem [shape: f32[1,4], index: 3, kind: input, shape index: {}]
  %s4 = inlined_call_operand.vmem [shape: f32[512,4], index: 4, kind: output, shape index: {}]
  %s5 = sld [smem:[#allocation0]]
  $region26: #{fastfc_forward.23} parent=0
    _
  %s7 = ssub.s32 1, %s5
  %s8 = scalar_select 0, %s7, %s5
  // Predicated region
  $region2: #{fastfc_forward.23} parent=0 // pred_check
    _
  $region3: #{fastfc_forward.23} parent=0 // pred_check_branch
    %10 = sbr.rel (0) target = $region5
  $region4: #{fastfc_forward.23} parent=0 // pred_region
    _
  $region5: #{fastfc_forward.23} parent=0 // pred_fallthru
    _
  // Predicated region
  $region6: #{fastfc_forward.23} parent=0 // pred_check
    _
  $region7: #{fastfc_forward.23} parent=0 // pred_check_branch
    %12 = sbr.rel (0) target = $region9
  $region8: #{fastfc_forward.23} parent=0 // pred_region
    _
  $region9: #{fastfc_forward.23} parent=0 // pred_fallthru
    _
  // Predicated region
  $region10: #{fastfc_forward.23} parent=0 // pred_check
    _
  $region11: #{fastfc_forward.23} parent=0 // pred_check_branch
    %14 = sbr.rel (0) target = $region13
  $region12: #{fastfc_forward.23} parent=0 // pred_region
    _
  $region13: #{fastfc_forward.23} parent=0 // pred_fallthru
    _
  // Predicated region
  $region14: #{fastfc_forward.23} parent=0 // pred_check
    _
  $region15: #{fastfc_forward.23} parent=0 // pred_check_branch
    %16 = sbr.rel (0) target = $region17
  $region16: #{fastfc_forward.23} parent=0 // pred_region
    _
  $region17: #{fastfc_forward.23} parent=0 // pred_fallthru
    _
  %v18 = vld [vmem:[%s0] sm:$0xff]
  %v19 = vld [vmem:[%s0 + $0x8] sm:$0xff]
  %v20 = vld [vmem:[%s0 + $0x10] sm:$0xff]
  %v21 = vld [vmem:[%s0 + $0x18] sm:$0xff]
  %v22 = vld [vmem:[%s0 + $0x20] sm:$0xff]
  %v23 = vld [vmem:[%s0 + $0x28] sm:$0xff]
  %v24 = vld [vmem:[%s0 + $0x30] sm:$0xff]
  %v25 = vld [vmem:[%s0 + $0x38] sm:$0xff]
  %v26 = vld [vmem:[%s0 + $0x40] sm:$0xff]
  %v27 = vld [vmem:[%s0 + $0x48] sm:$0xff]
  %v28 = vld [vmem:[%s0 + $0x50] sm:$0xff]
  %v29 = vld [vmem:[%s0 + $0x58] sm:$0xff]
  %v30 = vld [vmem:[%s0 + $0x60] sm:$0xff]
  %v31 = vld [vmem:[%s0 + $0x68] sm:$0xff]
  %v32 = vld [vmem:[%s0 + $0x70] sm:$0xff]
  %v33 = vld [vmem:[%s0 + $0x78] sm:$0xff]
  %v34 = vld [vmem:[%s0 + $0x80] sm:$0xff]
  %v35 = vld [vmem:[%s0 + $0x88] sm:$0xff]
  %v36 = vld [vmem:[%s0 + $0x90] sm:$0xff]
  %v37 = vld [vmem:[%s0 + $0x98] sm:$0xff]
  %v38 = vld [vmem:[%s0 + $0xa0] sm:$0xff]
  %v39 = vld [vmem:[%s0 + $0xa8] sm:$0xff]
  %v40 = vld [vmem:[%s0 + $0xb0] sm:$0xff]
  %v41 = vld [vmem:[%s0 + $0xb8] sm:$0xff]
  %v42 = vld [vmem:[%s0 + $0xc0] sm:$0xff]
  %v43 = vld [vmem:[%s0 + $0xc8] sm:$0xff]
  %v44 = vld [vmem:[%s0 + $0xd0] sm:$0xff]
  %v45 = vld [vmem:[%s0 + $0xd8] sm:$0xff]
  %v46 = vld [vmem:[%s0 + $0xe0] sm:$0xff]
  %v47 = vld [vmem:[%s0 + $0xe8] sm:$0xff]
  %v48 = vld [vmem:[%s0 + $0xf0] sm:$0xff]
  %v49 = vld [vmem:[%s0 + $0xf8] sm:$0xff]
  %v50 = vld [vmem:[%s0 + $0x100] sm:$0xff]
  %v51 = vld [vmem:[%s0 + $0x108] sm:$0xff]
  %v52 = vld [vmem:[%s0 + $0x110] sm:$0xff]
  %v53 = vld [vmem:[%s0 + $0x118] sm:$0xff]
  %v54 = vld [vmem:[%s0 + $0x120] sm:$0xff]
  %v55 = vld [vmem:[%s0 + $0x128] sm:$0xff]
  %v56 = vld [vmem:[%s0 + $0x130] sm:$0xff]
  %v57 = vld [vmem:[%s0 + $0x138] sm:$0xff]
  %v58 = vld [vmem:[%s0 + $0x140] sm:$0xff]
  %v59 = vld [vmem:[%s0 + $0x148] sm:$0xff]
  %v60 = vld [vmem:[%s0 + $0x150] sm:$0xff]
  %v61 = vld [vmem:[%s0 + $0x158] sm:$0xff]
  %v62 = vld [vmem:[%s0 + $0x160] sm:$0xff]
  %v63 = vld [vmem:[%s0 + $0x168] sm:$0xff]
  %v64 = vld [vmem:[%s0 + $0x170] sm:$0xff]
  %v65 = vld [vmem:[%s0 + $0x178] sm:$0xff]
  %v66 = vld [vmem:[%s0 + $0x180] sm:$0xff]
  %v67 = vld [vmem:[%s0 + $0x188] sm:$0xff]
  %v68 = vld [vmem:[%s0 + $0x190] sm:$0xff]
  %v69 = vld [vmem:[%s0 + $0x198] sm:$0xff]
  %v70 = vld [vmem:[%s0 + $0x1a0] sm:$0xff]
  %v71 = vld [vmem:[%s0 + $0x1a8] sm:$0xff]
  %v72 = vld [vmem:[%s0 + $0x1b0] sm:$0xff]
  %v73 = vld [vmem:[%s0 + $0x1b8] sm:$0xff]
  %v74 = vld [vmem:[%s0 + $0x1c0] sm:$0xff]
  %v75 = vld [vmem:[%s0 + $0x1c8] sm:$0xff]
  %v76 = vld [vmem:[%s0 + $0x1d0] sm:$0xff]
  %v77 = vld [vmem:[%s0 + $0x1d8] sm:$0xff]
  %v78 = vld [vmem:[%s0 + $0x1e0] sm:$0xff]
  %v79 = vld [vmem:[%s0 + $0x1e8] sm:$0xff]
  %v80 = vld [vmem:[%s0 + $0x1f0] sm:$0xff]
  %v81 = vld [vmem:[%s0 + $0x1f8] sm:$0xff]
  %v82 = vld [vmem:[%s1] sm:$0xff]
  %v83 = vld [vmem:[%s1 + $0x8] sm:$0xff]
  %v84 = vld [vmem:[%s1 + $0x10] sm:$0xff]
  %v85 = vld [vmem:[%s1 + $0x18] sm:$0xff]
  %v86 = vld [vmem:[%s1 + $0x20] sm:$0xff]
  %v87 = vld [vmem:[%s1 + $0x28] sm:$0xff]
  %v88 = vld [vmem:[%s1 + $0x30] sm:$0xff]
  %v89 = vld [vmem:[%s1 + $0x38] sm:$0xff]
  %v90 = vld [vmem:[%s1 + $0x40] sm:$0xff]
  %v91 = vld [vmem:[%s1 + $0x48] sm:$0xff]
  %v92 = vld [vmem:[%s1 + $0x50] sm:$0xff]
  %v93 = vld [vmem:[%s1 + $0x58] sm:$0xff]
  %v94 = vld [vmem:[%s1 + $0x60] sm:$0xff]
  %v95 = vld [vmem:[%s1 + $0x68] sm:$0xff]
  %v96 = vld [vmem:[%s1 + $0x70] sm:$0xff]
  %v97 = vld [vmem:[%s1 + $0x78] sm:$0xff]
  %v98 = vld [vmem:[%s1 + $0x80] sm:$0xff]
  %v99 = vld [vmem:[%s1 + $0x88] sm:$0xff]
  %v100 = vld [vmem:[%s1 + $0x90] sm:$0xff]
  %v101 = vld [vmem:[%s1 + $0x98] sm:$0xff]
  %v102 = vld [vmem:[%s1 + $0xa0] sm:$0xff]
  %v103 = vld [vmem:[%s1 + $0xa8] sm:$0xff]
  %v104 = vld [vmem:[%s1 + $0xb0] sm:$0xff]
  %v105 = vld [vmem:[%s1 + $0xb8] sm:$0xff]
  %v106 = vld [vmem:[%s1 + $0xc0] sm:$0xff]
  %v107 = vld [vmem:[%s1 + $0xc8] sm:$0xff]
  %v108 = vld [vmem:[%s1 + $0xd0] sm:$0xff]
  %v109 = vld [vmem:[%s1 + $0xd8] sm:$0xff]
  %v110 = vld [vmem:[%s1 + $0xe0] sm:$0xff]
  %v111 = vld [vmem:[%s1 + $0xe8] sm:$0xff]
  %v112 = vld [vmem:[%s1 + $0xf0] sm:$0xff]
  %v113 = vld [vmem:[%s1 + $0xf8] sm:$0xff]
  %v114 = vld [vmem:[%s1 + $0x100] sm:$0xff]
  %v115 = vld [vmem:[%s1 + $0x108] sm:$0xff]
  %v116 = vld [vmem:[%s1 + $0x110] sm:$0xff]
  %v117 = vld [vmem:[%s1 + $0x118] sm:$0xff]
  %v118 = vld [vmem:[%s1 + $0x120] sm:$0xff]
  %v119 = vld [vmem:[%s1 + $0x128] sm:$0xff]
  %v120 = vld [vmem:[%s1 + $0x130] sm:$0xff]
  %v121 = vld [vmem:[%s1 + $0x138] sm:$0xff]
  %v122 = vld [vmem:[%s1 + $0x140] sm:$0xff]
  %v123 = vld [vmem:[%s1 + $0x148] sm:$0xff]
  %v124 = vld [vmem:[%s1 + $0x150] sm:$0xff]
  %v125 = vld [vmem:[%s1 + $0x158] sm:$0xff]
  %v126 = vld [vmem:[%s1 + $0x160] sm:$0xff]
  %v127 = vld [vmem:[%s1 + $0x168] sm:$0xff]
  %v128 = vld [vmem:[%s1 + $0x170] sm:$0xff]
  %v129 = vld [vmem:[%s1 + $0x178] sm:$0xff]
  %v130 = vld [vmem:[%s1 + $0x180] sm:$0xff]
  %v131 = vld [vmem:[%s1 + $0x188] sm:$0xff]
  %v132 = vld [vmem:[%s1 + $0x190] sm:$0xff]
  %v133 = vld [vmem:[%s1 + $0x198] sm:$0xff]
  %v134 = vld [vmem:[%s1 + $0x1a0] sm:$0xff]
  %v135 = vld [vmem:[%s1 + $0x1a8] sm:$0xff]
  %v136 = vld [vmem:[%s1 + $0x1b0] sm:$0xff]
  %v137 = vld [vmem:[%s1 + $0x1b8] sm:$0xff]
  %v138 = vld [vmem:[%s1 + $0x1c0] sm:$0xff]
  %v139 = vld [vmem:[%s1 + $0x1c8] sm:$0xff]
  %v140 = vld [vmem:[%s1 + $0x1d0] sm:$0xff]
  %v141 = vld [vmem:[%s1 + $0x1d8] sm:$0xff]
  %v142 = vld [vmem:[%s1 + $0x1e0] sm:$0xff]
  %v143 = vld [vmem:[%s1 + $0x1e8] sm:$0xff]
  %v144 = vld [vmem:[%s1 + $0x1f0] sm:$0xff]
  %v145 = vld [vmem:[%s1 + $0x1f8] sm:$0xff]
  %v146 = vadd.f32 %v18, %v82
  %v147 = vadd.f32 %v19, %v83
  %v148 = vadd.f32 %v20, %v84
  %v149 = vadd.f32 %v21, %v85
  %v150 = vadd.f32 %v22, %v86
  %v151 = vadd.f32 %v23, %v87
  %v152 = vadd.f32 %v24, %v88
  %v153 = vadd.f32 %v25, %v89
  %v154 = vadd.f32 %v26, %v90
  %v155 = vadd.f32 %v27, %v91
  %v156 = vadd.f32 %v28, %v92
  %v157 = vadd.f32 %v29, %v93
  %v158 = vadd.f32 %v30, %v94
  %v159 = vadd.f32 %v31, %v95
  %v160 = vadd.f32 %v32, %v96
  %v161 = vadd.f32 %v33, %v97
  %v162 = vadd.f32 %v34, %v98
  %v163 = vadd.f32 %v35, %v99
  %v164 = vadd.f32 %v36, %v100
  %v165 = vadd.f32 %v37, %v101
  %v166 = vadd.f32 %v38, %v102
  %v167 = vadd.f32 %v39, %v103
  %v168 = vadd.f32 %v40, %v104
  %v169 = vadd.f32 %v41, %v105
  %v170 = vadd.f32 %v42, %v106
  %v171 = vadd.f32 %v43, %v107
  %v172 = vadd.f32 %v44, %v108
  %v173 = vadd.f32 %v45, %v109
  %v174 = vadd.f32 %v46, %v110
  %v175 = vadd.f32 %v47, %v111
  %v176 = vadd.f32 %v48, %v112
  %v177 = vadd.f32 %v49, %v113
  %v178 = vadd.f32 %v50, %v114
  %v179 = vadd.f32 %v51, %v115
  %v180 = vadd.f32 %v52, %v116
  %v181 = vadd.f32 %v53, %v117
  %v182 = vadd.f32 %v54, %v118
  %v183 = vadd.f32 %v55, %v119
  %v184 = vadd.f32 %v56, %v120
  %v185 = vadd.f32 %v57, %v121
  %v186 = vadd.f32 %v58, %v122
  %v187 = vadd.f32 %v59, %v123
  %v188 = vadd.f32 %v60, %v124
  %v189 = vadd.f32 %v61, %v125
  %v190 = vadd.f32 %v62, %v126
  %v191 = vadd.f32 %v63, %v127
  %v192 = vadd.f32 %v64, %v128
  %v193 = vadd.f32 %v65, %v129
  %v194 = vadd.f32 %v66, %v130
  %v195 = vadd.f32 %v67, %v131
  %v196 = vadd.f32 %v68, %v132
  %v197 = vadd.f32 %v69, %v133
  %v198 = vadd.f32 %v70, %v134
  %v199 = vadd.f32 %v71, %v135
  %v200 = vadd.f32 %v72, %v136
  %v201 = vadd.f32 %v73, %v137
  %v202 = vadd.f32 %v74, %v138
  %v203 = vadd.f32 %v75, %v139
  %v204 = vadd.f32 %v76, %v140
  %v205 = vadd.f32 %v77, %v141
  %v206 = vadd.f32 %v78, %v142
  %v207 = vadd.f32 %v79, %v143
  %v208 = vadd.f32 %v80, %v144
  %v209 = vadd.f32 %v81, %v145
  %v210 = vpack.c.bf16 %v147, %v146
  %v211 = vpack.c.bf16 %v149, %v148
  %v212 = vpack.c.bf16 %v151, %v150
  %v213 = vpack.c.bf16 %v153, %v152
  %v214 = vpack.c.bf16 %v155, %v154
  %v215 = vpack.c.bf16 %v157, %v156
  %v216 = vpack.c.bf16 %v159, %v158
  %v217 = vpack.c.bf16 %v161, %v160
  %v218 = vpack.c.bf16 %v163, %v162
  %v219 = vpack.c.bf16 %v165, %v164
  %v220 = vpack.c.bf16 %v167, %v166
  %v221 = vpack.c.bf16 %v169, %v168
  %v222 = vpack.c.bf16 %v171, %v170
  %v223 = vpack.c.bf16 %v173, %v172
  %v224 = vpack.c.bf16 %v175, %v174
  %v225 = vpack.c.bf16 %v177, %v176
  %v226 = vpack.c.bf16 %v179, %v178
  %v227 = vpack.c.bf16 %v181, %v180
  %v228 = vpack.c.bf16 %v183, %v182
  %v229 = vpack.c.bf16 %v185, %v184
  %v230 = vpack.c.bf16 %v187, %v186
  %v231 = vpack.c.bf16 %v189, %v188
  %v232 = vpack.c.bf16 %v191, %v190
  %v233 = vpack.c.bf16 %v193, %v192
  %v234 = vpack.c.bf16 %v195, %v194
  %v235 = vpack.c.bf16 %v197, %v196
  %v236 = vpack.c.bf16 %v199, %v198
  %v237 = vpack.c.bf16 %v201, %v200
  %v238 = vpack.c.bf16 %v203, %v202
  %v239 = vpack.c.bf16 %v205, %v204
  %v240 = vpack.c.bf16 %v207, %v206
  %v241 = vpack.c.bf16 %v209, %v208
  %v242 = vld [vmem:[%s2] sm:$0x1]
  %v243 = vld [vmem:[%s3] sm:$0x1]
  %v245 = vlaneseq
  %v246 = vshrl.u32 %v245, 7
  %v247 = vsub.s32 0, %v246
  %v248 = vrot.slane %v243, %v247
  %vm250 = vcmask 15360
  %v252 = vsel %vm250, %v210, 0
  %v255 = vsel %vm250, %v211, 0
  %v258 = vsel %vm250, %v212, 0
  %v261 = vsel %vm250, %v213, 0
  %v264 = vsel %vm250, %v214, 0
  %v267 = vsel %vm250, %v215, 0
  %v270 = vsel %vm250, %v216, 0
  %v273 = vsel %vm250, %v217, 0
  %v276 = vsel %vm250, %v218, 0
  %v279 = vsel %vm250, %v219, 0
  %v282 = vsel %vm250, %v220, 0
  %v285 = vsel %vm250, %v221, 0
  %v288 = vsel %vm250, %v222, 0
  %v291 = vsel %vm250, %v223, 0
  %v294 = vsel %vm250, %v224, 0
  %v297 = vsel %vm250, %v225, 0
  %v300 = vsel %vm250, %v226, 0
  %v303 = vsel %vm250, %v227, 0
  %v306 = vsel %vm250, %v228, 0
  %v309 = vsel %vm250, %v229, 0
  %v312 = vsel %vm250, %v230, 0
  %v315 = vsel %vm250, %v231, 0
  %v318 = vsel %vm250, %v232, 0
  %v321 = vsel %vm250, %v233, 0
  %v324 = vsel %vm250, %v234, 0
  %v327 = vsel %vm250, %v235, 0
  %v330 = vsel %vm250, %v236, 0
  %v333 = vsel %vm250, %v237, 0
  %v336 = vsel %vm250, %v238, 0
  %v339 = vsel %vm250, %v239, 0
  %v342 = vsel %vm250, %v240, 0
  %v345 = vsel %vm250, %v241, 0
  %vm347 = vcmask 1040384
  %v349 = vsel %vm347, %v242, 0
  %351 = vmatprep.subr.bf16.mxu0 0
  %352 = vmatpush1.bf16.msra.mxu0 %v349
  %353 = vmatprep.subr.bf16.mxu0 0
  %354 = vmatpush1.bf16.msra.mxu0 0
  %355 = vmatprep.subr.bf16.mxu0 0
  %356 = vmatpush1.bf16.msra.mxu0 0
  %357 = vmatprep.subr.bf16.mxu0 0
  %358 = vmatpush1.bf16.msra.mxu0 0
  %359 = vmatprep.subr.bf16.mxu0 0
  %360 = vmatpush1.bf16.msra.mxu0 0
  %361 = vmatprep.subr.bf16.mxu0 0
  %362 = vmatpush1.bf16.msra.mxu0 0
  %363 = vmatprep.subr.bf16.mxu0 0
  %364 = vmatpush1.bf16.msra.mxu0 0
  %365 = vmatprep.subr.bf16.mxu0 0
  %366 = vmatpush1.bf16.msra.mxu0 0
  %367 = vmatprep.subr.bf16.mxu0 0
  %368 = vmatpush1.bf16.msra.mxu0 0
  %369 = vmatprep.subr.bf16.mxu0 0
  %370 = vmatpush1.bf16.msra.mxu0 0
  %371 = vmatprep.subr.bf16.mxu0 0
  %372 = vmatpush1.bf16.msra.mxu0 0
  %373 = vmatprep.subr.bf16.mxu0 0
  %374 = vmatpush1.bf16.msra.mxu0 0
  %375 = vmatprep.subr.bf16.mxu0 0
  %376 = vmatpush1.bf16.msra.mxu0 0
  %377 = vmatprep.subr.bf16.mxu0 0
  %378 = vmatpush1.bf16.msra.mxu0 0
  %379 = vmatprep.subr.bf16.mxu0 0
  %380 = vmatpush1.bf16.msra.mxu0 0
  %381 = vmatprep.subr.bf16.mxu0 0
  %382 = vmatpush1.bf16.msra.mxu0 0
  %383 = vmatprep.mubr.bf16.mxu0 0
  %384 = vmatmul.mubr.bf16.gmra.mrb[0].mxu0 %v252
  %v385 = vpop.f32.mrb[0].mxu0
  %v386 = vadd.f32 %v248, %v385
  %v387 = vpop.f32.mrb[0].mxu0
  %v388 = vpop.f32.mrb[0].mxu0
  %v389 = vadd.f32 %v248, %v388
  %v390 = vpop.f32.mrb[0].mxu0
  %391 = vmatprep.mubr.bf16.mxu0 0
  %392 = vmatmul.mubr.bf16.gmra.mrb[0].mxu0 %v255
  %v393 = vpop.f32.mrb[0].mxu0
  %v394 = vadd.f32 %v248, %v393
  %v395 = vpop.f32.mrb[0].mxu0
  %v396 = vpop.f32.mrb[0].mxu0
  %v397 = vadd.f32 %v248, %v396
  %v398 = vpop.f32.mrb[0].mxu0
  %399 = vmatprep.mubr.bf16.mxu0 0
  %400 = vmatmul.mubr.bf16.gmra.mrb[0].mxu0 %v258
  %v401 = vpop.f32.mrb[0].mxu0
  %v402 = vadd.f32 %v248, %v401
  %v403 = vpop.f32.mrb[0].mxu0
  %v404 = vpop.f32.mrb[0].mxu0
  %v405 = vadd.f32 %v248, %v404
  %v406 = vpop.f32.mrb[0].mxu0
  %407 = vmatprep.mubr.bf16.mxu0 0
  %408 = vmatmul.mubr.bf16.gmra.mrb[0].mxu0 %v261
  %v409 = vpop.f32.mrb[0].mxu0
  %v410 = vadd.f32 %v248, %v409
  %v411 = vpop.f32.mrb[0].mxu0
  %v412 = vpop.f32.mrb[0].mxu0
  %v413 = vadd.f32 %v248, %v412
  %v414 = vpop.f32.mrb[0].mxu0
  %415 = vmatprep.mubr.bf16.mxu0 0
  %416 = vmatmul.mubr.bf16.gmra.mrb[0].mxu0 %v264
  %v417 = vpop.f32.mrb[0].mxu0
  %v418 = vadd.f32 %v248, %v417
  %v419 = vpop.f32.mrb[0].mxu0
  %v420 = vpop.f32.mrb[0].mxu0
  %v421 = vadd.f32 %v248, %v420
  %v422 = vpop.f32.mrb[0].mxu0
  %423 = vmatprep.mubr.bf16.mxu0 0
  %424 = vmatmul.mubr.bf16.gmra.mrb[0].mxu0 %v267
  %v425 = vpop.f32.mrb[0].mxu0
  %v426 = vadd.f32 %v248, %v425
  %v427 = vpop.f32.mrb[0].mxu0
  %v428 = vpop.f32.mrb[0].mxu0
  %v429 = vadd.f32 %v248, %v428
  %v430 = vpop.f32.mrb[0].mxu0
  %431 = vmatprep.mubr.bf16.mxu0 0
  %432 = vmatmul.mubr.bf16.gmra.mrb[0].mxu0 %v270
  %v433 = vpop.f32.mrb[0].mxu0
  %v434 = vadd.f32 %v248, %v433
  %v435 = vpop.f32.mrb[0].mxu0
  %v436 = vpop.f32.mrb[0].mxu0
  %v437 = vadd.f32 %v248, %v436
  %v438 = vpop.f32.mrb[0].mxu0
  %439 = vmatprep.mubr.bf16.mxu0 0
  %440 = vmatmul.mubr.bf16.gmra.mrb[0].mxu0 %v273
  %v441 = vpop.f32.mrb[0].mxu0
  %v442 = vadd.f32 %v248, %v441
  %v443 = vpop.f32.mrb[0].mxu0
  %v444 = vpop.f32.mrb[0].mxu0
  %v445 = vadd.f32 %v248, %v444
  %v446 = vpop.f32.mrb[0].mxu0
  %447 = vmatprep.mubr.bf16.mxu0 0
  %448 = vmatmul.mubr.bf16.gmra.mrb[0].mxu0 %v276
  %v449 = vpop.f32.mrb[0].mxu0
  %v450 = vadd.f32 %v248, %v449
  %v451 = vpop.f32.mrb[0].mxu0
  %v452 = vpop.f32.mrb[0].mxu0
  %v453 = vadd.f32 %v248, %v452
  %v454 = vpop.f32.mrb[0].mxu0
  %455 = vmatprep.mubr.bf16.mxu0 0
  %456 = vmatmul.mubr.bf16.gmra.mrb[0].mxu0 %v279
  %v457 = vpop.f32.mrb[0].mxu0
  %v458 = vadd.f32 %v248, %v457
  %v459 = vpop.f32.mrb[0].mxu0
  %v460 = vpop.f32.mrb[0].mxu0
  %v461 = vadd.f32 %v248, %v460
  %v462 = vpop.f32.mrb[0].mxu0
  %463 = vmatprep.mubr.bf16.mxu0 0
  %464 = vmatmul.mubr.bf16.gmra.mrb[0].mxu0 %v282
  %v465 = vpop.f32.mrb[0].mxu0
  %v466 = vadd.f32 %v248, %v465
  %v467 = vpop.f32.mrb[0].mxu0
  %v468 = vpop.f32.mrb[0].mxu0
  %v469 = vadd.f32 %v248, %v468
  %v470 = vpop.f32.mrb[0].mxu0
  %471 = vmatprep.mubr.bf16.mxu0 0
  %472 = vmatmul.mubr.bf16.gmra.mrb[0].mxu0 %v285
  %v473 = vpop.f32.mrb[0].mxu0
  %v474 = vadd.f32 %v248, %v473
  %v475 = vpop.f32.mrb[0].mxu0
  %v476 = vpop.f32.mrb[0].mxu0
  %v477 = vadd.f32 %v248, %v476
  %v478 = vpop.f32.mrb[0].mxu0
  %479 = vmatprep.mubr.bf16.mxu0 0
  %480 = vmatmul.mubr.bf16.gmra.mrb[0].mxu0 %v288
  %v481 = vpop.f32.mrb[0].mxu0
  %v482 = vadd.f32 %v248, %v481
  %v483 = vpop.f32.mrb[0].mxu0
  %v484 = vpop.f32.mrb[0].mxu0
  %v485 = vadd.f32 %v248, %v484
  %v486 = vpop.f32.mrb[0].mxu0
  %487 = vmatprep.mubr.bf16.mxu0 0
  %488 = vmatmul.mubr.bf16.gmra.mrb[0].mxu0 %v291
  %v489 = vpop.f32.mrb[0].mxu0
  %v490 = vadd.f32 %v248, %v489
  %v491 = vpop.f32.mrb[0].mxu0
  %v492 = vpop.f32.mrb[0].mxu0
  %v493 = vadd.f32 %v248, %v492
  %v494 = vpop.f32.mrb[0].mxu0
  %495 = vmatprep.mubr.bf16.mxu0 0
  %496 = vmatmul.mubr.bf16.gmra.mrb[0].mxu0 %v294
  %v497 = vpop.f32.mrb[0].mxu0
  %v498 = vadd.f32 %v248, %v497
  %v499 = vpop.f32.mrb[0].mxu0
  %v500 = vpop.f32.mrb[0].mxu0
  %v501 = vadd.f32 %v248, %v500
  %v502 = vpop.f32.mrb[0].mxu0
  %503 = vmatprep.mubr.bf16.mxu0 0
  %504 = vmatmul.mubr.bf16.gmra.mrb[0].mxu0 %v297
  %v505 = vpop.f32.mrb[0].mxu0
  %v506 = vadd.f32 %v248, %v505
  %v507 = vpop.f32.mrb[0].mxu0
  %v508 = vpop.f32.mrb[0].mxu0
  %v509 = vadd.f32 %v248, %v508
  %v510 = vpop.f32.mrb[0].mxu0
  %511 = vmatprep.mubr.bf16.mxu0 0
  %512 = vmatmul.mubr.bf16.gmra.mrb[0].mxu0 %v300
  %v513 = vpop.f32.mrb[0].mxu0
  %v514 = vadd.f32 %v248, %v513
  %v515 = vpop.f32.mrb[0].mxu0
  %v516 = vpop.f32.mrb[0].mxu0
  %v517 = vadd.f32 %v248, %v516
  %v518 = vpop.f32.mrb[0].mxu0
  %519 = vmatprep.mubr.bf16.mxu0 0
  %520 = vmatmul.mubr.bf16.gmra.mrb[0].mxu0 %v303
  %v521 = vpop.f32.mrb[0].mxu0
  %v522 = vadd.f32 %v248, %v521
  %v523 = vpop.f32.mrb[0].mxu0
  %v524 = vpop.f32.mrb[0].mxu0
  %v525 = vadd.f32 %v248, %v524
  %v526 = vpop.f32.mrb[0].mxu0
  %527 = vmatprep.mubr.bf16.mxu0 0
  %528 = vmatmul.mubr.bf16.gmra.mrb[0].mxu0 %v306
  %v529 = vpop.f32.mrb[0].mxu0
  %v530 = vadd.f32 %v248, %v529
  %v531 = vpop.f32.mrb[0].mxu0
  %v532 = vpop.f32.mrb[0].mxu0
  %v533 = vadd.f32 %v248, %v532
  %v534 = vpop.f32.mrb[0].mxu0
  %535 = vmatprep.mubr.bf16.mxu0 0
  %536 = vmatmul.mubr.bf16.gmra.mrb[0].mxu0 %v309
  %v537 = vpop.f32.mrb[0].mxu0
  %v538 = vadd.f32 %v248, %v537
  %v539 = vpop.f32.mrb[0].mxu0
  %v540 = vpop.f32.mrb[0].mxu0
  %v541 = vadd.f32 %v248, %v540
  %v542 = vpop.f32.mrb[0].mxu0
  %543 = vmatprep.mubr.bf16.mxu0 0
  %544 = vmatmul.mubr.bf16.gmra.mrb[0].mxu0 %v312
  %v545 = vpop.f32.mrb[0].mxu0
  %v546 = vadd.f32 %v248, %v545
  %v547 = vpop.f32.mrb[0].mxu0
  %v548 = vpop.f32.mrb[0].mxu0
  %v549 = vadd.f32 %v248, %v548
  %v550 = vpop.f32.mrb[0].mxu0
  %551 = vmatprep.mubr.bf16.mxu0 0
  %552 = vmatmul.mubr.bf16.gmra.mrb[0].mxu0 %v315
  %v553 = vpop.f32.mrb[0].mxu0
  %v554 = vadd.f32 %v248, %v553
  %v555 = vpop.f32.mrb[0].mxu0
  %v556 = vpop.f32.mrb[0].mxu0
  %v557 = vadd.f32 %v248, %v556
  %v558 = vpop.f32.mrb[0].mxu0
  %559 = vmatprep.mubr.bf16.mxu0 0
  %560 = vmatmul.mubr.bf16.gmra.mrb[0].mxu0 %v318
  %v561 = vpop.f32.mrb[0].mxu0
  %v562 = vadd.f32 %v248, %v561
  %v563 = vpop.f32.mrb[0].mxu0
  %v564 = vpop.f32.mrb[0].mxu0
  %v565 = vadd.f32 %v248, %v564
  %v566 = vpop.f32.mrb[0].mxu0
  %567 = vmatprep.mubr.bf16.mxu0 0
  %568 = vmatmul.mubr.bf16.gmra.mrb[0].mxu0 %v321
  %v569 = vpop.f32.mrb[0].mxu0
  %v570 = vadd.f32 %v248, %v569
  %v571 = vpop.f32.mrb[0].mxu0
  %v572 = vpop.f32.mrb[0].mxu0
  %v573 = vadd.f32 %v248, %v572
  %v574 = vpop.f32.mrb[0].mxu0
  %575 = vmatprep.mubr.bf16.mxu0 0
  %576 = vmatmul.mubr.bf16.gmra.mrb[0].mxu0 %v324
  %v577 = vpop.f32.mrb[0].mxu0
  %v578 = vadd.f32 %v248, %v577
  %v579 = vpop.f32.mrb[0].mxu0
  %v580 = vpop.f32.mrb[0].mxu0
  %v581 = vadd.f32 %v248, %v580
  %v582 = vpop.f32.mrb[0].mxu0
  %583 = vmatprep.mubr.bf16.mxu0 0
  %584 = vmatmul.mubr.bf16.gmra.mrb[0].mxu0 %v327
  %v585 = vpop.f32.mrb[0].mxu0
  %v586 = vadd.f32 %v248, %v585
  %v587 = vpop.f32.mrb[0].mxu0
  %v588 = vpop.f32.mrb[0].mxu0
  %v589 = vadd.f32 %v248, %v588
  %v590 = vpop.f32.mrb[0].mxu0
  %591 = vmatprep.mubr.bf16.mxu0 0
  %592 = vmatmul.mubr.bf16.gmra.mrb[0].mxu0 %v330
  %v593 = vpop.f32.mrb[0].mxu0
  %v594 = vadd.f32 %v248, %v593
  %v595 = vpop.f32.mrb[0].mxu0
  %v596 = vpop.f32.mrb[0].mxu0
  %v597 = vadd.f32 %v248, %v596
  %v598 = vpop.f32.mrb[0].mxu0
  %599 = vmatprep.mubr.bf16.mxu0 0
  %600 = vmatmul.mubr.bf16.gmra.mrb[0].mxu0 %v333
  %v601 = vpop.f32.mrb[0].mxu0
  %v602 = vadd.f32 %v248, %v601
  %v603 = vpop.f32.mrb[0].mxu0
  %v604 = vpop.f32.mrb[0].mxu0
  %v605 = vadd.f32 %v248, %v604
  %v606 = vpop.f32.mrb[0].mxu0
  %607 = vmatprep.mubr.bf16.mxu0 0
  %608 = vmatmul.mubr.bf16.gmra.mrb[0].mxu0 %v336
  %v609 = vpop.f32.mrb[0].mxu0
  %v610 = vadd.f32 %v248, %v609
  %v611 = vpop.f32.mrb[0].mxu0
  %v612 = vpop.f32.mrb[0].mxu0
  %v613 = vadd.f32 %v248, %v612
  %v614 = vpop.f32.mrb[0].mxu0
  %615 = vmatprep.mubr.bf16.mxu0 0
  %616 = vmatmul.mubr.bf16.gmra.mrb[0].mxu0 %v339
  %v617 = vpop.f32.mrb[0].mxu0
  %v618 = vadd.f32 %v248, %v617
  %v619 = vpop.f32.mrb[0].mxu0
  %v620 = vpop.f32.mrb[0].mxu0
  %v621 = vadd.f32 %v248, %v620
  %v622 = vpop.f32.mrb[0].mxu0
  %623 = vmatprep.mubr.bf16.mxu0 0
  %624 = vmatmul.mubr.bf16.gmra.mrb[0].mxu0 %v342
  %v625 = vpop.f32.mrb[0].mxu0
  %v626 = vadd.f32 %v248, %v625
  %v627 = vpop.f32.mrb[0].mxu0
  %v628 = vpop.f32.mrb[0].mxu0
  %v629 = vadd.f32 %v248, %v628
  %v630 = vpop.f32.mrb[0].mxu0
  %631 = vmatprep.mubr.bf16.mxu0 0
  %632 = vmatmul.mubr.bf16.gmra.mrb[0].mxu0 %v345
  %v633 = vpop.f32.mrb[0].mxu0
  %v634 = vadd.f32 %v248, %v633
  %v635 = vpop.f32.mrb[0].mxu0
  %v636 = vpop.f32.mrb[0].mxu0
  %v637 = vadd.f32 %v248, %v636
  %v638 = vpop.f32.mrb[0].mxu0
  %639 = vdwg.mxu0
  %vm640 = vcmask 31744
  %641 = vst.msk [vmem:[%s4] sm:$0xff] %vm640, %v386
  %642 = vst.msk [vmem:[%s4 + $0x8] sm:$0xff] %vm640, %v389
  %643 = vst.msk [vmem:[%s4 + $0x10] sm:$0xff] %vm640, %v394
  %644 = vst.msk [vmem:[%s4 + $0x18] sm:$0xff] %vm640, %v397
  %645 = vst.msk [vmem:[%s4 + $0x20] sm:$0xff] %vm640, %v402
  %646 = vst.msk [vmem:[%s4 + $0x28] sm:$0xff] %vm640, %v405
  %647 = vst.msk [vmem:[%s4 + $0x30] sm:$0xff] %vm640, %v410
  %648 = vst.msk [vmem:[%s4 + $0x38] sm:$0xff] %vm640, %v413
  %649 = vst.msk [vmem:[%s4 + $0x40] sm:$0xff] %vm640, %v418
  %650 = vst.msk [vmem:[%s4 + $0x48] sm:$0xff] %vm640, %v421
  %651 = vst.msk [vmem:[%s4 + $0x50] sm:$0xff] %vm640, %v426
  %652 = vst.msk [vmem:[%s4 + $0x58] sm:$0xff] %vm640, %v429
  %653 = vst.msk [vmem:[%s4 + $0x60] sm:$0xff] %vm640, %v434
  %654 = vst.msk [vmem:[%s4 + $0x68] sm:$0xff] %vm640, %v437
  %655 = vst.msk [vmem:[%s4 + $0x70] sm:$0xff] %vm640, %v442
  %656 = vst.msk [vmem:[%s4 + $0x78] sm:$0xff] %vm640, %v445
  %657 = vst.msk [vmem:[%s4 + $0x80] sm:$0xff] %vm640, %v450
  %658 = vst.msk [vmem:[%s4 + $0x88] sm:$0xff] %vm640, %v453
  %659 = vst.msk [vmem:[%s4 + $0x90] sm:$0xff] %vm640, %v458
  %660 = vst.msk [vmem:[%s4 + $0x98] sm:$0xff] %vm640, %v461
  %661 = vst.msk [vmem:[%s4 + $0xa0] sm:$0xff] %vm640, %v466
  %662 = vst.msk [vmem:[%s4 + $0xa8] sm:$0xff] %vm640, %v469
  %663 = vst.msk [vmem:[%s4 + $0xb0] sm:$0xff] %vm640, %v474
  %664 = vst.msk [vmem:[%s4 + $0xb8] sm:$0xff] %vm640, %v477
  %665 = vst.msk [vmem:[%s4 + $0xc0] sm:$0xff] %vm640, %v482
  %666 = vst.msk [vmem:[%s4 + $0xc8] sm:$0xff] %vm640, %v485
  %667 = vst.msk [vmem:[%s4 + $0xd0] sm:$0xff] %vm640, %v490
  %668 = vst.msk [vmem:[%s4 + $0xd8] sm:$0xff] %vm640, %v493
  %669 = vst.msk [vmem:[%s4 + $0xe0] sm:$0xff] %vm640, %v498
  %670 = vst.msk [vmem:[%s4 + $0xe8] sm:$0xff] %vm640, %v501
  %671 = vst.msk [vmem:[%s4 + $0xf0] sm:$0xff] %vm640, %v506
  %672 = vst.msk [vmem:[%s4 + $0xf8] sm:$0xff] %vm640, %v509
  %673 = vst.msk [vmem:[%s4 + $0x100] sm:$0xff] %vm640, %v514
  %674 = vst.msk [vmem:[%s4 + $0x108] sm:$0xff] %vm640, %v517
  %675 = vst.msk [vmem:[%s4 + $0x110] sm:$0xff] %vm640, %v522
  %676 = vst.msk [vmem:[%s4 + $0x118] sm:$0xff] %vm640, %v525
  %677 = vst.msk [vmem:[%s4 + $0x120] sm:$0xff] %vm640, %v530
  %678 = vst.msk [vmem:[%s4 + $0x128] sm:$0xff] %vm640, %v533
  %679 = vst.msk [vmem:[%s4 + $0x130] sm:$0xff] %vm640, %v538
  %680 = vst.msk [vmem:[%s4 + $0x138] sm:$0xff] %vm640, %v541
  %681 = vst.msk [vmem:[%s4 + $0x140] sm:$0xff] %vm640, %v546
  %682 = vst.msk [vmem:[%s4 + $0x148] sm:$0xff] %vm640, %v549
  %683 = vst.msk [vmem:[%s4 + $0x150] sm:$0xff] %vm640, %v554
  %684 = vst.msk [vmem:[%s4 + $0x158] sm:$0xff] %vm640, %v557
  %685 = vst.msk [vmem:[%s4 + $0x160] sm:$0xff] %vm640, %v562
  %686 = vst.msk [vmem:[%s4 + $0x168] sm:$0xff] %vm640, %v565
  %687 = vst.msk [vmem:[%s4 + $0x170] sm:$0xff] %vm640, %v570
  %688 = vst.msk [vmem:[%s4 + $0x178] sm:$0xff] %vm640, %v573
  %689 = vst.msk [vmem:[%s4 + $0x180] sm:$0xff] %vm640, %v578
  %690 = vst.msk [vmem:[%s4 + $0x188] sm:$0xff] %vm640, %v581
  %691 = vst.msk [vmem:[%s4 + $0x190] sm:$0xff] %vm640, %v586
  %692 = vst.msk [vmem:[%s4 + $0x198] sm:$0xff] %vm640, %v589
  %693 = vst.msk [vmem:[%s4 + $0x1a0] sm:$0xff] %vm640, %v594
  %694 = vst.msk [vmem:[%s4 + $0x1a8] sm:$0xff] %vm640, %v597
  %695 = vst.msk [vmem:[%s4 + $0x1b0] sm:$0xff] %vm640, %v602
  %696 = vst.msk [vmem:[%s4 + $0x1b8] sm:$0xff] %vm640, %v605
  %697 = vst.msk [vmem:[%s4 + $0x1c0] sm:$0xff] %vm640, %v610
  %698 = vst.msk [vmem:[%s4 + $0x1c8] sm:$0xff] %vm640, %v613
  %699 = vst.msk [vmem:[%s4 + $0x1d0] sm:$0xff] %vm640, %v618
  %700 = vst.msk [vmem:[%s4 + $0x1d8] sm:$0xff] %vm640, %v621
  %701 = vst.msk [vmem:[%s4 + $0x1e0] sm:$0xff] %vm640, %v626
  %702 = vst.msk [vmem:[%s4 + $0x1e8] sm:$0xff] %vm640, %v629
  %703 = vst.msk [vmem:[%s4 + $0x1f0] sm:$0xff] %vm640, %v634
  %704 = vst.msk [vmem:[%s4 + $0x1f8] sm:$0xff] %vm640, %v637
  // Predicated region
  $region18: #{fastfc_forward.23} parent=0 // pred_check
    _
  $region19: #{fastfc_forward.23} parent=0 // pred_check_branch
    %706 = sbr.rel (0) target = $region21
  $region20: #{fastfc_forward.23} parent=0 // pred_region
    _
  $region21: #{fastfc_forward.23} parent=0 // pred_fallthru
    _
  // Predicated region
  $region22: #{fastfc_forward.23} parent=0 // pred_check
    _
  $region23: #{fastfc_forward.23} parent=0 // pred_check_branch
    %708 = sbr.rel (0) target = $region25
  $region24: #{fastfc_forward.23} parent=0 // pred_region
    _
  $region25: #{fastfc_forward.23} parent=0 // pred_fallthru
    _

// kernel: fastfc_forward.13
$region0: #{fastfc_forward.13}
  #allocation0 [shape = 'u32[]', space=smem, size = 0x4, offset = 0x4, fixed_abs, tag = 'smem constant byte address 0x4 - core index']
  #allocation1 [shape = 'u32[144,128]{1,0:T(1,128)}', space=vmem, size = 0x12000, scoped, tag = 'internal scratch']
  %s0 = inlined_call_operand.vmem [shape: bf16[512,36], index: 0, kind: input, shape index: {}]
  %s1 = inlined_call_operand.vmem [shape: bf16[36,8], index: 1, kind: input, shape index: {}]
  %s2 = inlined_call_operand.vmem [shape: f32[1,8], index: 2, kind: input, shape index: {}]
  %s3 = inlined_call_operand.vmem [shape: f32[512,8], index: 3, kind: output, shape index: {}]
  %s4 = sld [smem:[#allocation0]]
  $region22: #{fastfc_forward.13} parent=0
    _
  %s6 = ssub.s32 1, %s4
  %s7 = scalar_select 0, %s6, %s4
  // Predicated region
  $region2: #{fastfc_forward.13} parent=0 // pred_check
    _
  $region3: #{fastfc_forward.13} parent=0 // pred_check_branch
    %9 = sbr.rel (0) target = $region5
  $region4: #{fastfc_forward.13} parent=0 // pred_region
    _
  $region5: #{fastfc_forward.13} parent=0 // pred_fallthru
    _
  // Predicated region
  $region6: #{fastfc_forward.13} parent=0 // pred_check
    _
  $region7: #{fastfc_forward.13} parent=0 // pred_check_branch
    %11 = sbr.rel (0) target = $region9
  $region8: #{fastfc_forward.13} parent=0 // pred_region
    _
  $region9: #{fastfc_forward.13} parent=0 // pred_fallthru
    _
  // Predicated region
  $region10: #{fastfc_forward.13} parent=0 // pred_check
    _
  $region11: #{fastfc_forward.13} parent=0 // pred_check_branch
    %13 = sbr.rel (0) target = $region13
  $region12: #{fastfc_forward.13} parent=0 // pred_region
    _
  $region13: #{fastfc_forward.13} parent=0 // pred_fallthru
    _
  %v15 = vld [vmem:[%s0] sm:$0xf]
  %v16 = vld [vmem:[%s0 + $0x4] sm:$0xf]
  %v17 = vld [vmem:[%s0 + $0x8] sm:$0xf]
  %v18 = vld [vmem:[%s0 + $0xc] sm:$0xf]
  %v19 = vld [vmem:[%s0 + $0x10] sm:$0xf]
  %v20 = vld [vmem:[%s0 + $0x14] sm:$0xf]
  %v21 = vld [vmem:[%s0 + $0x18] sm:$0xf]
  %v22 = vld [vmem:[%s0 + $0x1c] sm:$0xf]
  %v23 = vld [vmem:[%s0 + $0x20] sm:$0xf]
  %v24 = vld [vmem:[%s0 + $0x24] sm:$0xf]
  %v25 = vld [vmem:[%s0 + $0x28] sm:$0xf]
  %v26 = vld [vmem:[%s0 + $0x2c] sm:$0xf]
  %v27 = vld [vmem:[%s0 + $0x30] sm:$0xf]
  %v28 = vld [vmem:[%s0 + $0x34] sm:$0xf]
  %v29 = vld [vmem:[%s0 + $0x38] sm:$0xf]
  %v30 = vld [vmem:[%s0 + $0x3c] sm:$0xf]
  %v31 = vld [vmem:[%s0 + $0x40] sm:$0xf]
  %v32 = vld [vmem:[%s0 + $0x44] sm:$0xf]
  %v33 = vld [vmem:[%s0 + $0x48] sm:$0xf]
  %v34 = vld [vmem:[%s0 + $0x4c] sm:$0xf]
  %v35 = vld [vmem:[%s0 + $0x50] sm:$0xf]
  %v36 = vld [vmem:[%s0 + $0x54] sm:$0xf]
  %v37 = vld [vmem:[%s0 + $0x58] sm:$0xf]
  %v38 = vld [vmem:[%s0 + $0x5c] sm:$0xf]
  %v39 = vld [vmem:[%s0 + $0x60] sm:$0xf]
  %v40 = vld [vmem:[%s0 + $0x64] sm:$0xf]
  %v41 = vld [vmem:[%s0 + $0x68] sm:$0xf]
  %v42 = vld [vmem:[%s0 + $0x6c] sm:$0xf]
  %v43 = vld [vmem:[%s0 + $0x70] sm:$0xf]
  %v44 = vld [vmem:[%s0 + $0x74] sm:$0xf]
  %v45 = vld [vmem:[%s0 + $0x78] sm:$0xf]
  %v46 = vld [vmem:[%s0 + $0x7c] sm:$0xf]
  %v47 = vld [vmem:[%s0 + $0x80] sm:$0xf]
  %v48 = vld [vmem:[%s0 + $0x84] sm:$0xf]
  %v49 = vld [vmem:[%s0 + $0x88] sm:$0xf]
  %v50 = vld [vmem:[%s0 + $0x8c] sm:$0xf]
  %v51 = vld [vmem:[%s0 + $0x90] sm:$0xf]
  %v52 = vld [vmem:[%s0 + $0x94] sm:$0xf]
  %v53 = vld [vmem:[%s0 + $0x98] sm:$0xf]
  %v54 = vld [vmem:[%s0 + $0x9c] sm:$0xf]
  %v55 = vld [vmem:[%s0 + $0xa0] sm:$0xf]
  %v56 = vld [vmem:[%s0 + $0xa4] sm:$0xf]
  %v57 = vld [vmem:[%s0 + $0xa8] sm:$0xf]
  %v58 = vld [vmem:[%s0 + $0xac] sm:$0xf]
  %v59 = vld [vmem:[%s0 + $0xb0] sm:$0xf]
  %v60 = vld [vmem:[%s0 + $0xb4] sm:$0xf]
  %v61 = vld [vmem:[%s0 + $0xb8] sm:$0xf]
  %v62 = vld [vmem:[%s0 + $0xbc] sm:$0xf]
  %v63 = vld [vmem:[%s0 + $0xc0] sm:$0xf]
  %v64 = vld [vmem:[%s0 + $0xc4] sm:$0xf]
  %v65 = vld [vmem:[%s0 + $0xc8] sm:$0xf]
  %v66 = vld [vmem:[%s0 + $0xcc] sm:$0xf]
  %v67 = vld [vmem:[%s0 + $0xd0] sm:$0xf]
  %v68 = vld [vmem:[%s0 + $0xd4] sm:$0xf]
  %v69 = vld [vmem:[%s0 + $0xd8] sm:$0xf]
  %v70 = vld [vmem:[%s0 + $0xdc] sm:$0xf]
  %v71 = vld [vmem:[%s0 + $0xe0] sm:$0xf]
  %v72 = vld [vmem:[%s0 + $0xe4] sm:$0xf]
  %v73 = vld [vmem:[%s0 + $0xe8] sm:$0xf]
  %v74 = vld [vmem:[%s0 + $0xec] sm:$0xf]
  %v75 = vld [vmem:[%s0 + $0xf0] sm:$0xf]
  %v76 = vld [vmem:[%s0 + $0xf4] sm:$0xf]
  %v77 = vld [vmem:[%s0 + $0xf8] sm:$0xf]
  %v78 = vld [vmem:[%s0 + $0xfc] sm:$0xf]
  %v79 = vld [vmem:[%s1] sm:$0xf]
  %v80 = vld [vmem:[%s1 + $0x4] sm:$0xf]
  %v81 = vld [vmem:[%s1 + $0x8] sm:$0xf]
  %v82 = vld [vmem:[%s1 + $0xc] sm:$0xf]
  %v83 = vld [vmem:[%s1 + $0x10] sm:$0x3]
  %v84 = vld [vmem:[%s2] sm:$0x1]
  %v86 = vlaneseq
  %v87 = vshrl.u32 %v86, 7
  %v88 = vsub.s32 0, %v87
  %v89 = vrot.slane %v84, %v88
  %v155 = vunpack.c.l.b16 %v15
  %v156 = vunpack.c.l.b16 %v16
  %v157 = vunpack.c.l.b16 %v17
  %v158 = vunpack.c.l.b16 %v18
  %v159 = vunpack.c.l.b16 %v19
  %v160 = vunpack.c.l.b16 %v20
  %v161 = vunpack.c.l.b16 %v21
  %v162 = vunpack.c.l.b16 %v22
  %v163 = vunpack.c.l.b16 %v23
  %v164 = vunpack.c.l.b16 %v24
  %v165 = vunpack.c.l.b16 %v25
  %v166 = vunpack.c.l.b16 %v26
  %v167 = vunpack.c.l.b16 %v27
  %v168 = vunpack.c.l.b16 %v28
  %v169 = vunpack.c.l.b16 %v29
  %v170 = vunpack.c.l.b16 %v30
  %v171 = vunpack.c.l.b16 %v31
  %v172 = vunpack.c.l.b16 %v32
  %v173 = vunpack.c.l.b16 %v33
  %v174 = vunpack.c.l.b16 %v34
  %v175 = vunpack.c.l.b16 %v35
  %v176 = vunpack.c.l.b16 %v36
  %v177 = vunpack.c.l.b16 %v37
  %v178 = vunpack.c.l.b16 %v38
  %v179 = vunpack.c.l.b16 %v39
  %v180 = vunpack.c.l.b16 %v40
  %v181 = vunpack.c.l.b16 %v41
  %v182 = vunpack.c.l.b16 %v42
  %v183 = vunpack.c.l.b16 %v43
  %v184 = vunpack.c.l.b16 %v44
  %v185 = vunpack.c.l.b16 %v45
  %v186 = vunpack.c.l.b16 %v46
  %v187 = vunpack.c.l.b16 %v47
  %v188 = vunpack.c.l.b16 %v48
  %v189 = vunpack.c.l.b16 %v49
  %v190 = vunpack.c.l.b16 %v50
  %v191 = vunpack.c.l.b16 %v51
  %v192 = vunpack.c.l.b16 %v52
  %v193 = vunpack.c.l.b16 %v53
  %v194 = vunpack.c.l.b16 %v54
  %v195 = vunpack.c.l.b16 %v55
  %v196 = vunpack.c.l.b16 %v56
  %v197 = vunpack.c.l.b16 %v57
  %v198 = vunpack.c.l.b16 %v58
  %v199 = vunpack.c.l.b16 %v59
  %v200 = vunpack.c.l.b16 %v60
  %v201 = vunpack.c.l.b16 %v61
  %v202 = vunpack.c.l.b16 %v62
  %v203 = vunpack.c.l.b16 %v63
  %v204 = vunpack.c.l.b16 %v64
  %v205 = vunpack.c.l.b16 %v65
  %v206 = vunpack.c.l.b16 %v66
  %v207 = vunpack.c.l.b16 %v67
  %v208 = vunpack.c.l.b16 %v68
  %v209 = vunpack.c.l.b16 %v69
  %v210 = vunpack.c.l.b16 %v70
  %v211 = vunpack.c.l.b16 %v71
  %v212 = vunpack.c.l.b16 %v72
  %v213 = vunpack.c.l.b16 %v73
  %v214 = vunpack.c.l.b16 %v74
  %v215 = vunpack.c.l.b16 %v75
  %v216 = vunpack.c.l.b16 %v76
  %v217 = vunpack.c.l.b16 %v77
  %v218 = vunpack.c.l.b16 %v78
  %v219 = vpack.c.b16 %v156, %v155
  %v220 = vpack.c.b16 %v158, %v157
  %v221 = vpack.c.b16 %v160, %v159
  %v222 = vpack.c.b16 %v162, %v161
  %v223 = vpack.c.b16 %v164, %v163
  %v224 = vpack.c.b16 %v166, %v165
  %v225 = vpack.c.b16 %v168, %v167
  %v226 = vpack.c.b16 %v170, %v169
  %v227 = vpack.c.b16 %v172, %v171
  %v228 = vpack.c.b16 %v174, %v173
  %v229 = vpack.c.b16 %v176, %v175
  %v230 = vpack.c.b16 %v178, %v177
  %v231 = vpack.c.b16 %v180, %v179
  %v232 = vpack.c.b16 %v182, %v181
  %v233 = vpack.c.b16 %v184, %v183
  %v234 = vpack.c.b16 %v186, %v185
  %v235 = vpack.c.b16 %v188, %v187
  %v236 = vpack.c.b16 %v190, %v189
  %v237 = vpack.c.b16 %v192, %v191
  %v238 = vpack.c.b16 %v194, %v193
  %v239 = vpack.c.b16 %v196, %v195
  %v240 = vpack.c.b16 %v198, %v197
  %v241 = vpack.c.b16 %v200, %v199
  %v242 = vpack.c.b16 %v202, %v201
  %v243 = vpack.c.b16 %v204, %v203
  %v244 = vpack.c.b16 %v206, %v205
  %v245 = vpack.c.b16 %v208, %v207
  %v246 = vpack.c.b16 %v210, %v209
  %v247 = vpack.c.b16 %v212, %v211
  %v248 = vpack.c.b16 %v214, %v213
  %v249 = vpack.c.b16 %v216, %v215
  %v250 = vpack.c.b16 %v218, %v217
  %v256 = vunpack.c.l.b16 %v79
  %v257 = vunpack.c.l.b16 %v80
  %v258 = vunpack.c.l.b16 %v81
  %v259 = vunpack.c.l.b16 %v82
  %v260 = vunpack.c.l.b16 %v83
  %v261 = vpack.c.b16 %v257, %v256
  %v262 = vpack.c.b16 %v259, %v258
  %v263 = vpack.c.b16 %v260, %v260
  %vm266 = vcmask 293888
  %v268 = vsel %vm266, %v219, 0
  %v271 = vsel %vm266, %v220, 0
  %v274 = vsel %vm266, %v221, 0
  %v277 = vsel %vm266, %v222, 0
  %v280 = vsel %vm266, %v223, 0
  %v283 = vsel %vm266, %v224, 0
  %v286 = vsel %vm266, %v225, 0
  %v289 = vsel %vm266, %v226, 0
  %v292 = vsel %vm266, %v227, 0
  %v295 = vsel %vm266, %v228, 0
  %v298 = vsel %vm266, %v229, 0
  %v301 = vsel %vm266, %v230, 0
  %v304 = vsel %vm266, %v231, 0
  %v307 = vsel %vm266, %v232, 0
  %v310 = vsel %vm266, %v233, 0
  %v313 = vsel %vm266, %v234, 0
  %v316 = vsel %vm266, %v235, 0
  %v319 = vsel %vm266, %v236, 0
  %v322 = vsel %vm266, %v237, 0
  %v325 = vsel %vm266, %v238, 0
  %v328 = vsel %vm266, %v239, 0
  %v331 = vsel %vm266, %v240, 0
  %v334 = vsel %vm266, %v241, 0
  %v337 = vsel %vm266, %v242, 0
  %v340 = vsel %vm266, %v243, 0
  %v343 = vsel %vm266, %v244, 0
  %v346 = vsel %vm266, %v245, 0
  %v349 = vsel %vm266, %v246, 0
  %v352 = vsel %vm266, %v247, 0
  %v355 = vsel %vm266, %v248, 0
  %v358 = vsel %vm266, %v249, 0
  %v361 = vsel %vm266, %v250, 0
  %vm363 = vcmask 1041408
  %v365 = vsel %vm363, %v263, 0
  %367 = vmatprep.subr.bf16.mxu0 0
  %368 = vmatpush1.bf16.msra.mxu0 %v261
  %369 = vmatprep.subr.bf16.mxu0 0
  %370 = vmatpush1.bf16.msra.mxu0 %v262
  %371 = vmatprep.subr.bf16.mxu0 0
  %372 = vmatpush1.bf16.msra.mxu0 %v365
  %373 = vmatprep.subr.bf16.mxu0 0
  %374 = vmatpush1.bf16.msra.mxu0 0
  %375 = vmatprep.subr.bf16.mxu0 0
  %376 = vmatpush1.bf16.msra.mxu0 0
  %377 = vmatprep.subr.bf16.mxu0 0
  %378 = vmatpush1.bf16.msra.mxu0 0
  %379 = vmatprep.subr.bf16.mxu0 0
  %380 = vmatpush1.bf16.msra.mxu0 0
  %381 = vmatprep.subr.bf16.mxu0 0
  %382 = vmatpush1.bf16.msra.mxu0 0
  %383 = vmatprep.subr.bf16.mxu0 0
  %384 = vmatpush1.bf16.msra.mxu0 0
  %385 = vmatprep.subr.bf16.mxu0 0
  %386 = vmatpush1.bf16.msra.mxu0 0
  %387 = vmatprep.subr.bf16.mxu0 0
  %388 = vmatpush1.bf16.msra.mxu0 0
  %389 = vmatprep.subr.bf16.mxu0 0
  %390 = vmatpush1.bf16.msra.mxu0 0
  %391 = vmatprep.subr.bf16.mxu0 0
  %392 = vmatpush1.bf16.msra.mxu0 0
  %393 = vmatprep.subr.bf16.mxu0 0
  %394 = vmatpush1.bf16.msra.mxu0 0
  %395 = vmatprep.subr.bf16.mxu0 0
  %396 = vmatpush1.bf16.msra.mxu0 0
  %397 = vmatprep.subr.bf16.mxu0 0
  %398 = vmatpush1.bf16.msra.mxu0 0
  %399 = vmatprep.mubr.bf16.mxu0 0
  %400 = vmatmul.mubr.bf16.gmra.mrb[0].mxu0 %v268
  %v401 = vpop.f32.mrb[0].mxu0
  %v402 = vadd.f32 %v89, %v401
  %v403 = vpop.f32.mrb[0].mxu0
  %v404 = vpop.f32.mrb[0].mxu0
  %v405 = vadd.f32 %v89, %v404
  %v406 = vpop.f32.mrb[0].mxu0
  %407 = vmatprep.mubr.bf16.mxu0 0
  %408 = vmatmul.mubr.bf16.gmra.mrb[0].mxu0 %v271
  %v409 = vpop.f32.mrb[0].mxu0
  %v410 = vadd.f32 %v89, %v409
  %v411 = vpop.f32.mrb[0].mxu0
  %v412 = vpop.f32.mrb[0].mxu0
  %v413 = vadd.f32 %v89, %v412
  %v414 = vpop.f32.mrb[0].mxu0
  %415 = vmatprep.mubr.bf16.mxu0 0
  %416 = vmatmul.mubr.bf16.gmra.mrb[0].mxu0 %v274
  %v417 = vpop.f32.mrb[0].mxu0
  %v418 = vadd.f32 %v89, %v417
  %v419 = vpop.f32.mrb[0].mxu0
  %v420 = vpop.f32.mrb[0].mxu0
  %v421 = vadd.f32 %v89, %v420
  %v422 = vpop.f32.mrb[0].mxu0
  %423 = vmatprep.mubr.bf16.mxu0 0
  %424 = vmatmul.mubr.bf16.gmra.mrb[0].mxu0 %v277
  %v425 = vpop.f32.mrb[0].mxu0
  %v426 = vadd.f32 %v89, %v425
  %v427 = vpop.f32.mrb[0].mxu0
  %v428 = vpop.f32.mrb[0].mxu0
  %v429 = vadd.f32 %v89, %v428
  %v430 = vpop.f32.mrb[0].mxu0
  %431 = vmatprep.mubr.bf16.mxu0 0
  %432 = vmatmul.mubr.bf16.gmra.mrb[0].mxu0 %v280
  %v433 = vpop.f32.mrb[0].mxu0
  %v434 = vadd.f32 %v89, %v433
  %v435 = vpop.f32.mrb[0].mxu0
  %v436 = vpop.f32.mrb[0].mxu0
  %v437 = vadd.f32 %v89, %v436
  %v438 = vpop.f32.mrb[0].mxu0
  %439 = vmatprep.mubr.bf16.mxu0 0
  %440 = vmatmul.mubr.bf16.gmra.mrb[0].mxu0 %v283
  %v441 = vpop.f32.mrb[0].mxu0
  %v442 = vadd.f32 %v89, %v441
  %v443 = vpop.f32.mrb[0].mxu0
  %v444 = vpop.f32.mrb[0].mxu0
  %v445 = vadd.f32 %v89, %v444
  %v446 = vpop.f32.mrb[0].mxu0
  %447 = vmatprep.mubr.bf16.mxu0 0
  %448 = vmatmul.mubr.bf16.gmra.mrb[0].mxu0 %v286
  %v449 = vpop.f32.mrb[0].mxu0
  %v450 = vadd.f32 %v89, %v449
  %v451 = vpop.f32.mrb[0].mxu0
  %v452 = vpop.f32.mrb[0].mxu0
  %v453 = vadd.f32 %v89, %v452
  %v454 = vpop.f32.mrb[0].mxu0
  %455 = vmatprep.mubr.bf16.mxu0 0
  %456 = vmatmul.mubr.bf16.gmra.mrb[0].mxu0 %v289
  %v457 = vpop.f32.mrb[0].mxu0
  %v458 = vadd.f32 %v89, %v457
  %v459 = vpop.f32.mrb[0].mxu0
  %v460 = vpop.f32.mrb[0].mxu0
  %v461 = vadd.f32 %v89, %v460
  %v462 = vpop.f32.mrb[0].mxu0
  %463 = vmatprep.mubr.bf16.mxu0 0
  %464 = vmatmul.mubr.bf16.gmra.mrb[0].mxu0 %v292
  %v465 = vpop.f32.mrb[0].mxu0
  %v466 = vadd.f32 %v89, %v465
  %v467 = vpop.f32.mrb[0].mxu0
  %v468 = vpop.f32.mrb[0].mxu0
  %v469 = vadd.f32 %v89, %v468
  %v470 = vpop.f32.mrb[0].mxu0
  %471 = vmatprep.mubr.bf16.mxu0 0
  %472 = vmatmul.mubr.bf16.gmra.mrb[0].mxu0 %v295
  %v473 = vpop.f32.mrb[0].mxu0
  %v474 = vadd.f32 %v89, %v473
  %v475 = vpop.f32.mrb[0].mxu0
  %v476 = vpop.f32.mrb[0].mxu0
  %v477 = vadd.f32 %v89, %v476
  %v478 = vpop.f32.mrb[0].mxu0
  %479 = vmatprep.mubr.bf16.mxu0 0
  %480 = vmatmul.mubr.bf16.gmra.mrb[0].mxu0 %v298
  %v481 = vpop.f32.mrb[0].mxu0
  %v482 = vadd.f32 %v89, %v481
  %v483 = vpop.f32.mrb[0].mxu0
  %v484 = vpop.f32.mrb[0].mxu0
  %v485 = vadd.f32 %v89, %v484
  %v486 = vpop.f32.mrb[0].mxu0
  %487 = vmatprep.mubr.bf16.mxu0 0
  %488 = vmatmul.mubr.bf16.gmra.mrb[0].mxu0 %v301
  %v489 = vpop.f32.mrb[0].mxu0
  %v490 = vadd.f32 %v89, %v489
  %v491 = vpop.f32.mrb[0].mxu0
  %v492 = vpop.f32.mrb[0].mxu0
  %v493 = vadd.f32 %v89, %v492
  %v494 = vpop.f32.mrb[0].mxu0
  %495 = vmatprep.mubr.bf16.mxu0 0
  %496 = vmatmul.mubr.bf16.gmra.mrb[0].mxu0 %v304
  %v497 = vpop.f32.mrb[0].mxu0
  %v498 = vadd.f32 %v89, %v497
  %v499 = vpop.f32.mrb[0].mxu0
  %v500 = vpop.f32.mrb[0].mxu0
  %v501 = vadd.f32 %v89, %v500
  %v502 = vpop.f32.mrb[0].mxu0
  %503 = vmatprep.mubr.bf16.mxu0 0
  %504 = vmatmul.mubr.bf16.gmra.mrb[0].mxu0 %v307
  %v505 = vpop.f32.mrb[0].mxu0
  %v506 = vadd.f32 %v89, %v505
  %v507 = vpop.f32.mrb[0].mxu0
  %v508 = vpop.f32.mrb[0].mxu0
  %v509 = vadd.f32 %v89, %v508
  %v510 = vpop.f32.mrb[0].mxu0
  %511 = vmatprep.mubr.bf16.mxu0 0
  %512 = vmatmul.mubr.bf16.gmra.mrb[0].mxu0 %v310
  %v513 = vpop.f32.mrb[0].mxu0
  %v514 = vadd.f32 %v89, %v513
  %v515 = vpop.f32.mrb[0].mxu0
  %v516 = vpop.f32.mrb[0].mxu0
  %v517 = vadd.f32 %v89, %v516
  %v518 = vpop.f32.mrb[0].mxu0
  %519 = vmatprep.mubr.bf16.mxu0 0
  %520 = vmatmul.mubr.bf16.gmra.mrb[0].mxu0 %v313
  %v521 = vpop.f32.mrb[0].mxu0
  %v522 = vadd.f32 %v89, %v521
  %v523 = vpop.f32.mrb[0].mxu0
  %v524 = vpop.f32.mrb[0].mxu0
  %v525 = vadd.f32 %v89, %v524
  %v526 = vpop.f32.mrb[0].mxu0
  %527 = vmatprep.mubr.bf16.mxu0 0
  %528 = vmatmul.mubr.bf16.gmra.mrb[0].mxu0 %v316
  %v529 = vpop.f32.mrb[0].mxu0
  %v530 = vadd.f32 %v89, %v529
  %v531 = vpop.f32.mrb[0].mxu0
  %v532 = vpop.f32.mrb[0].mxu0
  %v533 = vadd.f32 %v89, %v532
  %v534 = vpop.f32.mrb[0].mxu0
  %535 = vmatprep.mubr.bf16.mxu0 0
  %536 = vmatmul.mubr.bf16.gmra.mrb[0].mxu0 %v319
  %v537 = vpop.f32.mrb[0].mxu0
  %v538 = vadd.f32 %v89, %v537
  %v539 = vpop.f32.mrb[0].mxu0
  %v540 = vpop.f32.mrb[0].mxu0
  %v541 = vadd.f32 %v89, %v540
  %v542 = vpop.f32.mrb[0].mxu0
  %543 = vmatprep.mubr.bf16.mxu0 0
  %544 = vmatmul.mubr.bf16.gmra.mrb[0].mxu0 %v322
  %v545 = vpop.f32.mrb[0].mxu0
  %v546 = vadd.f32 %v89, %v545
  %v547 = vpop.f32.mrb[0].mxu0
  %v548 = vpop.f32.mrb[0].mxu0
  %v549 = vadd.f32 %v89, %v548
  %v550 = vpop.f32.mrb[0].mxu0
  %551 = vmatprep.mubr.bf16.mxu0 0
  %552 = vmatmul.mubr.bf16.gmra.mrb[0].mxu0 %v325
  %v553 = vpop.f32.mrb[0].mxu0
  %v554 = vadd.f32 %v89, %v553
  %v555 = vpop.f32.mrb[0].mxu0
  %v556 = vpop.f32.mrb[0].mxu0
  %v557 = vadd.f32 %v89, %v556
  %v558 = vpop.f32.mrb[0].mxu0
  %559 = vmatprep.mubr.bf16.mxu0 0
  %560 = vmatmul.mubr.bf16.gmra.mrb[0].mxu0 %v328
  %v561 = vpop.f32.mrb[0].mxu0
  %v562 = vadd.f32 %v89, %v561
  %v563 = vpop.f32.mrb[0].mxu0
  %v564 = vpop.f32.mrb[0].mxu0
  %v565 = vadd.f32 %v89, %v564
  %v566 = vpop.f32.mrb[0].mxu0
  %567 = vmatprep.mubr.bf16.mxu0 0
  %568 = vmatmul.mubr.bf16.gmra.mrb[0].mxu0 %v331
  %v569 = vpop.f32.mrb[0].mxu0
  %v570 = vadd.f32 %v89, %v569
  %v571 = vpop.f32.mrb[0].mxu0
  %v572 = vpop.f32.mrb[0].mxu0
  %v573 = vadd.f32 %v89, %v572
  %v574 = vpop.f32.mrb[0].mxu0
  %575 = vmatprep.mubr.bf16.mxu0 0
  %576 = vmatmul.mubr.bf16.gmra.mrb[0].mxu0 %v334
  %v577 = vpop.f32.mrb[0].mxu0
  %v578 = vadd.f32 %v89, %v577
  %v579 = vpop.f32.mrb[0].mxu0
  %v580 = vpop.f32.mrb[0].mxu0
  %v581 = vadd.f32 %v89, %v580
  %v582 = vpop.f32.mrb[0].mxu0
  %583 = vmatprep.mubr.bf16.mxu0 0
  %584 = vmatmul.mubr.bf16.gmra.mrb[0].mxu0 %v337
  %v585 = vpop.f32.mrb[0].mxu0
  %v586 = vadd.f32 %v89, %v585
  %v587 = vpop.f32.mrb[0].mxu0
  %v588 = vpop.f32.mrb[0].mxu0
  %v589 = vadd.f32 %v89, %v588
  %v590 = vpop.f32.mrb[0].mxu0
  %591 = vmatprep.mubr.bf16.mxu0 0
  %592 = vmatmul.mubr.bf16.gmra.mrb[0].mxu0 %v340
  %v593 = vpop.f32.mrb[0].mxu0
  %v594 = vadd.f32 %v89, %v593
  %v595 = vpop.f32.mrb[0].mxu0
  %v596 = vpop.f32.mrb[0].mxu0
  %v597 = vadd.f32 %v89, %v596
  %v598 = vpop.f32.mrb[0].mxu0
  %599 = vmatprep.mubr.bf16.mxu0 0
  %600 = vmatmul.mubr.bf16.gmra.mrb[0].mxu0 %v343
  %v601 = vpop.f32.mrb[0].mxu0
  %v602 = vadd.f32 %v89, %v601
  %v603 = vpop.f32.mrb[0].mxu0
  %v604 = vpop.f32.mrb[0].mxu0
  %v605 = vadd.f32 %v89, %v604
  %v606 = vpop.f32.mrb[0].mxu0
  %607 = vmatprep.mubr.bf16.mxu0 0
  %608 = vmatmul.mubr.bf16.gmra.mrb[0].mxu0 %v346
  %v609 = vpop.f32.mrb[0].mxu0
  %v610 = vadd.f32 %v89, %v609
  %v611 = vpop.f32.mrb[0].mxu0
  %v612 = vpop.f32.mrb[0].mxu0
  %v613 = vadd.f32 %v89, %v612
  %v614 = vpop.f32.mrb[0].mxu0
  %615 = vmatprep.mubr.bf16.mxu0 0
  %616 = vmatmul.mubr.bf16.gmra.mrb[0].mxu0 %v349
  %v617 = vpop.f32.mrb[0].mxu0
  %v618 = vadd.f32 %v89, %v617
  %v619 = vpop.f32.mrb[0].mxu0
  %v620 = vpop.f32.mrb[0].mxu0
  %v621 = vadd.f32 %v89, %v620
  %v622 = vpop.f32.mrb[0].mxu0
  %623 = vmatprep.mubr.bf16.mxu0 0
  %624 = vmatmul.mubr.bf16.gmra.mrb[0].mxu0 %v352
  %v625 = vpop.f32.mrb[0].mxu0
  %v626 = vadd.f32 %v89, %v625
  %v627 = vpop.f32.mrb[0].mxu0
  %v628 = vpop.f32.mrb[0].mxu0
  %v629 = vadd.f32 %v89, %v628
  %v630 = vpop.f32.mrb[0].mxu0
  %631 = vmatprep.mubr.bf16.mxu0 0
  %632 = vmatmul.mubr.bf16.gmra.mrb[0].mxu0 %v355
  %v633 = vpop.f32.mrb[0].mxu0
  %v634 = vadd.f32 %v89, %v633
  %v635 = vpop.f32.mrb[0].mxu0
  %v636 = vpop.f32.mrb[0].mxu0
  %v637 = vadd.f32 %v89, %v636
  %v638 = vpop.f32.mrb[0].mxu0
  %639 = vmatprep.mubr.bf16.mxu0 0
  %640 = vmatmul.mubr.bf16.gmra.mrb[0].mxu0 %v358
  %v641 = vpop.f32.mrb[0].mxu0
  %v642 = vadd.f32 %v89, %v641
  %v643 = vpop.f32.mrb[0].mxu0
  %v644 = vpop.f32.mrb[0].mxu0
  %v645 = vadd.f32 %v89, %v644
  %v646 = vpop.f32.mrb[0].mxu0
  %647 = vmatprep.mubr.bf16.mxu0 0
  %648 = vmatmul.mubr.bf16.gmra.mrb[0].mxu0 %v361
  %v649 = vpop.f32.mrb[0].mxu0
  %v650 = vadd.f32 %v89, %v649
  %v651 = vpop.f32.mrb[0].mxu0
  %v652 = vpop.f32.mrb[0].mxu0
  %v653 = vadd.f32 %v89, %v652
  %v654 = vpop.f32.mrb[0].mxu0
  %655 = vdwg.mxu0
  %vm656 = vcmask 64512
  %657 = vst.msk [vmem:[%s3] sm:$0xff] %vm656, %v402
  %658 = vst.msk [vmem:[%s3 + $0x8] sm:$0xff] %vm656, %v405
  %659 = vst.msk [vmem:[%s3 + $0x10] sm:$0xff] %vm656, %v410
  %660 = vst.msk [vmem:[%s3 + $0x18] sm:$0xff] %vm656, %v413
  %661 = vst.msk [vmem:[%s3 + $0x20] sm:$0xff] %vm656, %v418
  %662 = vst.msk [vmem:[%s3 + $0x28] sm:$0xff] %vm656, %v421
  %663 = vst.msk [vmem:[%s3 + $0x30] sm:$0xff] %vm656, %v426
  %664 = vst.msk [vmem:[%s3 + $0x38] sm:$0xff] %vm656, %v429
  %665 = vst.msk [vmem:[%s3 + $0x40] sm:$0xff] %vm656, %v434
  %666 = vst.msk [vmem:[%s3 + $0x48] sm:$0xff] %vm656, %v437
  %667 = vst.msk [vmem:[%s3 + $0x50] sm:$0xff] %vm656, %v442
  %668 = vst.msk [vmem:[%s3 + $0x58] sm:$0xff] %vm656, %v445
  %669 = vst.msk [vmem:[%s3 + $0x60] sm:$0xff] %vm656, %v450
  %670 = vst.msk [vmem:[%s3 + $0x68] sm:$0xff] %vm656, %v453
  %671 = vst.msk [vmem:[%s3 + $0x70] sm:$0xff] %vm656, %v458
  %672 = vst.msk [vmem:[%s3 + $0x78] sm:$0xff] %vm656, %v461
  %673 = vst.msk [vmem:[%s3 + $0x80] sm:$0xff] %vm656, %v466
  %674 = vst.msk [vmem:[%s3 + $0x88] sm:$0xff] %vm656, %v469
  %675 = vst.msk [vmem:[%s3 + $0x90] sm:$0xff] %vm656, %v474
  %676 = vst.msk [vmem:[%s3 + $0x98] sm:$0xff] %vm656, %v477
  %677 = vst.msk [vmem:[%s3 + $0xa0] sm:$0xff] %vm656, %v482
  %678 = vst.msk [vmem:[%s3 + $0xa8] sm:$0xff] %vm656, %v485
  %679 = vst.msk [vmem:[%s3 + $0xb0] sm:$0xff] %vm656, %v490
  %680 = vst.msk [vmem:[%s3 + $0xb8] sm:$0xff] %vm656, %v493
  %681 = vst.msk [vmem:[%s3 + $0xc0] sm:$0xff] %vm656, %v498
  %682 = vst.msk [vmem:[%s3 + $0xc8] sm:$0xff] %vm656, %v501
  %683 = vst.msk [vmem:[%s3 + $0xd0] sm:$0xff] %vm656, %v506
  %684 = vst.msk [vmem:[%s3 + $0xd8] sm:$0xff] %vm656, %v509
  %685 = vst.msk [vmem:[%s3 + $0xe0] sm:$0xff] %vm656, %v514
  %686 = vst.msk [vmem:[%s3 + $0xe8] sm:$0xff] %vm656, %v517
  %687 = vst.msk [vmem:[%s3 + $0xf0] sm:$0xff] %vm656, %v522
  %688 = vst.msk [vmem:[%s3 + $0xf8] sm:$0xff] %vm656, %v525
  %689 = vst.msk [vmem:[%s3 + $0x100] sm:$0xff] %vm656, %v530
  %690 = vst.msk [vmem:[%s3 + $0x108] sm:$0xff] %vm656, %v533
  %691 = vst.msk [vmem:[%s3 + $0x110] sm:$0xff] %vm656, %v538
  %692 = vst.msk [vmem:[%s3 + $0x118] sm:$0xff] %vm656, %v541
  %693 = vst.msk [vmem:[%s3 + $0x120] sm:$0xff] %vm656, %v546
  %694 = vst.msk [vmem:[%s3 + $0x128] sm:$0xff] %vm656, %v549
  %695 = vst.msk [vmem:[%s3 + $0x130] sm:$0xff] %vm656, %v554
  %696 = vst.msk [vmem:[%s3 + $0x138] sm:$0xff] %vm656, %v557
  %697 = vst.msk [vmem:[%s3 + $0x140] sm:$0xff] %vm656, %v562
  %698 = vst.msk [vmem:[%s3 + $0x148] sm:$0xff] %vm656, %v565
  %699 = vst.msk [vmem:[%s3 + $0x150] sm:$0xff] %vm656, %v570
  %700 = vst.msk [vmem:[%s3 + $0x158] sm:$0xff] %vm656, %v573
  %701 = vst.msk [vmem:[%s3 + $0x160] sm:$0xff] %vm656, %v578
  %702 = vst.msk [vmem:[%s3 + $0x168] sm:$0xff] %vm656, %v581
  %703 = vst.msk [vmem:[%s3 + $0x170] sm:$0xff] %vm656, %v586
  %704 = vst.msk [vmem:[%s3 + $0x178] sm:$0xff] %vm656, %v589
  %705 = vst.msk [vmem:[%s3 + $0x180] sm:$0xff] %vm656, %v594
  %706 = vst.msk [vmem:[%s3 + $0x188] sm:$0xff] %vm656, %v597
  %707 = vst.msk [vmem:[%s3 + $0x190] sm:$0xff] %vm656, %v602
  %708 = vst.msk [vmem:[%s3 + $0x198] sm:$0xff] %vm656, %v605
  %709 = vst.msk [vmem:[%s3 + $0x1a0] sm:$0xff] %vm656, %v610
  %710 = vst.msk [vmem:[%s3 + $0x1a8] sm:$0xff] %vm656, %v613
  %711 = vst.msk [vmem:[%s3 + $0x1b0] sm:$0xff] %vm656, %v618
  %712 = vst.msk [vmem:[%s3 + $0x1b8] sm:$0xff] %vm656, %v621
  %713 = vst.msk [vmem:[%s3 + $0x1c0] sm:$0xff] %vm656, %v626
  %714 = vst.msk [vmem:[%s3 + $0x1c8] sm:$0xff] %vm656, %v629
  %715 = vst.msk [vmem:[%s3 + $0x1d0] sm:$0xff] %vm656, %v634
  %716 = vst.msk [vmem:[%s3 + $0x1d8] sm:$0xff] %vm656, %v637
  %717 = vst.msk [vmem:[%s3 + $0x1e0] sm:$0xff] %vm656, %v642
  %718 = vst.msk [vmem:[%s3 + $0x1e8] sm:$0xff] %vm656, %v645
  %719 = vst.msk [vmem:[%s3 + $0x1f0] sm:$0xff] %vm656, %v650
  %720 = vst.msk [vmem:[%s3 + $0x1f8] sm:$0xff] %vm656, %v653
  // Predicated region
  $region14: #{fastfc_forward.13} parent=0 // pred_check
    _
  $region15: #{fastfc_forward.13} parent=0 // pred_check_branch
    %722 = sbr.rel (0) target = $region17
  $region16: #{fastfc_forward.13} parent=0 // pred_region
    _
  $region17: #{fastfc_forward.13} parent=0 // pred_fallthru
    _
  // Predicated region
  $region18: #{fastfc_forward.13} parent=0 // pred_check
    _
  $region19: #{fastfc_forward.13} parent=0 // pred_check_branch
    %724 = sbr.rel (0) target = $region21
  $region20: #{fastfc_forward.13} parent=0 // pred_region
    _
  $region21: #{fastfc_forward.13} parent=0 // pred_fallthru
    _

// kernel: fastfc_forward.14
$region0: #{fastfc_forward.14}
  #allocation0 [shape = 'u32[]', space=smem, size = 0x4, offset = 0x4, fixed_abs, tag = 'smem constant byte address 0x4 - core index']
  #allocation1 [shape = 'u32[144,128]{1,0:T(1,128)}', space=vmem, size = 0x12000, scoped, tag = 'internal scratch']
  %s0 = inlined_call_operand.vmem [shape: bf16[512,36], index: 0, kind: input, shape index: {}]
  %s1 = inlined_call_operand.vmem [shape: bf16[36,4], index: 1, kind: input, shape index: {}]
  %s2 = inlined_call_operand.vmem [shape: f32[1,4], index: 2, kind: input, shape index: {}]
  %s3 = inlined_call_operand.vmem [shape: f32[512,4], index: 3, kind: output, shape index: {}]
  %s4 = sld [smem:[#allocation0]]
  $region22: #{fastfc_forward.14} parent=0
    _
  %s6 = ssub.s32 1, %s4
  %s7 = scalar_select 0, %s6, %s4
  // Predicated region
  $region2: #{fastfc_forward.14} parent=0 // pred_check
    _
  $region3: #{fastfc_forward.14} parent=0 // pred_check_branch
    %9 = sbr.rel (0) target = $region5
  $region4: #{fastfc_forward.14} parent=0 // pred_region
    _
  $region5: #{fastfc_forward.14} parent=0 // pred_fallthru
    _
  // Predicated region
  $region6: #{fastfc_forward.14} parent=0 // pred_check
    _
  $region7: #{fastfc_forward.14} parent=0 // pred_check_branch
    %11 = sbr.rel (0) target = $region9
  $region8: #{fastfc_forward.14} parent=0 // pred_region
    _
  $region9: #{fastfc_forward.14} parent=0 // pred_fallthru
    _
  // Predicated region
  $region10: #{fastfc_forward.14} parent=0 // pred_check
    _
  $region11: #{fastfc_forward.14} parent=0 // pred_check_branch
    %13 = sbr.rel (0) target = $region13
  $region12: #{fastfc_forward.14} parent=0 // pred_region
    _
  $region13: #{fastfc_forward.14} parent=0 // pred_fallthru
    _
  %v15 = vld [vmem:[%s0] sm:$0xf]
  %v16 = vld [vmem:[%s0 + $0x4] sm:$0xf]
  %v17 = vld [vmem:[%s0 + $0x8] sm:$0xf]
  %v18 = vld [vmem:[%s0 + $0xc] sm:$0xf]
  %v19 = vld [vmem:[%s0 + $0x10] sm:$0xf]
  %v20 = vld [vmem:[%s0 + $0x14] sm:$0xf]
  %v21 = vld [vmem:[%s0 + $0x18] sm:$0xf]
  %v22 = vld [vmem:[%s0 + $0x1c] sm:$0xf]
  %v23 = vld [vmem:[%s0 + $0x20] sm:$0xf]
  %v24 = vld [vmem:[%s0 + $0x24] sm:$0xf]
  %v25 = vld [vmem:[%s0 + $0x28] sm:$0xf]
  %v26 = vld [vmem:[%s0 + $0x2c] sm:$0xf]
  %v27 = vld [vmem:[%s0 + $0x30] sm:$0xf]
  %v28 = vld [vmem:[%s0 + $0x34] sm:$0xf]
  %v29 = vld [vmem:[%s0 + $0x38] sm:$0xf]
  %v30 = vld [vmem:[%s0 + $0x3c] sm:$0xf]
  %v31 = vld [vmem:[%s0 + $0x40] sm:$0xf]
  %v32 = vld [vmem:[%s0 + $0x44] sm:$0xf]
  %v33 = vld [vmem:[%s0 + $0x48] sm:$0xf]
  %v34 = vld [vmem:[%s0 + $0x4c] sm:$0xf]
  %v35 = vld [vmem:[%s0 + $0x50] sm:$0xf]
  %v36 = vld [vmem:[%s0 + $0x54] sm:$0xf]
  %v37 = vld [vmem:[%s0 + $0x58] sm:$0xf]
  %v38 = vld [vmem:[%s0 + $0x5c] sm:$0xf]
  %v39 = vld [vmem:[%s0 + $0x60] sm:$0xf]
  %v40 = vld [vmem:[%s0 + $0x64] sm:$0xf]
  %v41 = vld [vmem:[%s0 + $0x68] sm:$0xf]
  %v42 = vld [vmem:[%s0 + $0x6c] sm:$0xf]
  %v43 = vld [vmem:[%s0 + $0x70] sm:$0xf]
  %v44 = vld [vmem:[%s0 + $0x74] sm:$0xf]
  %v45 = vld [vmem:[%s0 + $0x78] sm:$0xf]
  %v46 = vld [vmem:[%s0 + $0x7c] sm:$0xf]
  %v47 = vld [vmem:[%s0 + $0x80] sm:$0xf]
  %v48 = vld [vmem:[%s0 + $0x84] sm:$0xf]
  %v49 = vld [vmem:[%s0 + $0x88] sm:$0xf]
  %v50 = vld [vmem:[%s0 + $0x8c] sm:$0xf]
  %v51 = vld [vmem:[%s0 + $0x90] sm:$0xf]
  %v52 = vld [vmem:[%s0 + $0x94] sm:$0xf]
  %v53 = vld [vmem:[%s0 + $0x98] sm:$0xf]
  %v54 = vld [vmem:[%s0 + $0x9c] sm:$0xf]
  %v55 = vld [vmem:[%s0 + $0xa0] sm:$0xf]
  %v56 = vld [vmem:[%s0 + $0xa4] sm:$0xf]
  %v57 = vld [vmem:[%s0 + $0xa8] sm:$0xf]
  %v58 = vld [vmem:[%s0 + $0xac] sm:$0xf]
  %v59 = vld [vmem:[%s0 + $0xb0] sm:$0xf]
  %v60 = vld [vmem:[%s0 + $0xb4] sm:$0xf]
  %v61 = vld [vmem:[%s0 + $0xb8] sm:$0xf]
  %v62 = vld [vmem:[%s0 + $0xbc] sm:$0xf]
  %v63 = vld [vmem:[%s0 + $0xc0] sm:$0xf]
  %v64 = vld [vmem:[%s0 + $0xc4] sm:$0xf]
  %v65 = vld [vmem:[%s0 + $0xc8] sm:$0xf]
  %v66 = vld [vmem:[%s0 + $0xcc] sm:$0xf]
  %v67 = vld [vmem:[%s0 + $0xd0] sm:$0xf]
  %v68 = vld [vmem:[%s0 + $0xd4] sm:$0xf]
  %v69 = vld [vmem:[%s0 + $0xd8] sm:$0xf]
  %v70 = vld [vmem:[%s0 + $0xdc] sm:$0xf]
  %v71 = vld [vmem:[%s0 + $0xe0] sm:$0xf]
  %v72 = vld [vmem:[%s0 + $0xe4] sm:$0xf]
  %v73 = vld [vmem:[%s0 + $0xe8] sm:$0xf]
  %v74 = vld [vmem:[%s0 + $0xec] sm:$0xf]
  %v75 = vld [vmem:[%s0 + $0xf0] sm:$0xf]
  %v76 = vld [vmem:[%s0 + $0xf4] sm:$0xf]
  %v77 = vld [vmem:[%s0 + $0xf8] sm:$0xf]
  %v78 = vld [vmem:[%s0 + $0xfc] sm:$0xf]
  %v79 = vld [vmem:[%s1] sm:$0xf]
  %v80 = vld [vmem:[%s1 + $0x4] sm:$0xf]
  %v81 = vld [vmem:[%s1 + $0x8] sm:$0xf]
  %v82 = vld [vmem:[%s1 + $0xc] sm:$0xf]
  %v83 = vld [vmem:[%s1 + $0x10] sm:$0x3]
  %v84 = vld [vmem:[%s2] sm:$0x1]
  %v86 = vlaneseq
  %v87 = vshrl.u32 %v86, 7
  %v88 = vsub.s32 0, %v87
  %v89 = vrot.slane %v84, %v88
  %v155 = vunpack.c.l.b16 %v15
  %v156 = vunpack.c.l.b16 %v16
  %v157 = vunpack.c.l.b16 %v17
  %v158 = vunpack.c.l.b16 %v18
  %v159 = vunpack.c.l.b16 %v19
  %v160 = vunpack.c.l.b16 %v20
  %v161 = vunpack.c.l.b16 %v21
  %v162 = vunpack.c.l.b16 %v22
  %v163 = vunpack.c.l.b16 %v23
  %v164 = vunpack.c.l.b16 %v24
  %v165 = vunpack.c.l.b16 %v25
  %v166 = vunpack.c.l.b16 %v26
  %v167 = vunpack.c.l.b16 %v27
  %v168 = vunpack.c.l.b16 %v28
  %v169 = vunpack.c.l.b16 %v29
  %v170 = vunpack.c.l.b16 %v30
  %v171 = vunpack.c.l.b16 %v31
  %v172 = vunpack.c.l.b16 %v32
  %v173 = vunpack.c.l.b16 %v33
  %v174 = vunpack.c.l.b16 %v34
  %v175 = vunpack.c.l.b16 %v35
  %v176 = vunpack.c.l.b16 %v36
  %v177 = vunpack.c.l.b16 %v37
  %v178 = vunpack.c.l.b16 %v38
  %v179 = vunpack.c.l.b16 %v39
  %v180 = vunpack.c.l.b16 %v40
  %v181 = vunpack.c.l.b16 %v41
  %v182 = vunpack.c.l.b16 %v42
  %v183 = vunpack.c.l.b16 %v43
  %v184 = vunpack.c.l.b16 %v44
  %v185 = vunpack.c.l.b16 %v45
  %v186 = vunpack.c.l.b16 %v46
  %v187 = vunpack.c.l.b16 %v47
  %v188 = vunpack.c.l.b16 %v48
  %v189 = vunpack.c.l.b16 %v49
  %v190 = vunpack.c.l.b16 %v50
  %v191 = vunpack.c.l.b16 %v51
  %v192 = vunpack.c.l.b16 %v52
  %v193 = vunpack.c.l.b16 %v53
  %v194 = vunpack.c.l.b16 %v54
  %v195 = vunpack.c.l.b16 %v55
  %v196 = vunpack.c.l.b16 %v56
  %v197 = vunpack.c.l.b16 %v57
  %v198 = vunpack.c.l.b16 %v58
  %v199 = vunpack.c.l.b16 %v59
  %v200 = vunpack.c.l.b16 %v60
  %v201 = vunpack.c.l.b16 %v61
  %v202 = vunpack.c.l.b16 %v62
  %v203 = vunpack.c.l.b16 %v63
  %v204 = vunpack.c.l.b16 %v64
  %v205 = vunpack.c.l.b16 %v65
  %v206 = vunpack.c.l.b16 %v66
  %v207 = vunpack.c.l.b16 %v67
  %v208 = vunpack.c.l.b16 %v68
  %v209 = vunpack.c.l.b16 %v69
  %v210 = vunpack.c.l.b16 %v70
  %v211 = vunpack.c.l.b16 %v71
  %v212 = vunpack.c.l.b16 %v72
  %v213 = vunpack.c.l.b16 %v73
  %v214 = vunpack.c.l.b16 %v74
  %v215 = vunpack.c.l.b16 %v75
  %v216 = vunpack.c.l.b16 %v76
  %v217 = vunpack.c.l.b16 %v77
  %v218 = vunpack.c.l.b16 %v78
  %v219 = vpack.c.b16 %v156, %v155
  %v220 = vpack.c.b16 %v158, %v157
  %v221 = vpack.c.b16 %v160, %v159
  %v222 = vpack.c.b16 %v162, %v161
  %v223 = vpack.c.b16 %v164, %v163
  %v224 = vpack.c.b16 %v166, %v165
  %v225 = vpack.c.b16 %v168, %v167
  %v226 = vpack.c.b16 %v170, %v169
  %v227 = vpack.c.b16 %v172, %v171
  %v228 = vpack.c.b16 %v174, %v173
  %v229 = vpack.c.b16 %v176, %v175
  %v230 = vpack.c.b16 %v178, %v177
  %v231 = vpack.c.b16 %v180, %v179
  %v232 = vpack.c.b16 %v182, %v181
  %v233 = vpack.c.b16 %v184, %v183
  %v234 = vpack.c.b16 %v186, %v185
  %v235 = vpack.c.b16 %v188, %v187
  %v236 = vpack.c.b16 %v190, %v189
  %v237 = vpack.c.b16 %v192, %v191
  %v238 = vpack.c.b16 %v194, %v193
  %v239 = vpack.c.b16 %v196, %v195
  %v240 = vpack.c.b16 %v198, %v197
  %v241 = vpack.c.b16 %v200, %v199
  %v242 = vpack.c.b16 %v202, %v201
  %v243 = vpack.c.b16 %v204, %v203
  %v244 = vpack.c.b16 %v206, %v205
  %v245 = vpack.c.b16 %v208, %v207
  %v246 = vpack.c.b16 %v210, %v209
  %v247 = vpack.c.b16 %v212, %v211
  %v248 = vpack.c.b16 %v214, %v213
  %v249 = vpack.c.b16 %v216, %v215
  %v250 = vpack.c.b16 %v218, %v217
  %v256 = vunpack.c.l.b16 %v79
  %v257 = vunpack.c.l.b16 %v80
  %v258 = vunpack.c.l.b16 %v81
  %v259 = vunpack.c.l.b16 %v82
  %v260 = vunpack.c.l.b16 %v83
  %v261 = vpack.c.b16 %v257, %v256
  %v262 = vpack.c.b16 %v259, %v258
  %v263 = vpack.c.b16 %v260, %v260
  %vm266 = vcmask 293888
  %v268 = vsel %vm266, %v219, 0
  %v271 = vsel %vm266, %v220, 0
  %v274 = vsel %vm266, %v221, 0
  %v277 = vsel %vm266, %v222, 0
  %v280 = vsel %vm266, %v223, 0
  %v283 = vsel %vm266, %v224, 0
  %v286 = vsel %vm266, %v225, 0
  %v289 = vsel %vm266, %v226, 0
  %v292 = vsel %vm266, %v227, 0
  %v295 = vsel %vm266, %v228, 0
  %v298 = vsel %vm266, %v229, 0
  %v301 = vsel %vm266, %v230, 0
  %v304 = vsel %vm266, %v231, 0
  %v307 = vsel %vm266, %v232, 0
  %v310 = vsel %vm266, %v233, 0
  %v313 = vsel %vm266, %v234, 0
  %v316 = vsel %vm266, %v235, 0
  %v319 = vsel %vm266, %v236, 0
  %v322 = vsel %vm266, %v237, 0
  %v325 = vsel %vm266, %v238, 0
  %v328 = vsel %vm266, %v239, 0
  %v331 = vsel %vm266, %v240, 0
  %v334 = vsel %vm266, %v241, 0
  %v337 = vsel %vm266, %v242, 0
  %v340 = vsel %vm266, %v243, 0
  %v343 = vsel %vm266, %v244, 0
  %v346 = vsel %vm266, %v245, 0
  %v349 = vsel %vm266, %v246, 0
  %v352 = vsel %vm266, %v247, 0
  %v355 = vsel %vm266, %v248, 0
  %v358 = vsel %vm266, %v249, 0
  %v361 = vsel %vm266, %v250, 0
  %vm363 = vcmask 1041408
  %v365 = vsel %vm363, %v263, 0
  %367 = vmatprep.subr.bf16.mxu0 0
  %368 = vmatpush1.bf16.msra.mxu0 %v261
  %369 = vmatprep.subr.bf16.mxu0 0
  %370 = vmatpush1.bf16.msra.mxu0 %v262
  %371 = vmatprep.subr.bf16.mxu0 0
  %372 = vmatpush1.bf16.msra.mxu0 %v365
  %373 = vmatprep.subr.bf16.mxu0 0
  %374 = vmatpush1.bf16.msra.mxu0 0
  %375 = vmatprep.subr.bf16.mxu0 0
  %376 = vmatpush1.bf16.msra.mxu0 0
  %377 = vmatprep.subr.bf16.mxu0 0
  %378 = vmatpush1.bf16.msra.mxu0 0
  %379 = vmatprep.subr.bf16.mxu0 0
  %380 = vmatpush1.bf16.msra.mxu0 0
  %381 = vmatprep.subr.bf16.mxu0 0
  %382 = vmatpush1.bf16.msra.mxu0 0
  %383 = vmatprep.subr.bf16.mxu0 0
  %384 = vmatpush1.bf16.msra.mxu0 0
  %385 = vmatprep.subr.bf16.mxu0 0
  %386 = vmatpush1.bf16.msra.mxu0 0
  %387 = vmatprep.subr.bf16.mxu0 0
  %388 = vmatpush1.bf16.msra.mxu0 0
  %389 = vmatprep.subr.bf16.mxu0 0
  %390 = vmatpush1.bf16.msra.mxu0 0
  %391 = vmatprep.subr.bf16.mxu0 0
  %392 = vmatpush1.bf16.msra.mxu0 0
  %393 = vmatprep.subr.bf16.mxu0 0
  %394 = vmatpush1.bf16.msra.mxu0 0
  %395 = vmatprep.subr.bf16.mxu0 0
  %396 = vmatpush1.bf16.msra.mxu0 0
  %397 = vmatprep.subr.bf16.mxu0 0
  %398 = vmatpush1.bf16.msra.mxu0 0
  %399 = vmatprep.mubr.bf16.mxu0 0
  %400 = vmatmul.mubr.bf16.gmra.mrb[0].mxu0 %v268
  %v401 = vpop.f32.mrb[0].mxu0
  %v402 = vadd.f32 %v89, %v401
  %v403 = vpop.f32.mrb[0].mxu0
  %v404 = vpop.f32.mrb[0].mxu0
  %v405 = vadd.f32 %v89, %v404
  %v406 = vpop.f32.mrb[0].mxu0
  %407 = vmatprep.mubr.bf16.mxu0 0
  %408 = vmatmul.mubr.bf16.gmra.mrb[0].mxu0 %v271
  %v409 = vpop.f32.mrb[0].mxu0
  %v410 = vadd.f32 %v89, %v409
  %v411 = vpop.f32.mrb[0].mxu0
  %v412 = vpop.f32.mrb[0].mxu0
  %v413 = vadd.f32 %v89, %v412
  %v414 = vpop.f32.mrb[0].mxu0
  %415 = vmatprep.mubr.bf16.mxu0 0
  %416 = vmatmul.mubr.bf16.gmra.mrb[0].mxu0 %v274
  %v417 = vpop.f32.mrb[0].mxu0
  %v418 = vadd.f32 %v89, %v417
  %v419 = vpop.f32.mrb[0].mxu0
  %v420 = vpop.f32.mrb[0].mxu0
  %v421 = vadd.f32 %v89, %v420
  %v422 = vpop.f32.mrb[0].mxu0
  %423 = vmatprep.mubr.bf16.mxu0 0
  %424 = vmatmul.mubr.bf16.gmra.mrb[0].mxu0 %v277
  %v425 = vpop.f32.mrb[0].mxu0
  %v426 = vadd.f32 %v89, %v425
  %v427 = vpop.f32.mrb[0].mxu0
  %v428 = vpop.f32.mrb[0].mxu0
  %v429 = vadd.f32 %v89, %v428
  %v430 = vpop.f32.mrb[0].mxu0
  %431 = vmatprep.mubr.bf16.mxu0 0
  %432 = vmatmul.mubr.bf16.gmra.mrb[0].mxu0 %v280
  %v433 = vpop.f32.mrb[0].mxu0
  %v434 = vadd.f32 %v89, %v433
  %v435 = vpop.f32.mrb[0].mxu0
  %v436 = vpop.f32.mrb[0].mxu0
  %v437 = vadd.f32 %v89, %v436
  %v438 = vpop.f32.mrb[0].mxu0
  %439 = vmatprep.mubr.bf16.mxu0 0
  %440 = vmatmul.mubr.bf16.gmra.mrb[0].mxu0 %v283
  %v441 = vpop.f32.mrb[0].mxu0
  %v442 = vadd.f32 %v89, %v441
  %v443 = vpop.f32.mrb[0].mxu0
  %v444 = vpop.f32.mrb[0].mxu0
  %v445 = vadd.f32 %v89, %v444
  %v446 = vpop.f32.mrb[0].mxu0
  %447 = vmatprep.mubr.bf16.mxu0 0
  %448 = vmatmul.mubr.bf16.gmra.mrb[0].mxu0 %v286
  %v449 = vpop.f32.mrb[0].mxu0
  %v450 = vadd.f32 %v89, %v449
  %v451 = vpop.f32.mrb[0].mxu0
  %v452 = vpop.f32.mrb[0].mxu0
  %v453 = vadd.f32 %v89, %v452
  %v454 = vpop.f32.mrb[0].mxu0
  %455 = vmatprep.mubr.bf16.mxu0 0
  %456 = vmatmul.mubr.bf16.gmra.mrb[0].mxu0 %v289
  %v457 = vpop.f32.mrb[0].mxu0
  %v458 = vadd.f32 %v89, %v457
  %v459 = vpop.f32.mrb[0].mxu0
  %v460 = vpop.f32.mrb[0].mxu0
  %v461 = vadd.f32 %v89, %v460
  %v462 = vpop.f32.mrb[0].mxu0
  %463 = vmatprep.mubr.bf16.mxu0 0
  %464 = vmatmul.mubr.bf16.gmra.mrb[0].mxu0 %v292
  %v465 = vpop.f32.mrb[0].mxu0
  %v466 = vadd.f32 %v89, %v465
  %v467 = vpop.f32.mrb[0].mxu0
  %v468 = vpop.f32.mrb[0].mxu0
  %v469 = vadd.f32 %v89, %v468
  %v470 = vpop.f32.mrb[0].mxu0
  %471 = vmatprep.mubr.bf16.mxu0 0
  %472 = vmatmul.mubr.bf16.gmra.mrb[0].mxu0 %v295
  %v473 = vpop.f32.mrb[0].mxu0
  %v474 = vadd.f32 %v89, %v473
  %v475 = vpop.f32.mrb[0].mxu0
  %v476 = vpop.f32.mrb[0].mxu0
  %v477 = vadd.f32 %v89, %v476
  %v478 = vpop.f32.mrb[0].mxu0
  %479 = vmatprep.mubr.bf16.mxu0 0
  %480 = vmatmul.mubr.bf16.gmra.mrb[0].mxu0 %v298
  %v481 = vpop.f32.mrb[0].mxu0
  %v482 = vadd.f32 %v89, %v481
  %v483 = vpop.f32.mrb[0].mxu0
  %v484 = vpop.f32.mrb[0].mxu0
  %v485 = vadd.f32 %v89, %v484
  %v486 = vpop.f32.mrb[0].mxu0
  %487 = vmatprep.mubr.bf16.mxu0 0
  %488 = vmatmul.mubr.bf16.gmra.mrb[0].mxu0 %v301
  %v489 = vpop.f32.mrb[0].mxu0
  %v490 = vadd.f32 %v89, %v489
  %v491 = vpop.f32.mrb[0].mxu0
  %v492 = vpop.f32.mrb[0].mxu0
  %v493 = vadd.f32 %v89, %v492
  %v494 = vpop.f32.mrb[0].mxu0
  %495 = vmatprep.mubr.bf16.mxu0 0
  %496 = vmatmul.mubr.bf16.gmra.mrb[0].mxu0 %v304
  %v497 = vpop.f32.mrb[0].mxu0
  %v498 = vadd.f32 %v89, %v497
  %v499 = vpop.f32.mrb[0].mxu0
  %v500 = vpop.f32.mrb[0].mxu0
  %v501 = vadd.f32 %v89, %v500
  %v502 = vpop.f32.mrb[0].mxu0
  %503 = vmatprep.mubr.bf16.mxu0 0
  %504 = vmatmul.mubr.bf16.gmra.mrb[0].mxu0 %v307
  %v505 = vpop.f32.mrb[0].mxu0
  %v506 = vadd.f32 %v89, %v505
  %v507 = vpop.f32.mrb[0].mxu0
  %v508 = vpop.f32.mrb[0].mxu0
  %v509 = vadd.f32 %v89, %v508
  %v510 = vpop.f32.mrb[0].mxu0
  %511 = vmatprep.mubr.bf16.mxu0 0
  %512 = vmatmul.mubr.bf16.gmra.mrb[0].mxu0 %v310
  %v513 = vpop.f32.mrb[0].mxu0
  %v514 = vadd.f32 %v89, %v513
  %v515 = vpop.f32.mrb[0].mxu0
  %v516 = vpop.f32.mrb[0].mxu0
  %v517 = vadd.f32 %v89, %v516
  %v518 = vpop.f32.mrb[0].mxu0
  %519 = vmatprep.mubr.bf16.mxu0 0
  %520 = vmatmul.mubr.bf16.gmra.mrb[0].mxu0 %v313
  %v521 = vpop.f32.mrb[0].mxu0
  %v522 = vadd.f32 %v89, %v521
  %v523 = vpop.f32.mrb[0].mxu0
  %v524 = vpop.f32.mrb[0].mxu0
  %v525 = vadd.f32 %v89, %v524
  %v526 = vpop.f32.mrb[0].mxu0
  %527 = vmatprep.mubr.bf16.mxu0 0
  %528 = vmatmul.mubr.bf16.gmra.mrb[0].mxu0 %v316
  %v529 = vpop.f32.mrb[0].mxu0
  %v530 = vadd.f32 %v89, %v529
  %v531 = vpop.f32.mrb[0].mxu0
  %v532 = vpop.f32.mrb[0].mxu0
  %v533 = vadd.f32 %v89, %v532
  %v534 = vpop.f32.mrb[0].mxu0
  %535 = vmatprep.mubr.bf16.mxu0 0
  %536 = vmatmul.mubr.bf16.gmra.mrb[0].mxu0 %v319
  %v537 = vpop.f32.mrb[0].mxu0
  %v538 = vadd.f32 %v89, %v537
  %v539 = vpop.f32.mrb[0].mxu0
  %v540 = vpop.f32.mrb[0].mxu0
  %v541 = vadd.f32 %v89, %v540
  %v542 = vpop.f32.mrb[0].mxu0
  %543 = vmatprep.mubr.bf16.mxu0 0
  %544 = vmatmul.mubr.bf16.gmra.mrb[0].mxu0 %v322
  %v545 = vpop.f32.mrb[0].mxu0
  %v546 = vadd.f32 %v89, %v545
  %v547 = vpop.f32.mrb[0].mxu0
  %v548 = vpop.f32.mrb[0].mxu0
  %v549 = vadd.f32 %v89, %v548
  %v550 = vpop.f32.mrb[0].mxu0
  %551 = vmatprep.mubr.bf16.mxu0 0
  %552 = vmatmul.mubr.bf16.gmra.mrb[0].mxu0 %v325
  %v553 = vpop.f32.mrb[0].mxu0
  %v554 = vadd.f32 %v89, %v553
  %v555 = vpop.f32.mrb[0].mxu0
  %v556 = vpop.f32.mrb[0].mxu0
  %v557 = vadd.f32 %v89, %v556
  %v558 = vpop.f32.mrb[0].mxu0
  %559 = vmatprep.mubr.bf16.mxu0 0
  %560 = vmatmul.mubr.bf16.gmra.mrb[0].mxu0 %v328
  %v561 = vpop.f32.mrb[0].mxu0
  %v562 = vadd.f32 %v89, %v561
  %v563 = vpop.f32.mrb[0].mxu0
  %v564 = vpop.f32.mrb[0].mxu0
  %v565 = vadd.f32 %v89, %v564
  %v566 = vpop.f32.mrb[0].mxu0
  %567 = vmatprep.mubr.bf16.mxu0 0
  %568 = vmatmul.mubr.bf16.gmra.mrb[0].mxu0 %v331
  %v569 = vpop.f32.mrb[0].mxu0
  %v570 = vadd.f32 %v89, %v569
  %v571 = vpop.f32.mrb[0].mxu0
  %v572 = vpop.f32.mrb[0].mxu0
  %v573 = vadd.f32 %v89, %v572
  %v574 = vpop.f32.mrb[0].mxu0
  %575 = vmatprep.mubr.bf16.mxu0 0
  %576 = vmatmul.mubr.bf16.gmra.mrb[0].mxu0 %v334
  %v577 = vpop.f32.mrb[0].mxu0
  %v578 = vadd.f32 %v89, %v577
  %v579 = vpop.f32.mrb[0].mxu0
  %v580 = vpop.f32.mrb[0].mxu0
  %v581 = vadd.f32 %v89, %v580
  %v582 = vpop.f32.mrb[0].mxu0
  %583 = vmatprep.mubr.bf16.mxu0 0
  %584 = vmatmul.mubr.bf16.gmra.mrb[0].mxu0 %v337
  %v585 = vpop.f32.mrb[0].mxu0
  %v586 = vadd.f32 %v89, %v585
  %v587 = vpop.f32.mrb[0].mxu0
  %v588 = vpop.f32.mrb[0].mxu0
  %v589 = vadd.f32 %v89, %v588
  %v590 = vpop.f32.mrb[0].mxu0
  %591 = vmatprep.mubr.bf16.mxu0 0
  %592 = vmatmul.mubr.bf16.gmra.mrb[0].mxu0 %v340
  %v593 = vpop.f32.mrb[0].mxu0
  %v594 = vadd.f32 %v89, %v593
  %v595 = vpop.f32.mrb[0].mxu0
  %v596 = vpop.f32.mrb[0].mxu0
  %v597 = vadd.f32 %v89, %v596
  %v598 = vpop.f32.mrb[0].mxu0
  %599 = vmatprep.mubr.bf16.mxu0 0
  %600 = vmatmul.mubr.bf16.gmra.mrb[0].mxu0 %v343
  %v601 = vpop.f32.mrb[0].mxu0
  %v602 = vadd.f32 %v89, %v601
  %v603 = vpop.f32.mrb[0].mxu0
  %v604 = vpop.f32.mrb[0].mxu0
  %v605 = vadd.f32 %v89, %v604
  %v606 = vpop.f32.mrb[0].mxu0
  %607 = vmatprep.mubr.bf16.mxu0 0
  %608 = vmatmul.mubr.bf16.gmra.mrb[0].mxu0 %v346
  %v609 = vpop.f32.mrb[0].mxu0
  %v610 = vadd.f32 %v89, %v609
  %v611 = vpop.f32.mrb[0].mxu0
  %v612 = vpop.f32.mrb[0].mxu0
  %v613 = vadd.f32 %v89, %v612
  %v614 = vpop.f32.mrb[0].mxu0
  %615 = vmatprep.mubr.bf16.mxu0 0
  %616 = vmatmul.mubr.bf16.gmra.mrb[0].mxu0 %v349
  %v617 = vpop.f32.mrb[0].mxu0
  %v618 = vadd.f32 %v89, %v617
  %v619 = vpop.f32.mrb[0].mxu0
  %v620 = vpop.f32.mrb[0].mxu0
  %v621 = vadd.f32 %v89, %v620
  %v622 = vpop.f32.mrb[0].mxu0
  %623 = vmatprep.mubr.bf16.mxu0 0
  %624 = vmatmul.mubr.bf16.gmra.mrb[0].mxu0 %v352
  %v625 = vpop.f32.mrb[0].mxu0
  %v626 = vadd.f32 %v89, %v625
  %v627 = vpop.f32.mrb[0].mxu0
  %v628 = vpop.f32.mrb[0].mxu0
  %v629 = vadd.f32 %v89, %v628
  %v630 = vpop.f32.mrb[0].mxu0
  %631 = vmatprep.mubr.bf16.mxu0 0
  %632 = vmatmul.mubr.bf16.gmra.mrb[0].mxu0 %v355
  %v633 = vpop.f32.mrb[0].mxu0
  %v634 = vadd.f32 %v89, %v633
  %v635 = vpop.f32.mrb[0].mxu0
  %v636 = vpop.f32.mrb[0].mxu0
  %v637 = vadd.f32 %v89, %v636
  %v638 = vpop.f32.mrb[0].mxu0
  %639 = vmatprep.mubr.bf16.mxu0 0
  %640 = vmatmul.mubr.bf16.gmra.mrb[0].mxu0 %v358
  %v641 = vpop.f32.mrb[0].mxu0
  %v642 = vadd.f32 %v89, %v641
  %v643 = vpop.f32.mrb[0].mxu0
  %v644 = vpop.f32.mrb[0].mxu0
  %v645 = vadd.f32 %v89, %v644
  %v646 = vpop.f32.mrb[0].mxu0
  %647 = vmatprep.mubr.bf16.mxu0 0
  %648 = vmatmul.mubr.bf16.gmra.mrb[0].mxu0 %v361
  %v649 = vpop.f32.mrb[0].mxu0
  %v650 = vadd.f32 %v89, %v649
  %v651 = vpop.f32.mrb[0].mxu0
  %v652 = vpop.f32.mrb[0].mxu0
  %v653 = vadd.f32 %v89, %v652
  %v654 = vpop.f32.mrb[0].mxu0
  %655 = vdwg.mxu0
  %vm656 = vcmask 31744
  %657 = vst.msk [vmem:[%s3] sm:$0xff] %vm656, %v402
  %658 = vst.msk [vmem:[%s3 + $0x8] sm:$0xff] %vm656, %v405
  %659 = vst.msk [vmem:[%s3 + $0x10] sm:$0xff] %vm656, %v410
  %660 = vst.msk [vmem:[%s3 + $0x18] sm:$0xff] %vm656, %v413
  %661 = vst.msk [vmem:[%s3 + $0x20] sm:$0xff] %vm656, %v418
  %662 = vst.msk [vmem:[%s3 + $0x28] sm:$0xff] %vm656, %v421
  %663 = vst.msk [vmem:[%s3 + $0x30] sm:$0xff] %vm656, %v426
  %664 = vst.msk [vmem:[%s3 + $0x38] sm:$0xff] %vm656, %v429
  %665 = vst.msk [vmem:[%s3 + $0x40] sm:$0xff] %vm656, %v434
  %666 = vst.msk [vmem:[%s3 + $0x48] sm:$0xff] %vm656, %v437
  %667 = vst.msk [vmem:[%s3 + $0x50] sm:$0xff] %vm656, %v442
  %668 = vst.msk [vmem:[%s3 + $0x58] sm:$0xff] %vm656, %v445
  %669 = vst.msk [vmem:[%s3 + $0x60] sm:$0xff] %vm656, %v450
  %670 = vst.msk [vmem:[%s3 + $0x68] sm:$0xff] %vm656, %v453
  %671 = vst.msk [vmem:[%s3 + $0x70] sm:$0xff] %vm656, %v458
  %672 = vst.msk [vmem:[%s3 + $0x78] sm:$0xff] %vm656, %v461
  %673 = vst.msk [vmem:[%s3 + $0x80] sm:$0xff] %vm656, %v466
  %674 = vst.msk [vmem:[%s3 + $0x88] sm:$0xff] %vm656, %v469
  %675 = vst.msk [vmem:[%s3 + $0x90] sm:$0xff] %vm656, %v474
  %676 = vst.msk [vmem:[%s3 + $0x98] sm:$0xff] %vm656, %v477
  %677 = vst.msk [vmem:[%s3 + $0xa0] sm:$0xff] %vm656, %v482
  %678 = vst.msk [vmem:[%s3 + $0xa8] sm:$0xff] %vm656, %v485
  %679 = vst.msk [vmem:[%s3 + $0xb0] sm:$0xff] %vm656, %v490
  %680 = vst.msk [vmem:[%s3 + $0xb8] sm:$0xff] %vm656, %v493
  %681 = vst.msk [vmem:[%s3 + $0xc0] sm:$0xff] %vm656, %v498
  %682 = vst.msk [vmem:[%s3 + $0xc8] sm:$0xff] %vm656, %v501
  %683 = vst.msk [vmem:[%s3 + $0xd0] sm:$0xff] %vm656, %v506
  %684 = vst.msk [vmem:[%s3 + $0xd8] sm:$0xff] %vm656, %v509
  %685 = vst.msk [vmem:[%s3 + $0xe0] sm:$0xff] %vm656, %v514
  %686 = vst.msk [vmem:[%s3 + $0xe8] sm:$0xff] %vm656, %v517
  %687 = vst.msk [vmem:[%s3 + $0xf0] sm:$0xff] %vm656, %v522
  %688 = vst.msk [vmem:[%s3 + $0xf8] sm:$0xff] %vm656, %v525
  %689 = vst.msk [vmem:[%s3 + $0x100] sm:$0xff] %vm656, %v530
  %690 = vst.msk [vmem:[%s3 + $0x108] sm:$0xff] %vm656, %v533
  %691 = vst.msk [vmem:[%s3 + $0x110] sm:$0xff] %vm656, %v538
  %692 = vst.msk [vmem:[%s3 + $0x118] sm:$0xff] %vm656, %v541
  %693 = vst.msk [vmem:[%s3 + $0x120] sm:$0xff] %vm656, %v546
  %694 = vst.msk [vmem:[%s3 + $0x128] sm:$0xff] %vm656, %v549
  %695 = vst.msk [vmem:[%s3 + $0x130] sm:$0xff] %vm656, %v554
  %696 = vst.msk [vmem:[%s3 + $0x138] sm:$0xff] %vm656, %v557
  %697 = vst.msk [vmem:[%s3 + $0x140] sm:$0xff] %vm656, %v562
  %698 = vst.msk [vmem:[%s3 + $0x148] sm:$0xff] %vm656, %v565
  %699 = vst.msk [vmem:[%s3 + $0x150] sm:$0xff] %vm656, %v570
  %700 = vst.msk [vmem:[%s3 + $0x158] sm:$0xff] %vm656, %v573
  %701 = vst.msk [vmem:[%s3 + $0x160] sm:$0xff] %vm656, %v578
  %702 = vst.msk [vmem:[%s3 + $0x168] sm:$0xff] %vm656, %v581
  %703 = vst.msk [vmem:[%s3 + $0x170] sm:$0xff] %vm656, %v586
  %704 = vst.msk [vmem:[%s3 + $0x178] sm:$0xff] %vm656, %v589
  %705 = vst.msk [vmem:[%s3 + $0x180] sm:$0xff] %vm656, %v594
  %706 = vst.msk [vmem:[%s3 + $0x188] sm:$0xff] %vm656, %v597
  %707 = vst.msk [vmem:[%s3 + $0x190] sm:$0xff] %vm656, %v602
  %708 = vst.msk [vmem:[%s3 + $0x198] sm:$0xff] %vm656, %v605
  %709 = vst.msk [vmem:[%s3 + $0x1a0] sm:$0xff] %vm656, %v610
  %710 = vst.msk [vmem:[%s3 + $0x1a8] sm:$0xff] %vm656, %v613
  %711 = vst.msk [vmem:[%s3 + $0x1b0] sm:$0xff] %vm656, %v618
  %712 = vst.msk [vmem:[%s3 + $0x1b8] sm:$0xff] %vm656, %v621
  %713 = vst.msk [vmem:[%s3 + $0x1c0] sm:$0xff] %vm656, %v626
  %714 = vst.msk [vmem:[%s3 + $0x1c8] sm:$0xff] %vm656, %v629
  %715 = vst.msk [vmem:[%s3 + $0x1d0] sm:$0xff] %vm656, %v634
  %716 = vst.msk [vmem:[%s3 + $0x1d8] sm:$0xff] %vm656, %v637
  %717 = vst.msk [vmem:[%s3 + $0x1e0] sm:$0xff] %vm656, %v642
  %718 = vst.msk [vmem:[%s3 + $0x1e8] sm:$0xff] %vm656, %v645
  %719 = vst.msk [vmem:[%s3 + $0x1f0] sm:$0xff] %vm656, %v650
  %720 = vst.msk [vmem:[%s3 + $0x1f8] sm:$0xff] %vm656, %v653
  // Predicated region
  $region14: #{fastfc_forward.14} parent=0 // pred_check
    _
  $region15: #{fastfc_forward.14} parent=0 // pred_check_branch
    %722 = sbr.rel (0) target = $region17
  $region16: #{fastfc_forward.14} parent=0 // pred_region
    _
  $region17: #{fastfc_forward.14} parent=0 // pred_fallthru
    _
  // Predicated region
  $region18: #{fastfc_forward.14} parent=0 // pred_check
    _
  $region19: #{fastfc_forward.14} parent=0 // pred_check_branch
    %724 = sbr.rel (0) target = $region21
  $region20: #{fastfc_forward.14} parent=0 // pred_region
    _
  $region21: #{fastfc_forward.14} parent=0 // pred_fallthru
    _

// kernel: fastfc_forward.15
$region0: #{fastfc_forward.15}
  #allocation0 [shape = 'u32[]', space=smem, size = 0x4, offset = 0x4, fixed_abs, tag = 'smem constant byte address 0x4 - core index']
  #allocation1 [shape = 'u32[144,128]{1,0:T(1,128)}', space=vmem, size = 0x12000, scoped, tag = 'internal scratch']
  %s0 = inlined_call_operand.vmem [shape: f32[8,256], index: 0, kind: input, shape index: {}]
  %s1 = inlined_call_operand.vmem [shape: f32[8,256], index: 1, kind: input, shape index: {}]
  %s2 = inlined_call_operand.vmem [shape: f32[1,256], index: 2, kind: output, shape index: {0}]
  %s3 = inlined_call_operand.vmem [shape: f32[1,256], index: 3, kind: output, shape index: {1}]
  %4 = xla_tuple %s2, %s3
  %s5 = sld [smem:[#allocation0]]
  $region30: #{fastfc_forward.15} parent=0
    _
  %s7 = ssub.s32 1, %s5
  %s8 = scalar_select 0, %s7, %s5
  // Predicated region
  $region2: #{fastfc_forward.15} parent=0 // pred_check
    _
  $region3: #{fastfc_forward.15} parent=0 // pred_check_branch
    %10 = sbr.rel (0) target = $region5
  $region4: #{fastfc_forward.15} parent=0 // pred_region
    _
  $region5: #{fastfc_forward.15} parent=0 // pred_fallthru
    _
  // Predicated region
  $region6: #{fastfc_forward.15} parent=0 // pred_check
    _
  $region7: #{fastfc_forward.15} parent=0 // pred_check_branch
    %12 = sbr.rel (0) target = $region9
  $region8: #{fastfc_forward.15} parent=0 // pred_region
    _
  $region9: #{fastfc_forward.15} parent=0 // pred_fallthru
    _
  %p13 = scmp.eq.s32.totalorder 0, 0
  // Predicated region
  $region10: #{fastfc_forward.15} parent=0 // pred_check
    %p14 = pneg %p13
  $region11: #{fastfc_forward.15} parent=0 // pred_check_branch
    %16 = sbr.rel (%p14) target = $region13
  $region12: #{fastfc_forward.15} parent=0 // pred_region
    %v17 = vlaneseq
    %vm18 = vcmp.ge.s32.totalorder %v17, 0
    %vm19 = vcmp.lt.s32.totalorder %v17, 256
    %vm20 = vmand %vm18, %vm19
    %21 = vst.msk [vmem:[%s2] sm:$0x3] %vm20, 0.0
    %22 = vst.msk [vmem:[%s3] sm:$0x3] %vm20, 0.0
  $region13: #{fastfc_forward.15} parent=0 // pred_fallthru
    _
  %v23 = vlaneseq
  %v24 = vshrl.u32 %v23, 7
  %s25 = smul.u32 0, 8
  %v26 = vstv %s25
  %v27 = vadd.s32 %v24, %v26
  %vm28 = vcmp.lt.s32.totalorder %v27, 8
  %v29 = vld [vmem:[%s0] sm:$0xff]
  %v30 = vld [vmem:[%s0 + $0x8] sm:$0xff]
  %v31 = vld [vmem:[%s1] sm:$0xff]
  %v32 = vld [vmem:[%s1 + $0x8] sm:$0xff]
  %v33 = vadd.f32 %v29, %v31
  %v34 = vadd.f32 %v30, %v32
  %v35 = vsel %vm28, %v33, 0.0
  %v36 = vsel %vm28, %v34, 0.0
  %v37 = vld [vmem:[%s2] sm:$0x3]
  %v38 = vrot.slane %v35, 4
  %v39 = vadd.f32 %v35, %v38
  %v40 = vrot.slane %v39, 2
  %v41 = vadd.f32 %v39, %v40
  %v42 = vrot.slane %v41, 1
  %v43 = vadd.f32 %v41, %v42
  %v44 = vrot.slane %v36, 4
  %v45 = vadd.f32 %v36, %v44
  %v46 = vrot.slane %v45, 2
  %v47 = vadd.f32 %v45, %v46
  %v48 = vrot.slane %v47, 1
  %v49 = vadd.f32 %v47, %v48
  %v52 = vcombine.low %v43, %v49
  %v54 = vunpack.c.l.s4 1966171168
  %v55 = vunpack.c.0.s8 %v54
  %v56 = vlaneseq
  %v57 = vshrl.u32 %v56, 7
  %v58 = vsub.s32 %v55, %v57
  %v59 = vrot.slane %v52, %v58
  %v61 = vunpack.c.l.s4 1966171168
  %v62 = vunpack.c.0.s8 %v61
  %v63 = vlaneseq
  %v64 = vshrl.u32 %v63, 7
  %v65 = vsub.s32 %v62, %v64
  %v66 = vrot.slane %v59, %v65
  %v68 = vadd.f32 %v37, %v66
  %v69 = vlaneseq
  %vm70 = vcmp.ge.s32.totalorder %v69, 0
  %vm71 = vcmp.lt.s32.totalorder %v69, 256
  %vm72 = vmand %vm70, %vm71
  %73 = vst.msk [vmem:[%s2] sm:$0x3] %vm72, %v68
  %v74 = vld [vmem:[%s3] sm:$0x3]
  %v75 = vmul.f32 %v35, %v35
  %v76 = vmul.f32 %v36, %v36
  %v77 = vrot.slane %v75, 4
  %v78 = vadd.f32 %v75, %v77
  %v79 = vrot.slane %v78, 2
  %v80 = vadd.f32 %v78, %v79
  %v81 = vrot.slane %v80, 1
  %v82 = vadd.f32 %v80, %v81
  %v83 = vrot.slane %v76, 4
  %v84 = vadd.f32 %v76, %v83
  %v85 = vrot.slane %v84, 2
  %v86 = vadd.f32 %v84, %v85
  %v87 = vrot.slane %v86, 1
  %v88 = vadd.f32 %v86, %v87
  %v91 = vcombine.low %v82, %v88
  %v93 = vunpack.c.l.s4 1966171168
  %v94 = vunpack.c.0.s8 %v93
  %v95 = vlaneseq
  %v96 = vshrl.u32 %v95, 7
  %v97 = vsub.s32 %v94, %v96
  %v98 = vrot.slane %v91, %v97
  %v100 = vunpack.c.l.s4 1966171168
  %v101 = vunpack.c.0.s8 %v100
  %v102 = vlaneseq
  %v103 = vshrl.u32 %v102, 7
  %v104 = vsub.s32 %v101, %v103
  %v105 = vrot.slane %v98, %v104
  %v107 = vadd.f32 %v74, %v105
  %108 = vst.msk [vmem:[%s3] sm:$0x3] %vm72, %v107
  // Predicated region
  $region14: #{fastfc_forward.15} parent=0 // pred_check
    _
  $region15: #{fastfc_forward.15} parent=0 // pred_check_branch
    %110 = sbr.rel (0) target = $region17
  $region16: #{fastfc_forward.15} parent=0 // pred_region
    _
  $region17: #{fastfc_forward.15} parent=0 // pred_fallthru
    _
  // Predicated region
  $region18: #{fastfc_forward.15} parent=0 // pred_check
    _
  $region19: #{fastfc_forward.15} parent=0 // pred_check_branch
    %112 = sbr.rel (0) target = $region21
  $region20: #{fastfc_forward.15} parent=0 // pred_region
    _
  $region21: #{fastfc_forward.15} parent=0 // pred_fallthru
    _
  // Predicated region
  $region22: #{fastfc_forward.15} parent=0 // pred_check
    _
  $region23: #{fastfc_forward.15} parent=0 // pred_check_branch
    %114 = sbr.rel (0) target = $region25
  $region24: #{fastfc_forward.15} parent=0 // pred_region
    _
  $region25: #{fastfc_forward.15} parent=0 // pred_fallthru
    _
  // Predicated region
  $region26: #{fastfc_forward.15} parent=0 // pred_check
    _
  $region27: #{fastfc_forward.15} parent=0 // pred_check_branch
    %116 = sbr.rel (0) target = $region29
  $region28: #{fastfc_forward.15} parent=0 // pred_region
    _
  $region29: #{fastfc_forward.15} parent=0 // pred_fallthru
    _

// kernel: fastfc_forward.16
$region0: #{fastfc_forward.16}
  #allocation0 [shape = 'u32[]', space=smem, size = 0x4, offset = 0x4, fixed_abs, tag = 'smem constant byte address 0x4 - core index']
  #allocation1 [shape = 'u32[144,128]{1,0:T(1,128)}', space=vmem, size = 0x12000, scoped, tag = 'internal scratch']
  %s0 = inlined_call_operand.vmem [shape: f32[8,256], index: 0, kind: input, shape index: {}]
  %s1 = inlined_call_operand.vmem [shape: f32[8,256], index: 1, kind: input, shape index: {}]
  %s2 = inlined_call_operand.vmem [shape: f32[8,256], index: 2, kind: input, shape index: {}]
  %s3 = inlined_call_operand.vmem [shape: f32[1,256], index: 3, kind: input, shape index: {}]
  %s4 = inlined_call_operand.vmem [shape: f32[1,256], index: 4, kind: input, shape index: {}]
  %s5 = inlined_call_operand.vmem [shape: f32[1,256], index: 5, kind: input, shape index: {}]
  %s6 = inlined_call_operand.vmem [shape: f32[8,256], index: 6, kind: output, shape index: {}]
  %s7 = sld [smem:[#allocation0]]
  $region34: #{fastfc_forward.16} parent=0
    _
  %s9 = ssub.s32 1, %s7
  %s10 = scalar_select 0, %s9, %s7
  // Predicated region
  $region2: #{fastfc_forward.16} parent=0 // pred_check
    _
  $region3: #{fastfc_forward.16} parent=0 // pred_check_branch
    %12 = sbr.rel (0) target = $region5
  $region4: #{fastfc_forward.16} parent=0 // pred_region
    _
  $region5: #{fastfc_forward.16} parent=0 // pred_fallthru
    _
  // Predicated region
  $region6: #{fastfc_forward.16} parent=0 // pred_check
    _
  $region7: #{fastfc_forward.16} parent=0 // pred_check_branch
    %14 = sbr.rel (0) target = $region9
  $region8: #{fastfc_forward.16} parent=0 // pred_region
    _
  $region9: #{fastfc_forward.16} parent=0 // pred_fallthru
    _
  // Predicated region
  $region10: #{fastfc_forward.16} parent=0 // pred_check
    _
  $region11: #{fastfc_forward.16} parent=0 // pred_check_branch
    %16 = sbr.rel (0) target = $region13
  $region12: #{fastfc_forward.16} parent=0 // pred_region
    _
  $region13: #{fastfc_forward.16} parent=0 // pred_fallthru
    _
  // Predicated region
  $region14: #{fastfc_forward.16} parent=0 // pred_check
    _
  $region15: #{fastfc_forward.16} parent=0 // pred_check_branch
    %18 = sbr.rel (0) target = $region17
  $region16: #{fastfc_forward.16} parent=0 // pred_region
    _
  $region17: #{fastfc_forward.16} parent=0 // pred_fallthru
    _
  // Predicated region
  $region18: #{fastfc_forward.16} parent=0 // pred_check
    _
  $region19: #{fastfc_forward.16} parent=0 // pred_check_branch
    %20 = sbr.rel (0) target = $region21
  $region20: #{fastfc_forward.16} parent=0 // pred_region
    _
  $region21: #{fastfc_forward.16} parent=0 // pred_fallthru
    _
  // Predicated region
  $region22: #{fastfc_forward.16} parent=0 // pred_check
    _
  $region23: #{fastfc_forward.16} parent=0 // pred_check_branch
    %22 = sbr.rel (0) target = $region25
  $region24: #{fastfc_forward.16} parent=0 // pred_region
    _
  $region25: #{fastfc_forward.16} parent=0 // pred_fallthru
    _
  %v23 = vld [vmem:[%s0] sm:$0xff]
  %v24 = vld [vmem:[%s0 + $0x8] sm:$0xff]
  %v25 = vld [vmem:[%s1] sm:$0xff]
  %v26 = vld [vmem:[%s1 + $0x8] sm:$0xff]
  %v27 = vadd.f32 %v23, %v25
  %v28 = vadd.f32 %v24, %v26
  %v29 = vld [vmem:[%s3] sm:$0x3]
  %v31 = vlaneseq
  %v32 = vshrl.u32 %v31, 7
  %v33 = vsub.s32 0, %v32
  %v34 = vrot.slane %v29, %v33
  %v35 = vlaneseq
  %v36 = vshrl.u32 %v35, 7
  %v37 = vsub.s32 1, %v36
  %v38 = vrot.slane %v29, %v37
  %v41 = vmul.f32 %v27, %v34
  %v42 = vmul.f32 %v28, %v38
  %v43 = vld [vmem:[%s4] sm:$0x3]
  %v45 = vlaneseq
  %v46 = vshrl.u32 %v45, 7
  %v47 = vsub.s32 0, %v46
  %v48 = vrot.slane %v43, %v47
  %v49 = vlaneseq
  %v50 = vshrl.u32 %v49, 7
  %v51 = vsub.s32 1, %v50
  %v52 = vrot.slane %v43, %v51
  %v55 = vadd.f32 %v41, %v48
  %v56 = vadd.f32 %v42, %v52
  %vm57 = vcmp.ge.f32.partialorder %v55, 0.0
  %vm58 = vcmp.ge.f32.partialorder %v56, 0.0
  %v59 = vld [vmem:[%s5] sm:$0x3]
  %v61 = vlaneseq
  %v62 = vshrl.u32 %v61, 7
  %v63 = vsub.s32 0, %v62
  %v64 = vrot.slane %v59, %v63
  %v65 = vlaneseq
  %v66 = vshrl.u32 %v65, 7
  %v67 = vsub.s32 1, %v66
  %v68 = vrot.slane %v59, %v67
  %v71 = vmul.f32 %v64, %v55
  %v72 = vmul.f32 %v68, %v56
  %v73 = vsel %vm57, %v55, %v71
  %v74 = vsel %vm58, %v56, %v72
  %v75 = vld [vmem:[%s2] sm:$0xff]
  %v76 = vld [vmem:[%s2 + $0x8] sm:$0xff]
  %v77 = vadd.f32 %v73, %v75
  %v78 = vadd.f32 %v74, %v76
  %79 = vst [vmem:[%s6] sm:$0xff] %v77
  %80 = vst [vmem:[%s6 + $0x8] sm:$0xff] %v78
  // Predicated region
  $region26: #{fastfc_forward.16} parent=0 // pred_check
    _
  $region27: #{fastfc_forward.16} parent=0 // pred_check_branch
    %82 = sbr.rel (0) target = $region29
  $region28: #{fastfc_forward.16} parent=0 // pred_region
    _
  $region29: #{fastfc_forward.16} parent=0 // pred_fallthru
    _
  // Predicated region
  $region30: #{fastfc_forward.16} parent=0 // pred_check
    _
  $region31: #{fastfc_forward.16} parent=0 // pred_check_branch
    %84 = sbr.rel (0) target = $region33
  $region32: #{fastfc_forward.16} parent=0 // pred_region
    _
  $region33: #{fastfc_forward.16} parent=0 // pred_fallthru
    _

</llo_original>
